<compile_context>
chip_gen: v6e
topology: v6e:2x2x1
jax: 0.10.0
libtpu: 0.0.40
codegen_flags: <defaults>
</compile_context>

<pallas_src>
import functools

import jax
import jax.numpy as jnp
from jax.experimental import pallas as pl
from jax.experimental.pallas import tpu as pltpu

# ----------------------------- configuration -------------------------------
DIM = 8          # number of input/output channels ("dim" in the module)
HEADS = 4
DIM_HEAD = 32
HIDDEN = HEADS * DIM_HEAD          # 128
SCALE = DIM_HEAD ** (-0.5)
GN_EPS = 1e-5

B, H, W = 2, 16, 16
N = H * W                           # 256 (multiple of 128 -> lane friendly)


# ------------------------------- kernel ------------------------------------
def linear_attention_kernel(x_ref, wqkvT_ref, wout_ref, params_ref, o_ref):
    # x_ref: (bb, C, N) -- bb batch elements per grid step (static).
    # wqkvT_ref: (C, 3*HIDDEN) lane-dense transposed qkv projection weight.
    # wout_ref: (DIM, HIDDEN) output projection weight.
    # params_ref: (DIM, 3) = [b_out | gn_w | gn_b] columns.
    bb = x_ref.shape[0]

    w_qkv_t = wqkvT_ref[...]                   # (C, 3*HIDDEN)
    w_out = wout_ref[...]                      # (DIM, HIDDEN)
    params = params_ref[...]                   # (DIM, 3)
    b_out = params[:, 0:1]                     # (DIM, 1)
    gn_w = params[:, 1:2]                      # (DIM, 1)
    gn_b = params[:, 2:3]                      # (DIM, 1)

    for b in range(bb):                        # static unroll (bb is 1 or B)
        x = x_ref[b]                           # (C, N)

        # 1x1 conv (no bias) == channel matmul, contracting the C axis of the
        # lane-dense transposed weight: (C,3H)^T @ (C,N) -> (3H, N)
        qkv = jax.lax.dot_general(
            w_qkv_t, x, (((0,), (0,)), ((), ())),
            preferred_element_type=jnp.float32)            # (3*HIDDEN, N)
        qkv = qkv.reshape(3, HEADS, DIM_HEAD, N)
        q, k, v = qkv[0], qkv[1], qkv[2]                   # (HEADS, D, N)

        # q: softmax over the head-channel axis (torch dim=-2); SCALE folded
        # into the approximate reciprocal of the denominator (EUP slot).
        q_max = jnp.max(q, axis=1, keepdims=True)
        q_exp = jnp.exp(q - q_max)
        q_sum = jnp.sum(q_exp, axis=1, keepdims=True)
        q = q_exp * (SCALE * pl.reciprocal(q_sum, approx=True))

        # k: softmax over the spatial axis (torch dim=-1).
        k_max = jnp.max(k, axis=2, keepdims=True)
        k_exp = jnp.exp(k - k_max)
        k_sum = jnp.sum(k_exp, axis=2, keepdims=True)
        k = k_exp * pl.reciprocal(k_sum, approx=True)

        # Batched over heads: context[h,d,e] = sum_n k[h,d,n] * v[h,e,n]
        context = jax.lax.dot_general(
            k, v, (((2,), (2,)), ((0,), (0,))),
            preferred_element_type=jnp.float32)            # (HEADS, D, D)
        # out[h,e,n] = sum_d context[h,d,e] * q[h,d,n]
        out_h = jax.lax.dot_general(
            context, q, (((1,), (1,)), ((0,), (0,))),
            preferred_element_type=jnp.float32)            # (HEADS, D, N)

        # Output 1x1 conv with bias; the head-concat is just a tile-aligned
        # sublane merge (HEADS, D, N) -> (HIDDEN, N), no copy/concatenate.
        y = jnp.dot(w_out, out_h.reshape(HIDDEN, N),
                    preferred_element_type=jnp.float32) + b_out   # (DIM, N)

        # GroupNorm(1, DIM): one-pass stats over all channels+spatial of this
        # batch element, affine folded into a single FMA.
        inv_cnt = 1.0 / (DIM * N)
        mean = jnp.sum(y) * inv_cnt
        var = jnp.sum(y * y) * inv_cnt - mean * mean
        rstd = jax.lax.rsqrt(var + GN_EPS)
        scale = gn_w * rstd                                # (DIM, 1)
        shift = gn_b - mean * scale                        # (DIM, 1)
        o_ref[b] = (y * scale + shift).astype(o_ref.dtype)


# ------------------------------ wrapper -------------------------------------
def _pick_batch_block(batch):
    """v7x has 2 TensorCores -> keep a parallel batch grid axis.
    Single-TC chips (v5e/v6e) -> fold the whole batch into one grid step."""
    try:
        kind = jax.devices()[0].device_kind.lower()
    except Exception:  # pragma: no cover - defensive fallback
        kind = ""
    if ("v7" in kind or "tpu7" in kind) and batch > 1 and batch % 2 == 0:
        return 1
    return batch


@functools.partial(jax.jit, static_argnames=("batch_block",))
def linear_attention(x, w_qkv, w_out, b_out, gn_w, gn_b, *, batch_block):
    b, c, h, w = x.shape
    n = h * w
    assert b % batch_block == 0
    x_flat = x.reshape(b, c, n)                          # (B, C, N)

    # Lane-dense weight layout for the qkv projection: (C, 3*HIDDEN).
    w_qkv_t = w_qkv.T
    # Merge the three tiny per-channel params into one (DIM, 3) input.
    params = jnp.stack([b_out, gn_w, gn_b], axis=1)      # (DIM, 3)

    bb = batch_block
    out = pl.pallas_call(
        linear_attention_kernel,
        out_shape=jax.ShapeDtypeStruct((b, DIM, n), jnp.float32),
        grid=(b // bb,),
        in_specs=[
            pl.BlockSpec((bb, c, n), lambda i: (i, 0, 0)),
            pl.BlockSpec((c, 3 * HIDDEN), lambda i: (0, 0)),
            pl.BlockSpec((DIM, HIDDEN), lambda i: (0, 0)),
            pl.BlockSpec((DIM, 3), lambda i: (0, 0)),
        ],
        out_specs=pl.BlockSpec((bb, DIM, n), lambda i: (i, 0, 0)),
        compiler_params=pltpu.CompilerParams(
            dimension_semantics=("parallel",)),
    )(x_flat, w_qkv_t, w_out, params)

    return out.reshape(b, DIM, h, w)


# --------------------------- pure-JAX reference ------------------------------
def linear_attention_ref(x, w_qkv, w_out, b_out, gn_w, gn_b):
    b, c, h, w = x.shape
    n = h * w
    xf = x.reshape(b, c, n)
    qkv = jnp.einsum('oc,bcn->bon', w_qkv, xf)
    q, k, v = jnp.split(qkv, 3, axis=1)
    reh = lambda t: t.reshape(b, HEADS, DIM_HEAD, n)
    q, k, v = map(reh, (q, k, v))
    q = jax.nn.softmax(q, axis=-2) * SCALE
    k = jax.nn.softmax(k, axis=-1)
    context = jnp.einsum('bhdn,bhen->bhde', k, v)
    out = jnp.einsum('bhde,bhdn->bhen', context, q)
    out = out.reshape(b, HIDDEN, n)
    y = jnp.einsum('oc,bcn->bon', w_out, out) + b_out.reshape(1, DIM, 1)
    mean = y.mean(axis=(1, 2), keepdims=True)
    var = ((y - mean) ** 2).mean(axis=(1, 2), keepdims=True)
    y = (y - mean) / jnp.sqrt(var + GN_EPS)
    y = y * gn_w.reshape(1, DIM, 1) + gn_b.reshape(1, DIM, 1)
    return y.reshape(b, DIM, h, w)


# --------------------------------- main --------------------------------------
if __name__ == "__main__":
    key = jax.random.PRNGKey(0)
    k_x, k_qkv, k_out, k_b = jax.random.split(key, 4)

    # Input (NCHW, like the PyTorch module).
    x = jax.random.normal(k_x, (B, DIM, H, W), dtype=jnp.float32)

    # Deterministic synthetic parameters (shapes match the torch module;
    # 1x1 conv weights squeezed from (O, I, 1, 1) -> (O, I)).
    w_qkv = jax.random.normal(k_qkv, (3 * HIDDEN, DIM), dtype=jnp.float32) * 0.1
    w_out = jax.random.normal(k_out, (DIM, HIDDEN), dtype=jnp.float32) * 0.1
    b_out = jax.random.normal(k_b, (DIM,), dtype=jnp.float32) * 0.1
    gn_w = jnp.ones((DIM,), dtype=jnp.float32)    # GroupNorm affine weight
    gn_b = jnp.zeros((DIM,), dtype=jnp.float32)   # GroupNorm affine bias

    bb = _pick_batch_block(B)
    y = linear_attention(x, w_qkv, w_out, b_out, gn_w, gn_b, batch_block=bb)
    jax.block_until_ready(y)

    y_ref = linear_attention_ref(x, w_qkv, w_out, b_out, gn_w, gn_b)
    assert y.shape == (B, DIM, H, W)
    max_err = float(jnp.max(jnp.abs(y - y_ref)))
    assert jnp.allclose(y, y_ref, atol=5e-3, rtol=5e-3), max_err

    print("KERNEL_OK")
</pallas_src>

<mosaic_0001>
module attributes {stable_mosaic.version = 11 : i64} {
  func.func @linear_attention_kernel(%arg0: i32, %arg1: memref<2x8x256xf32, #tpu.memory_space<vmem>>, %arg2: memref<8x384xf32, #tpu.memory_space<vmem>>, %arg3: memref<8x128xf32, #tpu.memory_space<vmem>>, %arg4: memref<8x3xf32, #tpu.memory_space<vmem>>, %arg5: memref<2x8x256xf32, #tpu.memory_space<vmem>>) attributes {dimension_semantics = [#tpu.dimension_semantics<parallel>], iteration_bounds = array<i64: 1>, scalar_prefetch = 0 : i64, scratch_operands = 0 : i64, tpu.core_type = #tpu.core_type<tc>, window_params = [{transform_indices = @transform_0, window_bounds = array<i64: 2, 8, 256>}, {pipeline_mode = #tpu.pipeline_mode<synchronous>, transform_indices = @transform_1, window_bounds = array<i64: 8, 384>}, {pipeline_mode = #tpu.pipeline_mode<synchronous>, transform_indices = @transform_2, window_bounds = array<i64: 8, 128>}, {pipeline_mode = #tpu.pipeline_mode<synchronous>, transform_indices = @transform_3, window_bounds = array<i64: 8, 3>}, {transform_indices = @transform_4, window_bounds = array<i64: 2, 8, 256>}]} {
    %c0 = arith.constant 0 : index
    %c0_0 = arith.constant 0 : index
    %0 = vector.load %arg2[%c0, %c0_0] : memref<8x384xf32, #tpu.memory_space<vmem>>, vector<8x384xf32>
    %c0_1 = arith.constant 0 : index
    %c0_2 = arith.constant 0 : index
    %1 = vector.load %arg3[%c0_1, %c0_2] : memref<8x128xf32, #tpu.memory_space<vmem>>, vector<8x128xf32>
    %c0_3 = arith.constant 0 : index
    %c0_4 = arith.constant 0 : index
    %2 = vector.load %arg4[%c0_3, %c0_4] : memref<8x3xf32, #tpu.memory_space<vmem>>, vector<8x3xf32>
    %3 = vector.extract_strided_slice %2 {offsets = [0, 0], sizes = [8, 1], strides = [1, 1]} : vector<8x3xf32> to vector<8x1xf32>
    %4 = vector.extract_strided_slice %2 {offsets = [0, 1], sizes = [8, 1], strides = [1, 1]} : vector<8x3xf32> to vector<8x1xf32>
    %5 = vector.extract_strided_slice %2 {offsets = [0, 2], sizes = [8, 1], strides = [1, 1]} : vector<8x3xf32> to vector<8x1xf32>
    %c0_5 = arith.constant 0 : index
    %c0_6 = arith.constant 0 : index
    %c0_7 = arith.constant 0 : index
    %6 = vector.load %arg1[%c0_5, %c0_6, %c0_7] : memref<2x8x256xf32, #tpu.memory_space<vmem>>, vector<1x8x256xf32>
    %7 = vector.shape_cast %6 : vector<1x8x256xf32> to vector<8x256xf32>
    %cst = arith.constant dense<0.000000e+00> : vector<384x256xf32>
    %8 = tpu.matmul %0, %7, %cst {dimension_numbers = #tpu.dot_dimension_numbers<[0], [0], [1], [1], [0, 1, 1, 1], [], []>} : vector<8x384xf32>, vector<8x256xf32>, vector<384x256xf32> -> vector<384x256xf32>
    %9 = vector.shape_cast %8 : vector<384x256xf32> to vector<3x4x32x256xf32>
    %10 = vector.extract_strided_slice %9 {offsets = [0, 0, 0, 0], sizes = [1, 4, 32, 256], strides = [1, 1, 1, 1]} : vector<3x4x32x256xf32> to vector<1x4x32x256xf32>
    %11 = vector.shape_cast %10 : vector<1x4x32x256xf32> to vector<4x32x256xf32>
    %12 = vector.extract_strided_slice %9 {offsets = [1, 0, 0, 0], sizes = [1, 4, 32, 256], strides = [1, 1, 1, 1]} : vector<3x4x32x256xf32> to vector<1x4x32x256xf32>
    %13 = vector.shape_cast %12 : vector<1x4x32x256xf32> to vector<4x32x256xf32>
    %14 = vector.extract_strided_slice %9 {offsets = [2, 0, 0, 0], sizes = [1, 4, 32, 256], strides = [1, 1, 1, 1]} : vector<3x4x32x256xf32> to vector<1x4x32x256xf32>
    %15 = vector.shape_cast %14 : vector<1x4x32x256xf32> to vector<4x32x256xf32>
    %cst_8 = arith.constant dense<0xFF800000> : vector<4x256xf32>
    %16 = vector.multi_reduction <maximumf>, %11, %cst_8 [1] : vector<4x32x256xf32> to vector<4x256xf32>
    %17 = vector.shape_cast %16 : vector<4x256xf32> to vector<4x1x256xf32>
    %18 = vector.broadcast %17 : vector<4x1x256xf32> to vector<4x32x256xf32>
    %19 = arith.subf %11, %18 : vector<4x32x256xf32>
    %20 = math.exp %19 : vector<4x32x256xf32>
    %cst_9 = arith.constant dense<0.000000e+00> : vector<4x256xf32>
    %21 = vector.multi_reduction <add>, %20, %cst_9 [1] : vector<4x32x256xf32> to vector<4x256xf32>
    %22 = vector.shape_cast %21 : vector<4x256xf32> to vector<4x1x256xf32>
    %23 = tpu.reciprocal %22 {approx = true} : vector<4x1x256xf32> -> vector<4x1x256xf32>
    %cst_10 = arith.constant 0.176776692 : f32
    %24 = vector.broadcast %cst_10 : f32 to vector<4x1x256xf32>
    %25 = arith.mulf %24, %23 : vector<4x1x256xf32>
    %26 = vector.broadcast %25 : vector<4x1x256xf32> to vector<4x32x256xf32>
    %27 = arith.mulf %20, %26 : vector<4x32x256xf32>
    %cst_11 = arith.constant dense<0xFF800000> : vector<4x32xf32>
    %28 = vector.multi_reduction <maximumf>, %13, %cst_11 [2] : vector<4x32x256xf32> to vector<4x32xf32>
    %29 = vector.shape_cast %28 : vector<4x32xf32> to vector<4x32x1xf32>
    %30 = vector.broadcast %29 : vector<4x32x1xf32> to vector<4x32x256xf32>
    %31 = arith.subf %13, %30 : vector<4x32x256xf32>
    %32 = math.exp %31 : vector<4x32x256xf32>
    %cst_12 = arith.constant dense<0.000000e+00> : vector<4x32xf32>
    %33 = vector.multi_reduction <add>, %32, %cst_12 [2] : vector<4x32x256xf32> to vector<4x32xf32>
    %34 = vector.shape_cast %33 : vector<4x32xf32> to vector<4x32x1xf32>
    %35 = tpu.reciprocal %34 {approx = true} : vector<4x32x1xf32> -> vector<4x32x1xf32>
    %36 = vector.broadcast %35 : vector<4x32x1xf32> to vector<4x32x256xf32>
    %37 = arith.mulf %32, %36 : vector<4x32x256xf32>
    %cst_13 = arith.constant dense<0.000000e+00> : vector<4x32x32xf32>
    %38 = tpu.matmul %37, %15, %cst_13 {dimension_numbers = #tpu.dot_dimension_numbers<[2], [2], [1], [1], [0, 0, 0, 1, 1, 1], [0], [0]>} : vector<4x32x256xf32>, vector<4x32x256xf32>, vector<4x32x32xf32> -> vector<4x32x32xf32>
    %cst_14 = arith.constant dense<0.000000e+00> : vector<4x32x256xf32>
    %39 = tpu.matmul %38, %27, %cst_14 {dimension_numbers = #tpu.dot_dimension_numbers<[1], [1], [2], [2], [0, 0, 0, 2, 1, 2], [0], [0]>} : vector<4x32x32xf32>, vector<4x32x256xf32>, vector<4x32x256xf32> -> vector<4x32x256xf32>
    %40 = vector.shape_cast %39 : vector<4x32x256xf32> to vector<128x256xf32>
    %cst_15 = arith.constant dense<0.000000e+00> : vector<8x256xf32>
    %41 = tpu.matmul %1, %40, %cst_15 {dimension_numbers = #tpu.dot_dimension_numbers<[1], [0], [0], [1], [0, 0, 1, 1], [], []>} : vector<8x128xf32>, vector<128x256xf32>, vector<8x256xf32> -> vector<8x256xf32>
    %42 = vector.broadcast %3 : vector<8x1xf32> to vector<8x256xf32>
    %43 = arith.addf %41, %42 : vector<8x256xf32>
    %44 = vector.shape_cast %43 : vector<8x256xf32> to vector<1x8x256xf32>
    %cst_16 = arith.constant dense<0.000000e+00> : vector<1xf32>
    %45 = vector.multi_reduction <add>, %44, %cst_16 [1, 2] : vector<1x8x256xf32> to vector<1xf32>
    %46 = vector.shape_cast %45 : vector<1xf32> to vector<1x1x1xf32>
    %47 = vector.extract %46[0, 0, 0] : f32 from vector<1x1x1xf32>
    %cst_17 = arith.constant 4.8828125E-4 : f32
    %48 = arith.mulf %47, %cst_17 : f32
    %49 = arith.mulf %43, %43 : vector<8x256xf32>
    %50 = vector.shape_cast %49 : vector<8x256xf32> to vector<1x8x256xf32>
    %cst_18 = arith.constant dense<0.000000e+00> : vector<1xf32>
    %51 = vector.multi_reduction <add>, %50, %cst_18 [1, 2] : vector<1x8x256xf32> to vector<1xf32>
    %52 = vector.shape_cast %51 : vector<1xf32> to vector<1x1x1xf32>
    %53 = vector.extract %52[0, 0, 0] : f32 from vector<1x1x1xf32>
    %cst_19 = arith.constant 4.8828125E-4 : f32
    %54 = arith.mulf %53, %cst_19 : f32
    %55 = arith.mulf %48, %48 : f32
    %56 = arith.subf %54, %55 : f32
    %cst_20 = arith.constant 9.99999974E-6 : f32
    %57 = arith.addf %56, %cst_20 : f32
    %58 = math.rsqrt %57 : f32
    %59 = vector.broadcast %58 : f32 to vector<8x1xf32>
    %60 = arith.mulf %4, %59 : vector<8x1xf32>
    %61 = vector.broadcast %48 : f32 to vector<8x1xf32>
    %62 = arith.mulf %61, %60 : vector<8x1xf32>
    %63 = arith.subf %5, %62 : vector<8x1xf32>
    %64 = vector.broadcast %60 : vector<8x1xf32> to vector<8x256xf32>
    %65 = arith.mulf %43, %64 : vector<8x256xf32>
    %66 = vector.broadcast %63 : vector<8x1xf32> to vector<8x256xf32>
    %67 = arith.addf %65, %66 : vector<8x256xf32>
    %c0_21 = arith.constant 0 : index
    %c0_22 = arith.constant 0 : index
    %c0_23 = arith.constant 0 : index
    %68 = vector.load %arg5[%c0_21, %c0_22, %c0_23] : memref<2x8x256xf32, #tpu.memory_space<vmem>>, vector<1x8x256xf32>
    %69 = vector.shape_cast %68 : vector<1x8x256xf32> to vector<8x256xf32>
    %70 = vector.shape_cast %67 : vector<8x256xf32> to vector<1x8x256xf32>
    tpu.vector_store %arg5[%c0_21, %c0_22, %c0_23], %70 {strides = array<i32>} : memref<2x8x256xf32, #tpu.memory_space<vmem>>, vector<1x8x256xf32>,
    %c1 = arith.constant 1 : index
    %c0_24 = arith.constant 0 : index
    %c0_25 = arith.constant 0 : index
    %71 = vector.load %arg1[%c1, %c0_24, %c0_25] : memref<2x8x256xf32, #tpu.memory_space<vmem>>, vector<1x8x256xf32>
    %72 = vector.shape_cast %71 : vector<1x8x256xf32> to vector<8x256xf32>
    %cst_26 = arith.constant dense<0.000000e+00> : vector<384x256xf32>
    %73 = tpu.matmul %0, %72, %cst_26 {dimension_numbers = #tpu.dot_dimension_numbers<[0], [0], [1], [1], [0, 1, 1, 1], [], []>} : vector<8x384xf32>, vector<8x256xf32>, vector<384x256xf32> -> vector<384x256xf32>
    %74 = vector.shape_cast %73 : vector<384x256xf32> to vector<3x4x32x256xf32>
    %75 = vector.extract_strided_slice %74 {offsets = [0, 0, 0, 0], sizes = [1, 4, 32, 256], strides = [1, 1, 1, 1]} : vector<3x4x32x256xf32> to vector<1x4x32x256xf32>
    %76 = vector.shape_cast %75 : vector<1x4x32x256xf32> to vector<4x32x256xf32>
    %77 = vector.extract_strided_slice %74 {offsets = [1, 0, 0, 0], sizes = [1, 4, 32, 256], strides = [1, 1, 1, 1]} : vector<3x4x32x256xf32> to vector<1x4x32x256xf32>
    %78 = vector.shape_cast %77 : vector<1x4x32x256xf32> to vector<4x32x256xf32>
    %79 = vector.extract_strided_slice %74 {offsets = [2, 0, 0, 0], sizes = [1, 4, 32, 256], strides = [1, 1, 1, 1]} : vector<3x4x32x256xf32> to vector<1x4x32x256xf32>
    %80 = vector.shape_cast %79 : vector<1x4x32x256xf32> to vector<4x32x256xf32>
    %cst_27 = arith.constant dense<0xFF800000> : vector<4x256xf32>
    %81 = vector.multi_reduction <maximumf>, %76, %cst_27 [1] : vector<4x32x256xf32> to vector<4x256xf32>
    %82 = vector.shape_cast %81 : vector<4x256xf32> to vector<4x1x256xf32>
    %83 = vector.broadcast %82 : vector<4x1x256xf32> to vector<4x32x256xf32>
    %84 = arith.subf %76, %83 : vector<4x32x256xf32>
    %85 = math.exp %84 : vector<4x32x256xf32>
    %cst_28 = arith.constant dense<0.000000e+00> : vector<4x256xf32>
    %86 = vector.multi_reduction <add>, %85, %cst_28 [1] : vector<4x32x256xf32> to vector<4x256xf32>
    %87 = vector.shape_cast %86 : vector<4x256xf32> to vector<4x1x256xf32>
    %88 = tpu.reciprocal %87 {approx = true} : vector<4x1x256xf32> -> vector<4x1x256xf32>
    %cst_29 = arith.constant 0.176776692 : f32
    %89 = vector.broadcast %cst_29 : f32 to vector<4x1x256xf32>
    %90 = arith.mulf %89, %88 : vector<4x1x256xf32>
    %91 = vector.broadcast %90 : vector<4x1x256xf32> to vector<4x32x256xf32>
    %92 = arith.mulf %85, %91 : vector<4x32x256xf32>
    %cst_30 = arith.constant dense<0xFF800000> : vector<4x32xf32>
    %93 = vector.multi_reduction <maximumf>, %78, %cst_30 [2] : vector<4x32x256xf32> to vector<4x32xf32>
    %94 = vector.shape_cast %93 : vector<4x32xf32> to vector<4x32x1xf32>
    %95 = vector.broadcast %94 : vector<4x32x1xf32> to vector<4x32x256xf32>
    %96 = arith.subf %78, %95 : vector<4x32x256xf32>
    %97 = math.exp %96 : vector<4x32x256xf32>
    %cst_31 = arith.constant dense<0.000000e+00> : vector<4x32xf32>
    %98 = vector.multi_reduction <add>, %97, %cst_31 [2] : vector<4x32x256xf32> to vector<4x32xf32>
    %99 = vector.shape_cast %98 : vector<4x32xf32> to vector<4x32x1xf32>
    %100 = tpu.reciprocal %99 {approx = true} : vector<4x32x1xf32> -> vector<4x32x1xf32>
    %101 = vector.broadcast %100 : vector<4x32x1xf32> to vector<4x32x256xf32>
    %102 = arith.mulf %97, %101 : vector<4x32x256xf32>
    %cst_32 = arith.constant dense<0.000000e+00> : vector<4x32x32xf32>
    %103 = tpu.matmul %102, %80, %cst_32 {dimension_numbers = #tpu.dot_dimension_numbers<[2], [2], [1], [1], [0, 0, 0, 1, 1, 1], [0], [0]>} : vector<4x32x256xf32>, vector<4x32x256xf32>, vector<4x32x32xf32> -> vector<4x32x32xf32>
    %cst_33 = arith.constant dense<0.000000e+00> : vector<4x32x256xf32>
    %104 = tpu.matmul %103, %92, %cst_33 {dimension_numbers = #tpu.dot_dimension_numbers<[1], [1], [2], [2], [0, 0, 0, 2, 1, 2], [0], [0]>} : vector<4x32x32xf32>, vector<4x32x256xf32>, vector<4x32x256xf32> -> vector<4x32x256xf32>
    %105 = vector.shape_cast %104 : vector<4x32x256xf32> to vector<128x256xf32>
    %cst_34 = arith.constant dense<0.000000e+00> : vector<8x256xf32>
    %106 = tpu.matmul %1, %105, %cst_34 {dimension_numbers = #tpu.dot_dimension_numbers<[1], [0], [0], [1], [0, 0, 1, 1], [], []>} : vector<8x128xf32>, vector<128x256xf32>, vector<8x256xf32> -> vector<8x256xf32>
    %107 = vector.broadcast %3 : vector<8x1xf32> to vector<8x256xf32>
    %108 = arith.addf %106, %107 : vector<8x256xf32>
    %109 = vector.shape_cast %108 : vector<8x256xf32> to vector<1x8x256xf32>
    %cst_35 = arith.constant dense<0.000000e+00> : vector<1xf32>
    %110 = vector.multi_reduction <add>, %109, %cst_35 [1, 2] : vector<1x8x256xf32> to vector<1xf32>
    %111 = vector.shape_cast %110 : vector<1xf32> to vector<1x1x1xf32>
    %112 = vector.extract %111[0, 0, 0] : f32 from vector<1x1x1xf32>
    %cst_36 = arith.constant 4.8828125E-4 : f32
    %113 = arith.mulf %112, %cst_36 : f32
    %114 = arith.mulf %108, %108 : vector<8x256xf32>
    %115 = vector.shape_cast %114 : vector<8x256xf32> to vector<1x8x256xf32>
    %cst_37 = arith.constant dense<0.000000e+00> : vector<1xf32>
    %116 = vector.multi_reduction <add>, %115, %cst_37 [1, 2] : vector<1x8x256xf32> to vector<1xf32>
    %117 = vector.shape_cast %116 : vector<1xf32> to vector<1x1x1xf32>
    %118 = vector.extract %117[0, 0, 0] : f32 from vector<1x1x1xf32>
    %cst_38 = arith.constant 4.8828125E-4 : f32
    %119 = arith.mulf %118, %cst_38 : f32
    %120 = arith.mulf %113, %113 : f32
    %121 = arith.subf %119, %120 : f32
    %cst_39 = arith.constant 9.99999974E-6 : f32
    %122 = arith.addf %121, %cst_39 : f32
    %123 = math.rsqrt %122 : f32
    %124 = vector.broadcast %123 : f32 to vector<8x1xf32>
    %125 = arith.mulf %4, %124 : vector<8x1xf32>
    %126 = vector.broadcast %113 : f32 to vector<8x1xf32>
    %127 = arith.mulf %126, %125 : vector<8x1xf32>
    %128 = arith.subf %5, %127 : vector<8x1xf32>
    %129 = vector.broadcast %125 : vector<8x1xf32> to vector<8x256xf32>
    %130 = arith.mulf %108, %129 : vector<8x256xf32>
    %131 = vector.broadcast %128 : vector<8x1xf32> to vector<8x256xf32>
    %132 = arith.addf %130, %131 : vector<8x256xf32>
    %c1_40 = arith.constant 1 : index
    %c0_41 = arith.constant 0 : index
    %c0_42 = arith.constant 0 : index
    %133 = vector.load %arg5[%c1_40, %c0_41, %c0_42] : memref<2x8x256xf32, #tpu.memory_space<vmem>>, vector<1x8x256xf32>
    %134 = vector.shape_cast %133 : vector<1x8x256xf32> to vector<8x256xf32>
    %135 = vector.shape_cast %132 : vector<8x256xf32> to vector<1x8x256xf32>
    tpu.vector_store %arg5[%c1_40, %c0_41, %c0_42], %135 {strides = array<i32>} : memref<2x8x256xf32, #tpu.memory_space<vmem>>, vector<1x8x256xf32>,
    return
  }
  func.func @transform_0(%arg0: i32) -> (i32, i32, i32) {
    %c0_i32 = arith.constant 0 : i32
    %c0_i32_0 = arith.constant 0 : i32
    %c0_i32_1 = arith.constant 0 : i32
    return %arg0, %c0_i32, %c0_i32_0 : i32, i32, i32
  }
  func.func @transform_1(%arg0: i32) -> (i32, i32) {
    %c0_i32 = arith.constant 0 : i32
    %c0_i32_0 = arith.constant 0 : i32
    %c0_i32_1 = arith.constant 0 : i32
    return %c0_i32, %c0_i32_0 : i32, i32
  }
  func.func @transform_2(%arg0: i32) -> (i32, i32) {
    %c0_i32 = arith.constant 0 : i32
    %c0_i32_0 = arith.constant 0 : i32
    %c0_i32_1 = arith.constant 0 : i32
    return %c0_i32, %c0_i32_0 : i32, i32
  }
  func.func @transform_3(%arg0: i32) -> (i32, i32) {
    %c0_i32 = arith.constant 0 : i32
    %c0_i32_0 = arith.constant 0 : i32
    %c0_i32_1 = arith.constant 0 : i32
    return %c0_i32, %c0_i32_0 : i32, i32
  }
  func.func @transform_4(%arg0: i32) -> (i32, i32, i32) {
    %c0_i32 = arith.constant 0 : i32
    %c0_i32_0 = arith.constant 0 : i32
    %c0_i32_1 = arith.constant 0 : i32
    return %arg0, %c0_i32, %c0_i32_0 : i32, i32, i32
  }
}

</mosaic_0001>

<llo_original>
// kernel: linear_attention.1
$region0: #{linear_attention.1}
  #allocation0 [shape = 'u32[]', space=smem, size = 0x4, offset = 0x4, fixed_abs, tag = 'smem constant byte address 0x4 - core index']
  #allocation1 [shape = 'u32[144,128]{1,0:T(1,128)}', space=vmem, size = 0x12000, scoped, tag = 'internal scratch']
  %s0 = inlined_call_operand.vmem [shape: f32[2,8,256], index: 0, kind: input, shape index: {}]
  %s1 = inlined_call_operand.vmem [shape: f32[8,384], index: 1, kind: input, shape index: {}]
  %s2 = inlined_call_operand.vmem [shape: f32[8,128], index: 2, kind: input, shape index: {}]
  %s3 = inlined_call_operand.vmem [shape: f32[8,3], index: 3, kind: input, shape index: {}]
  %s4 = inlined_call_operand.vmem [shape: f32[2,8,256], index: 4, kind: output, shape index: {}]
  %s5 = sld [smem:[#allocation0]]
  $region26: #{linear_attention.1} parent=0
    _
  %s7 = ssub.s32 1, %s5
  %s8 = scalar_select 0, %s7, %s5
  // Predicated region
  $region2: #{linear_attention.1} parent=0 // pred_check
    _
  $region3: #{linear_attention.1} parent=0 // pred_check_branch
    %10 = sbr.rel (0) target = $region5
  $region4: #{linear_attention.1} parent=0 // pred_region
    _
  $region5: #{linear_attention.1} parent=0 // pred_fallthru
    _
  // Predicated region
  $region6: #{linear_attention.1} parent=0 // pred_check
    _
  $region7: #{linear_attention.1} parent=0 // pred_check_branch
    %12 = sbr.rel (0) target = $region9
  $region8: #{linear_attention.1} parent=0 // pred_region
    _
  $region9: #{linear_attention.1} parent=0 // pred_fallthru
    _
  // Predicated region
  $region10: #{linear_attention.1} parent=0 // pred_check
    _
  $region11: #{linear_attention.1} parent=0 // pred_check_branch
    %14 = sbr.rel (0) target = $region13
  $region12: #{linear_attention.1} parent=0 // pred_region
    _
  $region13: #{linear_attention.1} parent=0 // pred_fallthru
    _
  // Predicated region
  $region14: #{linear_attention.1} parent=0 // pred_check
    _
  $region15: #{linear_attention.1} parent=0 // pred_check_branch
    %16 = sbr.rel (0) target = $region17
  $region16: #{linear_attention.1} parent=0 // pred_region
    _
  $region17: #{linear_attention.1} parent=0 // pred_fallthru
    _
  %v17 = vld [vmem:[%s1] sm:$0xff]
  %v18 = vld [vmem:[%s1 + $0x8] sm:$0xff]
  %v19 = vld [vmem:[%s1 + $0x10] sm:$0xff]
  %v20 = vld [vmem:[%s2] sm:$0xff]
  %v21 = vld [vmem:[%s3] sm:$0xff]
  %v22 = vld [vmem:[%s0] sm:$0xff]
  %v23 = vld [vmem:[%s0 + $0x8] sm:$0xff]
  %24 = vxpose.xlu0.b32.start [1/16] %v17, 128
  %25 = vxpose.xlu0.b32.cont [2/16] 0.0, 128
  %26 = vxpose.xlu0.b32.cont [3/16] 0.0, 128
  %27 = vxpose.xlu0.b32.cont [4/16] 0.0, 128
  %28 = vxpose.xlu0.b32.cont [5/16] 0.0, 128
  %29 = vxpose.xlu0.b32.cont [6/16] 0.0, 128
  %30 = vxpose.xlu0.b32.cont [7/16] 0.0, 128
  %31 = vxpose.xlu0.b32.cont [8/16] 0.0, 128
  %32 = vxpose.xlu0.b32.cont [9/16] 0.0, 128
  %33 = vxpose.xlu0.b32.cont [10/16] 0.0, 128
  %34 = vxpose.xlu0.b32.cont [11/16] 0.0, 128
  %35 = vxpose.xlu0.b32.cont [12/16] 0.0, 128
  %36 = vxpose.xlu0.b32.cont [13/16] 0.0, 128
  %37 = vxpose.xlu0.b32.cont [14/16] 0.0, 128
  %38 = vxpose.xlu0.b32.cont [15/16] 0.0, 128
  %39 = vxpose.xlu0.b32.end [16/16] 0.0, 128
  %v40 = vpop.trf.xlu0
  %v41 = vpop.trf.xlu0
  %v42 = vpop.trf.xlu0
  %v43 = vpop.trf.xlu0
  %v44 = vpop.trf.xlu0
  %v45 = vpop.trf.xlu0
  %v46 = vpop.trf.xlu0
  %v47 = vpop.trf.xlu0
  %v48 = vpop.trf.xlu0
  %v49 = vpop.trf.xlu0
  %v50 = vpop.trf.xlu0
  %v51 = vpop.trf.xlu0
  %v52 = vpop.trf.xlu0
  %v53 = vpop.trf.xlu0
  %v54 = vpop.trf.xlu0
  %v55 = vpop.trf.xlu0
  %56 = vxpose.xlu0.b32.start [1/16] %v18, 128
  %57 = vxpose.xlu0.b32.cont [2/16] 0.0, 128
  %58 = vxpose.xlu0.b32.cont [3/16] 0.0, 128
  %59 = vxpose.xlu0.b32.cont [4/16] 0.0, 128
  %60 = vxpose.xlu0.b32.cont [5/16] 0.0, 128
  %61 = vxpose.xlu0.b32.cont [6/16] 0.0, 128
  %62 = vxpose.xlu0.b32.cont [7/16] 0.0, 128
  %63 = vxpose.xlu0.b32.cont [8/16] 0.0, 128
  %64 = vxpose.xlu0.b32.cont [9/16] 0.0, 128
  %65 = vxpose.xlu0.b32.cont [10/16] 0.0, 128
  %66 = vxpose.xlu0.b32.cont [11/16] 0.0, 128
  %67 = vxpose.xlu0.b32.cont [12/16] 0.0, 128
  %68 = vxpose.xlu0.b32.cont [13/16] 0.0, 128
  %69 = vxpose.xlu0.b32.cont [14/16] 0.0, 128
  %70 = vxpose.xlu0.b32.cont [15/16] 0.0, 128
  %71 = vxpose.xlu0.b32.end [16/16] 0.0, 128
  %v72 = vpop.trf.xlu0
  %v73 = vpop.trf.xlu0
  %v74 = vpop.trf.xlu0
  %v75 = vpop.trf.xlu0
  %v76 = vpop.trf.xlu0
  %v77 = vpop.trf.xlu0
  %v78 = vpop.trf.xlu0
  %v79 = vpop.trf.xlu0
  %v80 = vpop.trf.xlu0
  %v81 = vpop.trf.xlu0
  %v82 = vpop.trf.xlu0
  %v83 = vpop.trf.xlu0
  %v84 = vpop.trf.xlu0
  %v85 = vpop.trf.xlu0
  %v86 = vpop.trf.xlu0
  %v87 = vpop.trf.xlu0
  %88 = vxpose.xlu0.b32.start [1/16] %v19, 128
  %89 = vxpose.xlu0.b32.cont [2/16] 0.0, 128
  %90 = vxpose.xlu0.b32.cont [3/16] 0.0, 128
  %91 = vxpose.xlu0.b32.cont [4/16] 0.0, 128
  %92 = vxpose.xlu0.b32.cont [5/16] 0.0, 128
  %93 = vxpose.xlu0.b32.cont [6/16] 0.0, 128
  %94 = vxpose.xlu0.b32.cont [7/16] 0.0, 128
  %95 = vxpose.xlu0.b32.cont [8/16] 0.0, 128
  %96 = vxpose.xlu0.b32.cont [9/16] 0.0, 128
  %97 = vxpose.xlu0.b32.cont [10/16] 0.0, 128
  %98 = vxpose.xlu0.b32.cont [11/16] 0.0, 128
  %99 = vxpose.xlu0.b32.cont [12/16] 0.0, 128
  %100 = vxpose.xlu0.b32.cont [13/16] 0.0, 128
  %101 = vxpose.xlu0.b32.cont [14/16] 0.0, 128
  %102 = vxpose.xlu0.b32.cont [15/16] 0.0, 128
  %103 = vxpose.xlu0.b32.end [16/16] 0.0, 128
  %v104 = vpop.trf.xlu0
  %v105 = vpop.trf.xlu0
  %v106 = vpop.trf.xlu0
  %v107 = vpop.trf.xlu0
  %v108 = vpop.trf.xlu0
  %v109 = vpop.trf.xlu0
  %v110 = vpop.trf.xlu0
  %v111 = vpop.trf.xlu0
  %v112 = vpop.trf.xlu0
  %v113 = vpop.trf.xlu0
  %v114 = vpop.trf.xlu0
  %v115 = vpop.trf.xlu0
  %v116 = vpop.trf.xlu0
  %v117 = vpop.trf.xlu0
  %v118 = vpop.trf.xlu0
  %v119 = vpop.trf.xlu0
  %vm120 = vcmask 64512
  %v122 = vsel %vm120, %v40, 0
  %v125 = vsel %vm120, %v41, 0
  %v128 = vsel %vm120, %v42, 0
  %v131 = vsel %vm120, %v43, 0
  %v134 = vsel %vm120, %v44, 0
  %v137 = vsel %vm120, %v45, 0
  %v140 = vsel %vm120, %v46, 0
  %v143 = vsel %vm120, %v47, 0
  %v146 = vsel %vm120, %v48, 0
  %v149 = vsel %vm120, %v49, 0
  %v152 = vsel %vm120, %v50, 0
  %v155 = vsel %vm120, %v51, 0
  %v158 = vsel %vm120, %v52, 0
  %v161 = vsel %vm120, %v53, 0
  %v164 = vsel %vm120, %v54, 0
  %v167 = vsel %vm120, %v55, 0
  %v170 = vsel %vm120, %v72, 0
  %v173 = vsel %vm120, %v73, 0
  %v176 = vsel %vm120, %v74, 0
  %v179 = vsel %vm120, %v75, 0
  %v182 = vsel %vm120, %v76, 0
  %v185 = vsel %vm120, %v77, 0
  %v188 = vsel %vm120, %v78, 0
  %v191 = vsel %vm120, %v79, 0
  %v194 = vsel %vm120, %v80, 0
  %v197 = vsel %vm120, %v81, 0
  %v200 = vsel %vm120, %v82, 0
  %v203 = vsel %vm120, %v83, 0
  %v206 = vsel %vm120, %v84, 0
  %v209 = vsel %vm120, %v85, 0
  %v212 = vsel %vm120, %v86, 0
  %v215 = vsel %vm120, %v87, 0
  %v218 = vsel %vm120, %v104, 0
  %v221 = vsel %vm120, %v105, 0
  %v224 = vsel %vm120, %v106, 0
  %v227 = vsel %vm120, %v107, 0
  %v230 = vsel %vm120, %v108, 0
  %v233 = vsel %vm120, %v109, 0
  %v236 = vsel %vm120, %v110, 0
  %v239 = vsel %vm120, %v111, 0
  %v242 = vsel %vm120, %v112, 0
  %v245 = vsel %vm120, %v113, 0
  %v248 = vsel %vm120, %v114, 0
  %v251 = vsel %vm120, %v115, 0
  %v254 = vsel %vm120, %v116, 0
  %v257 = vsel %vm120, %v117, 0
  %v260 = vsel %vm120, %v118, 0
  %v263 = vsel %vm120, %v119, 0
  %265 = vmatprep.subr.mxu0 0.0
  %266 = vmatpush1.msra.mxu0 0.0
  %267 = vmatprep.subr.mxu0 0.0
  %268 = vmatpush1.msra.mxu0 0.0
  %269 = vmatprep.subr.mxu0 0.0
  %270 = vmatpush1.msra.mxu0 0.0
  %271 = vmatprep.subr.mxu0 0.0
  %272 = vmatpush1.msra.mxu0 0.0
  %273 = vmatprep.subr.mxu0 0.0
  %274 = vmatpush1.msra.mxu0 0.0
  %275 = vmatprep.subr.mxu0 0.0
  %276 = vmatpush1.msra.mxu0 0.0
  %277 = vmatprep.subr.mxu0 0.0
  %278 = vmatpush1.msra.mxu0 0.0
  %279 = vmatprep.subr.mxu0 0.0
  %280 = vmatpush1.msra.mxu0 0.0
  %281 = vmatprep.subr.mxu0 0.0
  %282 = vmatpush1.msra.mxu0 0.0
  %283 = vmatprep.subr.mxu0 0.0
  %284 = vmatpush1.msra.mxu0 0.0
  %285 = vmatprep.subr.mxu0 0.0
  %286 = vmatpush1.msra.mxu0 0.0
  %287 = vmatprep.subr.mxu0 0.0
  %288 = vmatpush1.msra.mxu0 0.0
  %289 = vmatprep.subr.mxu0 0.0
  %290 = vmatpush1.msra.mxu0 0.0
  %291 = vmatprep.subr.mxu0 0.0
  %292 = vmatpush1.msra.mxu0 0.0
  %293 = vmatprep.subr.mxu0 0.0
  %294 = vmatpush1.msra.mxu0 0.0
  %295 = vmatprep.subr.mxu0 %v23
  %296 = vmatpush1.msra.mxu0 %v22
  %297 = vmatprep.subr.mxu0 0.0
  %298 = vmatpush2.msra.mxu0 0.0
  %299 = vmatprep.subr.mxu0 0.0
  %300 = vmatpush2.msra.mxu0 0.0
  %301 = vmatprep.subr.mxu0 0.0
  %302 = vmatpush2.msra.mxu0 0.0
  %303 = vmatprep.subr.mxu0 0.0
  %304 = vmatpush2.msra.mxu0 0.0
  %305 = vmatprep.subr.mxu0 0.0
  %306 = vmatpush2.msra.mxu0 0.0
  %307 = vmatprep.subr.mxu0 0.0
  %308 = vmatpush2.msra.mxu0 0.0
  %309 = vmatprep.subr.mxu0 0.0
  %310 = vmatpush2.msra.mxu0 0.0
  %311 = vmatprep.subr.mxu0 0.0
  %312 = vmatpush2.msra.mxu0 0.0
  %313 = vmatprep.subr.mxu0 0.0
  %314 = vmatpush2.msra.mxu0 0.0
  %315 = vmatprep.subr.mxu0 0.0
  %316 = vmatpush2.msra.mxu0 0.0
  %317 = vmatprep.subr.mxu0 0.0
  %318 = vmatpush2.msra.mxu0 0.0
  %319 = vmatprep.subr.mxu0 0.0
  %320 = vmatpush2.msra.mxu0 0.0
  %321 = vmatprep.subr.mxu0 0.0
  %322 = vmatpush2.msra.mxu0 0.0
  %323 = vmatprep.subr.mxu0 0.0
  %324 = vmatpush2.msra.mxu0 0.0
  %325 = vmatprep.subr.mxu0 0.0
  %326 = vmatpush2.msra.mxu0 0.0
  %327 = vmatprep.subr.mxu0 0.0
  %328 = vmatpush2.msra.mxu0 0.0
  %329 = vmatprep.mubr.f32.mxu0 0.0
  %330 = vmatmul.mubr.f32.gmra.mxu0 %v122
  %v331 = vpop.f32.mrf.mxu0
  %v332 = vadd.f32 0.0, %v331
  %v333 = vpop.f32.mrf.mxu0
  %v334 = vadd.f32 0.0, %v333
  %335 = vmatprep.mubr.f32.mxu0 0.0
  %336 = vmatmul.mubr.f32.gmra.mxu0 %v125
  %v337 = vpop.f32.mrf.mxu0
  %v338 = vadd.f32 0.0, %v337
  %v339 = vpop.f32.mrf.mxu0
  %v340 = vadd.f32 0.0, %v339
  %341 = vmatprep.mubr.f32.mxu0 0.0
  %342 = vmatmul.mubr.f32.gmra.mxu0 %v128
  %v343 = vpop.f32.mrf.mxu0
  %v344 = vadd.f32 0.0, %v343
  %v345 = vpop.f32.mrf.mxu0
  %v346 = vadd.f32 0.0, %v345
  %347 = vmatprep.mubr.f32.mxu0 0.0
  %348 = vmatmul.mubr.f32.gmra.mxu0 %v131
  %v349 = vpop.f32.mrf.mxu0
  %v350 = vadd.f32 0.0, %v349
  %v351 = vpop.f32.mrf.mxu0
  %v352 = vadd.f32 0.0, %v351
  %353 = vmatprep.mubr.f32.mxu0 0.0
  %354 = vmatmul.mubr.f32.gmra.mxu0 %v134
  %v355 = vpop.f32.mrf.mxu0
  %v356 = vadd.f32 0.0, %v355
  %v357 = vpop.f32.mrf.mxu0
  %v358 = vadd.f32 0.0, %v357
  %359 = vmatprep.mubr.f32.mxu0 0.0
  %360 = vmatmul.mubr.f32.gmra.mxu0 %v137
  %v361 = vpop.f32.mrf.mxu0
  %v362 = vadd.f32 0.0, %v361
  %v363 = vpop.f32.mrf.mxu0
  %v364 = vadd.f32 0.0, %v363
  %365 = vmatprep.mubr.f32.mxu0 0.0
  %366 = vmatmul.mubr.f32.gmra.mxu0 %v140
  %v367 = vpop.f32.mrf.mxu0
  %v368 = vadd.f32 0.0, %v367
  %v369 = vpop.f32.mrf.mxu0
  %v370 = vadd.f32 0.0, %v369
  %371 = vmatprep.mubr.f32.mxu0 0.0
  %372 = vmatmul.mubr.f32.gmra.mxu0 %v143
  %v373 = vpop.f32.mrf.mxu0
  %v374 = vadd.f32 0.0, %v373
  %v375 = vpop.f32.mrf.mxu0
  %v376 = vadd.f32 0.0, %v375
  %377 = vmatprep.mubr.f32.mxu0 0.0
  %378 = vmatmul.mubr.f32.gmra.mxu0 %v146
  %v379 = vpop.f32.mrf.mxu0
  %v380 = vadd.f32 0.0, %v379
  %v381 = vpop.f32.mrf.mxu0
  %v382 = vadd.f32 0.0, %v381
  %383 = vmatprep.mubr.f32.mxu0 0.0
  %384 = vmatmul.mubr.f32.gmra.mxu0 %v149
  %v385 = vpop.f32.mrf.mxu0
  %v386 = vadd.f32 0.0, %v385
  %v387 = vpop.f32.mrf.mxu0
  %v388 = vadd.f32 0.0, %v387
  %389 = vmatprep.mubr.f32.mxu0 0.0
  %390 = vmatmul.mubr.f32.gmra.mxu0 %v152
  %v391 = vpop.f32.mrf.mxu0
  %v392 = vadd.f32 0.0, %v391
  %v393 = vpop.f32.mrf.mxu0
  %v394 = vadd.f32 0.0, %v393
  %395 = vmatprep.mubr.f32.mxu0 0.0
  %396 = vmatmul.mubr.f32.gmra.mxu0 %v155
  %v397 = vpop.f32.mrf.mxu0
  %v398 = vadd.f32 0.0, %v397
  %v399 = vpop.f32.mrf.mxu0
  %v400 = vadd.f32 0.0, %v399
  %401 = vmatprep.mubr.f32.mxu0 0.0
  %402 = vmatmul.mubr.f32.gmra.mxu0 %v158
  %v403 = vpop.f32.mrf.mxu0
  %v404 = vadd.f32 0.0, %v403
  %v405 = vpop.f32.mrf.mxu0
  %v406 = vadd.f32 0.0, %v405
  %407 = vmatprep.mubr.f32.mxu0 0.0
  %408 = vmatmul.mubr.f32.gmra.mxu0 %v161
  %v409 = vpop.f32.mrf.mxu0
  %v410 = vadd.f32 0.0, %v409
  %v411 = vpop.f32.mrf.mxu0
  %v412 = vadd.f32 0.0, %v411
  %413 = vmatprep.mubr.f32.mxu0 0.0
  %414 = vmatmul.mubr.f32.gmra.mxu0 %v164
  %v415 = vpop.f32.mrf.mxu0
  %v416 = vadd.f32 0.0, %v415
  %v417 = vpop.f32.mrf.mxu0
  %v418 = vadd.f32 0.0, %v417
  %419 = vmatprep.mubr.f32.mxu0 0.0
  %420 = vmatmul.mubr.f32.gmra.mxu0 %v167
  %v421 = vpop.f32.mrf.mxu0
  %v422 = vadd.f32 0.0, %v421
  %v423 = vpop.f32.mrf.mxu0
  %v424 = vadd.f32 0.0, %v423
  %425 = vmatprep.mubr.f32.mxu0 0.0
  %426 = vmatmul.mubr.f32.gmra.mxu0 %v170
  %v427 = vpop.f32.mrf.mxu0
  %v428 = vadd.f32 0.0, %v427
  %v429 = vpop.f32.mrf.mxu0
  %v430 = vadd.f32 0.0, %v429
  %431 = vmatprep.mubr.f32.mxu0 0.0
  %432 = vmatmul.mubr.f32.gmra.mxu0 %v173
  %v433 = vpop.f32.mrf.mxu0
  %v434 = vadd.f32 0.0, %v433
  %v435 = vpop.f32.mrf.mxu0
  %v436 = vadd.f32 0.0, %v435
  %437 = vmatprep.mubr.f32.mxu0 0.0
  %438 = vmatmul.mubr.f32.gmra.mxu0 %v176
  %v439 = vpop.f32.mrf.mxu0
  %v440 = vadd.f32 0.0, %v439
  %v441 = vpop.f32.mrf.mxu0
  %v442 = vadd.f32 0.0, %v441
  %443 = vmatprep.mubr.f32.mxu0 0.0
  %444 = vmatmul.mubr.f32.gmra.mxu0 %v179
  %v445 = vpop.f32.mrf.mxu0
  %v446 = vadd.f32 0.0, %v445
  %v447 = vpop.f32.mrf.mxu0
  %v448 = vadd.f32 0.0, %v447
  %449 = vmatprep.mubr.f32.mxu0 0.0
  %450 = vmatmul.mubr.f32.gmra.mxu0 %v182
  %v451 = vpop.f32.mrf.mxu0
  %v452 = vadd.f32 0.0, %v451
  %v453 = vpop.f32.mrf.mxu0
  %v454 = vadd.f32 0.0, %v453
  %455 = vmatprep.mubr.f32.mxu0 0.0
  %456 = vmatmul.mubr.f32.gmra.mxu0 %v185
  %v457 = vpop.f32.mrf.mxu0
  %v458 = vadd.f32 0.0, %v457
  %v459 = vpop.f32.mrf.mxu0
  %v460 = vadd.f32 0.0, %v459
  %461 = vmatprep.mubr.f32.mxu0 0.0
  %462 = vmatmul.mubr.f32.gmra.mxu0 %v188
  %v463 = vpop.f32.mrf.mxu0
  %v464 = vadd.f32 0.0, %v463
  %v465 = vpop.f32.mrf.mxu0
  %v466 = vadd.f32 0.0, %v465
  %467 = vmatprep.mubr.f32.mxu0 0.0
  %468 = vmatmul.mubr.f32.gmra.mxu0 %v191
  %v469 = vpop.f32.mrf.mxu0
  %v470 = vadd.f32 0.0, %v469
  %v471 = vpop.f32.mrf.mxu0
  %v472 = vadd.f32 0.0, %v471
  %473 = vmatprep.mubr.f32.mxu0 0.0
  %474 = vmatmul.mubr.f32.gmra.mxu0 %v194
  %v475 = vpop.f32.mrf.mxu0
  %v476 = vadd.f32 0.0, %v475
  %v477 = vpop.f32.mrf.mxu0
  %v478 = vadd.f32 0.0, %v477
  %479 = vmatprep.mubr.f32.mxu0 0.0
  %480 = vmatmul.mubr.f32.gmra.mxu0 %v197
  %v481 = vpop.f32.mrf.mxu0
  %v482 = vadd.f32 0.0, %v481
  %v483 = vpop.f32.mrf.mxu0
  %v484 = vadd.f32 0.0, %v483
  %485 = vmatprep.mubr.f32.mxu0 0.0
  %486 = vmatmul.mubr.f32.gmra.mxu0 %v200
  %v487 = vpop.f32.mrf.mxu0
  %v488 = vadd.f32 0.0, %v487
  %v489 = vpop.f32.mrf.mxu0
  %v490 = vadd.f32 0.0, %v489
  %491 = vmatprep.mubr.f32.mxu0 0.0
  %492 = vmatmul.mubr.f32.gmra.mxu0 %v203
  %v493 = vpop.f32.mrf.mxu0
  %v494 = vadd.f32 0.0, %v493
  %v495 = vpop.f32.mrf.mxu0
  %v496 = vadd.f32 0.0, %v495
  %497 = vmatprep.mubr.f32.mxu0 0.0
  %498 = vmatmul.mubr.f32.gmra.mxu0 %v206
  %v499 = vpop.f32.mrf.mxu0
  %v500 = vadd.f32 0.0, %v499
  %v501 = vpop.f32.mrf.mxu0
  %v502 = vadd.f32 0.0, %v501
  %503 = vmatprep.mubr.f32.mxu0 0.0
  %504 = vmatmul.mubr.f32.gmra.mxu0 %v209
  %v505 = vpop.f32.mrf.mxu0
  %v506 = vadd.f32 0.0, %v505
  %v507 = vpop.f32.mrf.mxu0
  %v508 = vadd.f32 0.0, %v507
  %509 = vmatprep.mubr.f32.mxu0 0.0
  %510 = vmatmul.mubr.f32.gmra.mxu0 %v212
  %v511 = vpop.f32.mrf.mxu0
  %v512 = vadd.f32 0.0, %v511
  %v513 = vpop.f32.mrf.mxu0
  %v514 = vadd.f32 0.0, %v513
  %515 = vmatprep.mubr.f32.mxu0 0.0
  %516 = vmatmul.mubr.f32.gmra.mxu0 %v215
  %v517 = vpop.f32.mrf.mxu0
  %v518 = vadd.f32 0.0, %v517
  %v519 = vpop.f32.mrf.mxu0
  %v520 = vadd.f32 0.0, %v519
  %521 = vmatprep.mubr.f32.mxu0 0.0
  %522 = vmatmul.mubr.f32.gmra.mxu0 %v218
  %v523 = vpop.f32.mrf.mxu0
  %v524 = vadd.f32 0.0, %v523
  %v525 = vpop.f32.mrf.mxu0
  %v526 = vadd.f32 0.0, %v525
  %527 = vmatprep.mubr.f32.mxu0 0.0
  %528 = vmatmul.mubr.f32.gmra.mxu0 %v221
  %v529 = vpop.f32.mrf.mxu0
  %v530 = vadd.f32 0.0, %v529
  %v531 = vpop.f32.mrf.mxu0
  %v532 = vadd.f32 0.0, %v531
  %533 = vmatprep.mubr.f32.mxu0 0.0
  %534 = vmatmul.mubr.f32.gmra.mxu0 %v224
  %v535 = vpop.f32.mrf.mxu0
  %v536 = vadd.f32 0.0, %v535
  %v537 = vpop.f32.mrf.mxu0
  %v538 = vadd.f32 0.0, %v537
  %539 = vmatprep.mubr.f32.mxu0 0.0
  %540 = vmatmul.mubr.f32.gmra.mxu0 %v227
  %v541 = vpop.f32.mrf.mxu0
  %v542 = vadd.f32 0.0, %v541
  %v543 = vpop.f32.mrf.mxu0
  %v544 = vadd.f32 0.0, %v543
  %545 = vmatprep.mubr.f32.mxu0 0.0
  %546 = vmatmul.mubr.f32.gmra.mxu0 %v230
  %v547 = vpop.f32.mrf.mxu0
  %v548 = vadd.f32 0.0, %v547
  %v549 = vpop.f32.mrf.mxu0
  %v550 = vadd.f32 0.0, %v549
  %551 = vmatprep.mubr.f32.mxu0 0.0
  %552 = vmatmul.mubr.f32.gmra.mxu0 %v233
  %v553 = vpop.f32.mrf.mxu0
  %v554 = vadd.f32 0.0, %v553
  %v555 = vpop.f32.mrf.mxu0
  %v556 = vadd.f32 0.0, %v555
  %557 = vmatprep.mubr.f32.mxu0 0.0
  %558 = vmatmul.mubr.f32.gmra.mxu0 %v236
  %v559 = vpop.f32.mrf.mxu0
  %v560 = vadd.f32 0.0, %v559
  %v561 = vpop.f32.mrf.mxu0
  %v562 = vadd.f32 0.0, %v561
  %563 = vmatprep.mubr.f32.mxu0 0.0
  %564 = vmatmul.mubr.f32.gmra.mxu0 %v239
  %v565 = vpop.f32.mrf.mxu0
  %v566 = vadd.f32 0.0, %v565
  %v567 = vpop.f32.mrf.mxu0
  %v568 = vadd.f32 0.0, %v567
  %569 = vmatprep.mubr.f32.mxu0 0.0
  %570 = vmatmul.mubr.f32.gmra.mxu0 %v242
  %v571 = vpop.f32.mrf.mxu0
  %v572 = vadd.f32 0.0, %v571
  %v573 = vpop.f32.mrf.mxu0
  %v574 = vadd.f32 0.0, %v573
  %575 = vmatprep.mubr.f32.mxu0 0.0
  %576 = vmatmul.mubr.f32.gmra.mxu0 %v245
  %v577 = vpop.f32.mrf.mxu0
  %v578 = vadd.f32 0.0, %v577
  %v579 = vpop.f32.mrf.mxu0
  %v580 = vadd.f32 0.0, %v579
  %581 = vmatprep.mubr.f32.mxu0 0.0
  %582 = vmatmul.mubr.f32.gmra.mxu0 %v248
  %v583 = vpop.f32.mrf.mxu0
  %v584 = vadd.f32 0.0, %v583
  %v585 = vpop.f32.mrf.mxu0
  %v586 = vadd.f32 0.0, %v585
  %587 = vmatprep.mubr.f32.mxu0 0.0
  %588 = vmatmul.mubr.f32.gmra.mxu0 %v251
  %v589 = vpop.f32.mrf.mxu0
  %v590 = vadd.f32 0.0, %v589
  %v591 = vpop.f32.mrf.mxu0
  %v592 = vadd.f32 0.0, %v591
  %593 = vmatprep.mubr.f32.mxu0 0.0
  %594 = vmatmul.mubr.f32.gmra.mxu0 %v254
  %v595 = vpop.f32.mrf.mxu0
  %v596 = vadd.f32 0.0, %v595
  %v597 = vpop.f32.mrf.mxu0
  %v598 = vadd.f32 0.0, %v597
  %599 = vmatprep.mubr.f32.mxu0 0.0
  %600 = vmatmul.mubr.f32.gmra.mxu0 %v257
  %v601 = vpop.f32.mrf.mxu0
  %v602 = vadd.f32 0.0, %v601
  %v603 = vpop.f32.mrf.mxu0
  %v604 = vadd.f32 0.0, %v603
  %605 = vmatprep.mubr.f32.mxu0 0.0
  %606 = vmatmul.mubr.f32.gmra.mxu0 %v260
  %v607 = vpop.f32.mrf.mxu0
  %v608 = vadd.f32 0.0, %v607
  %v609 = vpop.f32.mrf.mxu0
  %v610 = vadd.f32 0.0, %v609
  %611 = vmatprep.mubr.f32.mxu0 0.0
  %612 = vmatmul.mubr.f32.gmra.mxu0 %v263
  %v613 = vpop.f32.mrf.mxu0
  %v614 = vadd.f32 0.0, %v613
  %v615 = vpop.f32.mrf.mxu0
  %v616 = vadd.f32 0.0, %v615
  %617 = vdwg.mxu0
  %v618 = vmax.f32 %v332, %v338
  %v619 = vmax.f32 %v618, %v344
  %v620 = vmax.f32 %v619, %v350
  %v621 = vrot.slane %v620, 4
  %v622 = vmax.f32 %v620, %v621
  %v623 = vrot.slane %v622, 2
  %v624 = vmax.f32 %v622, %v623
  %v625 = vrot.slane %v624, 1
  %v626 = vmax.f32 %v624, %v625
  %v627 = vmax.f32 %v334, %v340
  %v628 = vmax.f32 %v627, %v346
  %v629 = vmax.f32 %v628, %v352
  %v630 = vrot.slane %v629, 4
  %v631 = vmax.f32 %v629, %v630
  %v632 = vrot.slane %v631, 2
  %v633 = vmax.f32 %v631, %v632
  %v634 = vrot.slane %v633, 1
  %v635 = vmax.f32 %v633, %v634
  %v636 = vmax.f32 %v356, %v362
  %v637 = vmax.f32 %v636, %v368
  %v638 = vmax.f32 %v637, %v374
  %v639 = vrot.slane %v638, 4
  %v640 = vmax.f32 %v638, %v639
  %v641 = vrot.slane %v640, 2
  %v642 = vmax.f32 %v640, %v641
  %v643 = vrot.slane %v642, 1
  %v644 = vmax.f32 %v642, %v643
  %v645 = vmax.f32 %v358, %v364
  %v646 = vmax.f32 %v645, %v370
  %v647 = vmax.f32 %v646, %v376
  %v648 = vrot.slane %v647, 4
  %v649 = vmax.f32 %v647, %v648
  %v650 = vrot.slane %v649, 2
  %v651 = vmax.f32 %v649, %v650
  %v652 = vrot.slane %v651, 1
  %v653 = vmax.f32 %v651, %v652
  %v654 = vmax.f32 %v380, %v386
  %v655 = vmax.f32 %v654, %v392
  %v656 = vmax.f32 %v655, %v398
  %v657 = vrot.slane %v656, 4
  %v658 = vmax.f32 %v656, %v657
  %v659 = vrot.slane %v658, 2
  %v660 = vmax.f32 %v658, %v659
  %v661 = vrot.slane %v660, 1
  %v662 = vmax.f32 %v660, %v661
  %v663 = vmax.f32 %v382, %v388
  %v664 = vmax.f32 %v663, %v394
  %v665 = vmax.f32 %v664, %v400
  %v666 = vrot.slane %v665, 4
  %v667 = vmax.f32 %v665, %v666
  %v668 = vrot.slane %v667, 2
  %v669 = vmax.f32 %v667, %v668
  %v670 = vrot.slane %v669, 1
  %v671 = vmax.f32 %v669, %v670
  %v672 = vmax.f32 %v404, %v410
  %v673 = vmax.f32 %v672, %v416
  %v674 = vmax.f32 %v673, %v422
  %v675 = vrot.slane %v674, 4
  %v676 = vmax.f32 %v674, %v675
  %v677 = vrot.slane %v676, 2
  %v678 = vmax.f32 %v676, %v677
  %v679 = vrot.slane %v678, 1
  %v680 = vmax.f32 %v678, %v679
  %v681 = vmax.f32 %v406, %v412
  %v682 = vmax.f32 %v681, %v418
  %v683 = vmax.f32 %v682, %v424
  %v684 = vrot.slane %v683, 4
  %v685 = vmax.f32 %v683, %v684
  %v686 = vrot.slane %v685, 2
  %v687 = vmax.f32 %v685, %v686
  %v688 = vrot.slane %v687, 1
  %v689 = vmax.f32 %v687, %v688
  %v690 = vsub.f32 %v332, %v626
  %v691 = vsub.f32 %v334, %v635
  %v692 = vsub.f32 %v338, %v626
  %v693 = vsub.f32 %v340, %v635
  %v694 = vsub.f32 %v344, %v626
  %v695 = vsub.f32 %v346, %v635
  %v696 = vsub.f32 %v350, %v626
  %v697 = vsub.f32 %v352, %v635
  %v698 = vsub.f32 %v356, %v644
  %v699 = vsub.f32 %v358, %v653
  %v700 = vsub.f32 %v362, %v644
  %v701 = vsub.f32 %v364, %v653
  %v702 = vsub.f32 %v368, %v644
  %v703 = vsub.f32 %v370, %v653
  %v704 = vsub.f32 %v374, %v644
  %v705 = vsub.f32 %v376, %v653
  %v706 = vsub.f32 %v380, %v662
  %v707 = vsub.f32 %v382, %v671
  %v708 = vsub.f32 %v386, %v662
  %v709 = vsub.f32 %v388, %v671
  %v710 = vsub.f32 %v392, %v662
  %v711 = vsub.f32 %v394, %v671
  %v712 = vsub.f32 %v398, %v662
  %v713 = vsub.f32 %v400, %v671
  %v714 = vsub.f32 %v404, %v680
  %v715 = vsub.f32 %v406, %v689
  %v716 = vsub.f32 %v410, %v680
  %v717 = vsub.f32 %v412, %v689
  %v718 = vsub.f32 %v416, %v680
  %v719 = vsub.f32 %v418, %v689
  %v720 = vsub.f32 %v422, %v680
  %v721 = vsub.f32 %v424, %v689
  %v722 = vmul.f32 %v690, 1.442695
  %v723 = vpow.pop %v722
  %v724 = vmul.f32 %v691, 1.442695
  %v725 = vpow.pop %v724
  %v726 = vmul.f32 %v692, 1.442695
  %v727 = vpow.pop %v726
  %v728 = vmul.f32 %v693, 1.442695
  %v729 = vpow.pop %v728
  %v730 = vmul.f32 %v694, 1.442695
  %v731 = vpow.pop %v730
  %v732 = vmul.f32 %v695, 1.442695
  %v733 = vpow.pop %v732
  %v734 = vmul.f32 %v696, 1.442695
  %v735 = vpow.pop %v734
  %v736 = vmul.f32 %v697, 1.442695
  %v737 = vpow.pop %v736
  %v738 = vmul.f32 %v698, 1.442695
  %v739 = vpow.pop %v738
  %v740 = vmul.f32 %v699, 1.442695
  %v741 = vpow.pop %v740
  %v742 = vmul.f32 %v700, 1.442695
  %v743 = vpow.pop %v742
  %v744 = vmul.f32 %v701, 1.442695
  %v745 = vpow.pop %v744
  %v746 = vmul.f32 %v702, 1.442695
  %v747 = vpow.pop %v746
  %v748 = vmul.f32 %v703, 1.442695
  %v749 = vpow.pop %v748
  %v750 = vmul.f32 %v704, 1.442695
  %v751 = vpow.pop %v750
  %v752 = vmul.f32 %v705, 1.442695
  %v753 = vpow.pop %v752
  %v754 = vmul.f32 %v706, 1.442695
  %v755 = vpow.pop %v754
  %v756 = vmul.f32 %v707, 1.442695
  %v757 = vpow.pop %v756
  %v758 = vmul.f32 %v708, 1.442695
  %v759 = vpow.pop %v758
  %v760 = vmul.f32 %v709, 1.442695
  %v761 = vpow.pop %v760
  %v762 = vmul.f32 %v710, 1.442695
  %v763 = vpow.pop %v762
  %v764 = vmul.f32 %v711, 1.442695
  %v765 = vpow.pop %v764
  %v766 = vmul.f32 %v712, 1.442695
  %v767 = vpow.pop %v766
  %v768 = vmul.f32 %v713, 1.442695
  %v769 = vpow.pop %v768
  %v770 = vmul.f32 %v714, 1.442695
  %v771 = vpow.pop %v770
  %v772 = vmul.f32 %v715, 1.442695
  %v773 = vpow.pop %v772
  %v774 = vmul.f32 %v716, 1.442695
  %v775 = vpow.pop %v774
  %v776 = vmul.f32 %v717, 1.442695
  %v777 = vpow.pop %v776
  %v778 = vmul.f32 %v718, 1.442695
  %v779 = vpow.pop %v778
  %v780 = vmul.f32 %v719, 1.442695
  %v781 = vpow.pop %v780
  %v782 = vmul.f32 %v720, 1.442695
  %v783 = vpow.pop %v782
  %v784 = vmul.f32 %v721, 1.442695
  %v785 = vpow.pop %v784
  %v786 = vadd.f32 %v723, %v727
  %v787 = vadd.f32 %v786, %v731
  %v788 = vadd.f32 %v787, %v735
  %v789 = vrot.slane %v788, 4
  %v790 = vadd.f32 %v788, %v789
  %v791 = vrot.slane %v790, 2
  %v792 = vadd.f32 %v790, %v791
  %v793 = vrot.slane %v792, 1
  %v794 = vadd.f32 %v792, %v793
  %v795 = vadd.f32 %v725, %v729
  %v796 = vadd.f32 %v795, %v733
  %v797 = vadd.f32 %v796, %v737
  %v798 = vrot.slane %v797, 4
  %v799 = vadd.f32 %v797, %v798
  %v800 = vrot.slane %v799, 2
  %v801 = vadd.f32 %v799, %v800
  %v802 = vrot.slane %v801, 1
  %v803 = vadd.f32 %v801, %v802
  %v804 = vadd.f32 %v739, %v743
  %v805 = vadd.f32 %v804, %v747
  %v806 = vadd.f32 %v805, %v751
  %v807 = vrot.slane %v806, 4
  %v808 = vadd.f32 %v806, %v807
  %v809 = vrot.slane %v808, 2
  %v810 = vadd.f32 %v808, %v809
  %v811 = vrot.slane %v810, 1
  %v812 = vadd.f32 %v810, %v811
  %v813 = vadd.f32 %v741, %v745
  %v814 = vadd.f32 %v813, %v749
  %v815 = vadd.f32 %v814, %v753
  %v816 = vrot.slane %v815, 4
  %v817 = vadd.f32 %v815, %v816
  %v818 = vrot.slane %v817, 2
  %v819 = vadd.f32 %v817, %v818
  %v820 = vrot.slane %v819, 1
  %v821 = vadd.f32 %v819, %v820
  %v822 = vadd.f32 %v755, %v759
  %v823 = vadd.f32 %v822, %v763
  %v824 = vadd.f32 %v823, %v767
  %v825 = vrot.slane %v824, 4
  %v826 = vadd.f32 %v824, %v825
  %v827 = vrot.slane %v826, 2
  %v828 = vadd.f32 %v826, %v827
  %v829 = vrot.slane %v828, 1
  %v830 = vadd.f32 %v828, %v829
  %v831 = vadd.f32 %v757, %v761
  %v832 = vadd.f32 %v831, %v765
  %v833 = vadd.f32 %v832, %v769
  %v834 = vrot.slane %v833, 4
  %v835 = vadd.f32 %v833, %v834
  %v836 = vrot.slane %v835, 2
  %v837 = vadd.f32 %v835, %v836
  %v838 = vrot.slane %v837, 1
  %v839 = vadd.f32 %v837, %v838
  %v840 = vadd.f32 %v771, %v775
  %v841 = vadd.f32 %v840, %v779
  %v842 = vadd.f32 %v841, %v783
  %v843 = vrot.slane %v842, 4
  %v844 = vadd.f32 %v842, %v843
  %v845 = vrot.slane %v844, 2
  %v846 = vadd.f32 %v844, %v845
  %v847 = vrot.slane %v846, 1
  %v848 = vadd.f32 %v846, %v847
  %v849 = vadd.f32 %v773, %v777
  %v850 = vadd.f32 %v849, %v781
  %v851 = vadd.f32 %v850, %v785
  %v852 = vrot.slane %v851, 4
  %v853 = vadd.f32 %v851, %v852
  %v854 = vrot.slane %v853, 2
  %v855 = vadd.f32 %v853, %v854
  %v856 = vrot.slane %v855, 1
  %v857 = vadd.f32 %v855, %v856
  %v858 = vrcp.pop %v794
  %v859 = vrcp.pop %v803
  %v860 = vrcp.pop %v812
  %v861 = vrcp.pop %v821
  %v862 = vrcp.pop %v830
  %v863 = vrcp.pop %v839
  %v864 = vrcp.pop %v848
  %v865 = vrcp.pop %v857
  %v866 = vmul.f32 %v858, 0.17677669
  %v867 = vmul.f32 %v859, 0.17677669
  %v868 = vmul.f32 %v860, 0.17677669
  %v869 = vmul.f32 %v861, 0.17677669
  %v870 = vmul.f32 %v862, 0.17677669
  %v871 = vmul.f32 %v863, 0.17677669
  %v872 = vmul.f32 %v864, 0.17677669
  %v873 = vmul.f32 %v865, 0.17677669
  %v874 = vmul.f32 %v723, %v866
  %v875 = vmul.f32 %v725, %v867
  %v876 = vmul.f32 %v727, %v866
  %v877 = vmul.f32 %v729, %v867
  %v878 = vmul.f32 %v731, %v866
  %v879 = vmul.f32 %v733, %v867
  %v880 = vmul.f32 %v735, %v866
  %v881 = vmul.f32 %v737, %v867
  %v882 = vmul.f32 %v739, %v868
  %v883 = vmul.f32 %v741, %v869
  %v884 = vmul.f32 %v743, %v868
  %v885 = vmul.f32 %v745, %v869
  %v886 = vmul.f32 %v747, %v868
  %v887 = vmul.f32 %v749, %v869
  %v888 = vmul.f32 %v751, %v868
  %v889 = vmul.f32 %v753, %v869
  %v890 = vmul.f32 %v755, %v870
  %v891 = vmul.f32 %v757, %v871
  %v892 = vmul.f32 %v759, %v870
  %v893 = vmul.f32 %v761, %v871
  %v894 = vmul.f32 %v763, %v870
  %v895 = vmul.f32 %v765, %v871
  %v896 = vmul.f32 %v767, %v870
  %v897 = vmul.f32 %v769, %v871
  %v898 = vmul.f32 %v771, %v872
  %v899 = vmul.f32 %v773, %v873
  %v900 = vmul.f32 %v775, %v872
  %v901 = vmul.f32 %v777, %v873
  %v902 = vmul.f32 %v779, %v872
  %v903 = vmul.f32 %v781, %v873
  %v904 = vmul.f32 %v783, %v872
  %v905 = vmul.f32 %v785, %v873
  %v906 = vmax.f32 %v428, %v430
  %907 = vmax.xlane.f32.xlu0 %v906
  %v908 = vpop.xlane.xlu0 %907
  %v909 = vmax.f32 %v434, %v436
  %910 = vmax.xlane.f32.xlu0 %v909
  %v911 = vpop.xlane.xlu0 %910
  %v912 = vmax.f32 %v440, %v442
  %913 = vmax.xlane.f32.xlu0 %v912
  %v914 = vpop.xlane.xlu0 %913
  %v915 = vmax.f32 %v446, %v448
  %916 = vmax.xlane.f32.xlu0 %v915
  %v917 = vpop.xlane.xlu0 %916
  %v918 = vmax.f32 %v452, %v454
  %919 = vmax.xlane.f32.xlu0 %v918
  %v920 = vpop.xlane.xlu0 %919
  %v921 = vmax.f32 %v458, %v460
  %922 = vmax.xlane.f32.xlu0 %v921
  %v923 = vpop.xlane.xlu0 %922
  %v924 = vmax.f32 %v464, %v466
  %925 = vmax.xlane.f32.xlu0 %v924
  %v926 = vpop.xlane.xlu0 %925
  %v927 = vmax.f32 %v470, %v472
  %928 = vmax.xlane.f32.xlu0 %v927
  %v929 = vpop.xlane.xlu0 %928
  %v930 = vmax.f32 %v476, %v478
  %931 = vmax.xlane.f32.xlu0 %v930
  %v932 = vpop.xlane.xlu0 %931
  %v933 = vmax.f32 %v482, %v484
  %934 = vmax.xlane.f32.xlu0 %v933
  %v935 = vpop.xlane.xlu0 %934
  %v936 = vmax.f32 %v488, %v490
  %937 = vmax.xlane.f32.xlu0 %v936
  %v938 = vpop.xlane.xlu0 %937
  %v939 = vmax.f32 %v494, %v496
  %940 = vmax.xlane.f32.xlu0 %v939
  %v941 = vpop.xlane.xlu0 %940
  %v942 = vmax.f32 %v500, %v502
  %943 = vmax.xlane.f32.xlu0 %v942
  %v944 = vpop.xlane.xlu0 %943
  %v945 = vmax.f32 %v506, %v508
  %946 = vmax.xlane.f32.xlu0 %v945
  %v947 = vpop.xlane.xlu0 %946
  %v948 = vmax.f32 %v512, %v514
  %949 = vmax.xlane.f32.xlu0 %v948
  %v950 = vpop.xlane.xlu0 %949
  %v951 = vmax.f32 %v518, %v520
  %952 = vmax.xlane.f32.xlu0 %v951
  %v953 = vpop.xlane.xlu0 %952
  %v954 = vsub.f32 %v428, %v908
  %v955 = vsub.f32 %v430, %v908
  %v956 = vsub.f32 %v434, %v911
  %v957 = vsub.f32 %v436, %v911
  %v958 = vsub.f32 %v440, %v914
  %v959 = vsub.f32 %v442, %v914
  %v960 = vsub.f32 %v446, %v917
  %v961 = vsub.f32 %v448, %v917
  %v962 = vsub.f32 %v452, %v920
  %v963 = vsub.f32 %v454, %v920
  %v964 = vsub.f32 %v458, %v923
  %v965 = vsub.f32 %v460, %v923
  %v966 = vsub.f32 %v464, %v926
  %v967 = vsub.f32 %v466, %v926
  %v968 = vsub.f32 %v470, %v929
  %v969 = vsub.f32 %v472, %v929
  %v970 = vsub.f32 %v476, %v932
  %v971 = vsub.f32 %v478, %v932
  %v972 = vsub.f32 %v482, %v935
  %v973 = vsub.f32 %v484, %v935
  %v974 = vsub.f32 %v488, %v938
  %v975 = vsub.f32 %v490, %v938
  %v976 = vsub.f32 %v494, %v941
  %v977 = vsub.f32 %v496, %v941
  %v978 = vsub.f32 %v500, %v944
  %v979 = vsub.f32 %v502, %v944
  %v980 = vsub.f32 %v506, %v947
  %v981 = vsub.f32 %v508, %v947
  %v982 = vsub.f32 %v512, %v950
  %v983 = vsub.f32 %v514, %v950
  %v984 = vsub.f32 %v518, %v953
  %v985 = vsub.f32 %v520, %v953
  %v986 = vmul.f32 %v954, 1.442695
  %v987 = vpow.pop %v986
  %v988 = vmul.f32 %v955, 1.442695
  %v989 = vpow.pop %v988
  %v990 = vmul.f32 %v956, 1.442695
  %v991 = vpow.pop %v990
  %v992 = vmul.f32 %v957, 1.442695
  %v993 = vpow.pop %v992
  %v994 = vmul.f32 %v958, 1.442695
  %v995 = vpow.pop %v994
  %v996 = vmul.f32 %v959, 1.442695
  %v997 = vpow.pop %v996
  %v998 = vmul.f32 %v960, 1.442695
  %v999 = vpow.pop %v998
  %v1000 = vmul.f32 %v961, 1.442695
  %v1001 = vpow.pop %v1000
  %v1002 = vmul.f32 %v962, 1.442695
  %v1003 = vpow.pop %v1002
  %v1004 = vmul.f32 %v963, 1.442695
  %v1005 = vpow.pop %v1004
  %v1006 = vmul.f32 %v964, 1.442695
  %v1007 = vpow.pop %v1006
  %v1008 = vmul.f32 %v965, 1.442695
  %v1009 = vpow.pop %v1008
  %v1010 = vmul.f32 %v966, 1.442695
  %v1011 = vpow.pop %v1010
  %v1012 = vmul.f32 %v967, 1.442695
  %v1013 = vpow.pop %v1012
  %v1014 = vmul.f32 %v968, 1.442695
  %v1015 = vpow.pop %v1014
  %v1016 = vmul.f32 %v969, 1.442695
  %v1017 = vpow.pop %v1016
  %v1018 = vmul.f32 %v970, 1.442695
  %v1019 = vpow.pop %v1018
  %v1020 = vmul.f32 %v971, 1.442695
  %v1021 = vpow.pop %v1020
  %v1022 = vmul.f32 %v972, 1.442695
  %v1023 = vpow.pop %v1022
  %v1024 = vmul.f32 %v973, 1.442695
  %v1025 = vpow.pop %v1024
  %v1026 = vmul.f32 %v974, 1.442695
  %v1027 = vpow.pop %v1026
  %v1028 = vmul.f32 %v975, 1.442695
  %v1029 = vpow.pop %v1028
  %v1030 = vmul.f32 %v976, 1.442695
  %v1031 = vpow.pop %v1030
  %v1032 = vmul.f32 %v977, 1.442695
  %v1033 = vpow.pop %v1032
  %v1034 = vmul.f32 %v978, 1.442695
  %v1035 = vpow.pop %v1034
  %v1036 = vmul.f32 %v979, 1.442695
  %v1037 = vpow.pop %v1036
  %v1038 = vmul.f32 %v980, 1.442695
  %v1039 = vpow.pop %v1038
  %v1040 = vmul.f32 %v981, 1.442695
  %v1041 = vpow.pop %v1040
  %v1042 = vmul.f32 %v982, 1.442695
  %v1043 = vpow.pop %v1042
  %v1044 = vmul.f32 %v983, 1.442695
  %v1045 = vpow.pop %v1044
  %v1046 = vmul.f32 %v984, 1.442695
  %v1047 = vpow.pop %v1046
  %v1048 = vmul.f32 %v985, 1.442695
  %v1049 = vpow.pop %v1048
  %v1050 = vadd.f32 %v987, %v989
  %1051 = vadd.xlane.f32.xlu0 %v1050
  %v1052 = vpop.xlane.xlu0 %1051
  %v1053 = vadd.f32 %v991, %v993
  %1054 = vadd.xlane.f32.xlu0 %v1053
  %v1055 = vpop.xlane.xlu0 %1054
  %v1056 = vadd.f32 %v995, %v997
  %1057 = vadd.xlane.f32.xlu0 %v1056
  %v1058 = vpop.xlane.xlu0 %1057
  %v1059 = vadd.f32 %v999, %v1001
  %1060 = vadd.xlane.f32.xlu0 %v1059
  %v1061 = vpop.xlane.xlu0 %1060
  %v1062 = vadd.f32 %v1003, %v1005
  %1063 = vadd.xlane.f32.xlu0 %v1062
  %v1064 = vpop.xlane.xlu0 %1063
  %v1065 = vadd.f32 %v1007, %v1009
  %1066 = vadd.xlane.f32.xlu0 %v1065
  %v1067 = vpop.xlane.xlu0 %1066
  %v1068 = vadd.f32 %v1011, %v1013
  %1069 = vadd.xlane.f32.xlu0 %v1068
  %v1070 = vpop.xlane.xlu0 %1069
  %v1071 = vadd.f32 %v1015, %v1017
  %1072 = vadd.xlane.f32.xlu0 %v1071
  %v1073 = vpop.xlane.xlu0 %1072
  %v1074 = vadd.f32 %v1019, %v1021
  %1075 = vadd.xlane.f32.xlu0 %v1074
  %v1076 = vpop.xlane.xlu0 %1075
  %v1077 = vadd.f32 %v1023, %v1025
  %1078 = vadd.xlane.f32.xlu0 %v1077
  %v1079 = vpop.xlane.xlu0 %1078
  %v1080 = vadd.f32 %v1027, %v1029
  %1081 = vadd.xlane.f32.xlu0 %v1080
  %v1082 = vpop.xlane.xlu0 %1081
  %v1083 = vadd.f32 %v1031, %v1033
  %1084 = vadd.xlane.f32.xlu0 %v1083
  %v1085 = vpop.xlane.xlu0 %1084
  %v1086 = vadd.f32 %v1035, %v1037
  %1087 = vadd.xlane.f32.xlu0 %v1086
  %v1088 = vpop.xlane.xlu0 %1087
  %v1089 = vadd.f32 %v1039, %v1041
  %1090 = vadd.xlane.f32.xlu0 %v1089
  %v1091 = vpop.xlane.xlu0 %1090
  %v1092 = vadd.f32 %v1043, %v1045
  %1093 = vadd.xlane.f32.xlu0 %v1092
  %v1094 = vpop.xlane.xlu0 %1093
  %v1095 = vadd.f32 %v1047, %v1049
  %1096 = vadd.xlane.f32.xlu0 %v1095
  %v1097 = vpop.xlane.xlu0 %1096
  %v1098 = vrcp.pop %v1052
  %v1099 = vrcp.pop %v1055
  %v1100 = vrcp.pop %v1058
  %v1101 = vrcp.pop %v1061
  %v1102 = vrcp.pop %v1064
  %v1103 = vrcp.pop %v1067
  %v1104 = vrcp.pop %v1070
  %v1105 = vrcp.pop %v1073
  %v1106 = vrcp.pop %v1076
  %v1107 = vrcp.pop %v1079
  %v1108 = vrcp.pop %v1082
  %v1109 = vrcp.pop %v1085
  %v1110 = vrcp.pop %v1088
  %v1111 = vrcp.pop %v1091
  %v1112 = vrcp.pop %v1094
  %v1113 = vrcp.pop %v1097
  %v1114 = vmul.f32 %v987, %v1098
  %v1115 = vmul.f32 %v989, %v1098
  %v1116 = vmul.f32 %v991, %v1099
  %v1117 = vmul.f32 %v993, %v1099
  %v1118 = vmul.f32 %v995, %v1100
  %v1119 = vmul.f32 %v997, %v1100
  %v1120 = vmul.f32 %v999, %v1101
  %v1121 = vmul.f32 %v1001, %v1101
  %v1122 = vmul.f32 %v1003, %v1102
  %v1123 = vmul.f32 %v1005, %v1102
  %v1124 = vmul.f32 %v1007, %v1103
  %v1125 = vmul.f32 %v1009, %v1103
  %v1126 = vmul.f32 %v1011, %v1104
  %v1127 = vmul.f32 %v1013, %v1104
  %v1128 = vmul.f32 %v1015, %v1105
  %v1129 = vmul.f32 %v1017, %v1105
  %v1130 = vmul.f32 %v1019, %v1106
  %v1131 = vmul.f32 %v1021, %v1106
  %v1132 = vmul.f32 %v1023, %v1107
  %v1133 = vmul.f32 %v1025, %v1107
  %v1134 = vmul.f32 %v1027, %v1108
  %v1135 = vmul.f32 %v1029, %v1108
  %v1136 = vmul.f32 %v1031, %v1109
  %v1137 = vmul.f32 %v1033, %v1109
  %v1138 = vmul.f32 %v1035, %v1110
  %v1139 = vmul.f32 %v1037, %v1110
  %v1140 = vmul.f32 %v1039, %v1111
  %v1141 = vmul.f32 %v1041, %v1111
  %v1142 = vmul.f32 %v1043, %v1112
  %v1143 = vmul.f32 %v1045, %v1112
  %v1144 = vmul.f32 %v1047, %v1113
  %v1145 = vmul.f32 %v1049, %v1113
  %1146 = vmatprep.subr.mxu0 0.0
  %1147 = vmatpush1.xpose.msra.mxu0 0.0
  %1148 = vmatprep.subr.mxu0 0.0
  %1149 = vmatpush1.xpose.msra.mxu0 0.0
  %1150 = vmatprep.subr.mxu0 0.0
  %1151 = vmatpush1.xpose.msra.mxu0 0.0
  %1152 = vmatprep.subr.mxu0 0.0
  %1153 = vmatpush1.xpose.msra.mxu0 0.0
  %1154 = vmatprep.subr.mxu0 0.0
  %1155 = vmatpush1.xpose.msra.mxu0 0.0
  %1156 = vmatprep.subr.mxu0 0.0
  %1157 = vmatpush1.xpose.msra.mxu0 0.0
  %1158 = vmatprep.subr.mxu0 0.0
  %1159 = vmatpush1.xpose.msra.mxu0 0.0
  %1160 = vmatprep.subr.mxu0 0.0
  %1161 = vmatpush1.xpose.msra.mxu0 0.0
  %1162 = vmatprep.subr.mxu0 0.0
  %1163 = vmatpush1.xpose.msra.mxu0 0.0
  %1164 = vmatprep.subr.mxu0 0.0
  %1165 = vmatpush1.xpose.msra.mxu0 0.0
  %1166 = vmatprep.subr.mxu0 0.0
  %1167 = vmatpush1.xpose.msra.mxu0 0.0
  %1168 = vmatprep.subr.mxu0 0.0
  %1169 = vmatpush1.xpose.msra.mxu0 0.0
  %1170 = vmatprep.subr.mxu0 %v544
  %1171 = vmatpush1.xpose.msra.mxu0 %v542
  %1172 = vmatprep.subr.mxu0 %v538
  %1173 = vmatpush1.xpose.msra.mxu0 %v536
  %1174 = vmatprep.subr.mxu0 %v532
  %1175 = vmatpush1.xpose.msra.mxu0 %v530
  %1176 = vmatprep.subr.mxu0 %v526
  %1177 = vmatpush1.xpose.msra.mxu0 %v524
  %1178 = vmatprep.subr.mxu0 0.0
  %1179 = vmatpush2.xpose.msra.mxu0 0.0
  %1180 = vmatprep.subr.mxu0 0.0
  %1181 = vmatpush2.xpose.msra.mxu0 0.0
  %1182 = vmatprep.subr.mxu0 0.0
  %1183 = vmatpush2.xpose.msra.mxu0 0.0
  %1184 = vmatprep.subr.mxu0 0.0
  %1185 = vmatpush2.xpose.msra.mxu0 0.0
  %1186 = vmatprep.subr.mxu0 0.0
  %1187 = vmatpush2.xpose.msra.mxu0 0.0
  %1188 = vmatprep.subr.mxu0 0.0
  %1189 = vmatpush2.xpose.msra.mxu0 0.0
  %1190 = vmatprep.subr.mxu0 0.0
  %1191 = vmatpush2.xpose.msra.mxu0 0.0
  %1192 = vmatprep.subr.mxu0 0.0
  %1193 = vmatpush2.xpose.msra.mxu0 0.0
  %1194 = vmatprep.subr.mxu0 0.0
  %1195 = vmatpush2.xpose.msra.mxu0 0.0
  %1196 = vmatprep.subr.mxu0 0.0
  %1197 = vmatpush2.xpose.msra.mxu0 0.0
  %1198 = vmatprep.subr.mxu0 0.0
  %1199 = vmatpush2.xpose.msra.mxu0 0.0
  %1200 = vmatprep.subr.mxu0 0.0
  %1201 = vmatpush2.xpose.msra.mxu0 0.0
  %1202 = vmatprep.subr.mxu0 0.0
  %1203 = vmatpush2.xpose.msra.mxu0 0.0
  %1204 = vmatprep.subr.mxu0 0.0
  %1205 = vmatpush2.xpose.msra.mxu0 0.0
  %1206 = vmatprep.subr.mxu0 0.0
  %1207 = vmatpush2.xpose.msra.mxu0 0.0
  %1208 = vmatprep.subr.mxu0 0.0
  %1209 = vmatpush2.xpose.msra.mxu0 0.0
  %1210 = vmatprep.mubr.f32.mxu0 %v1115
  %1211 = vmatmul.mubr.f32.gmra.mxu0 %v1114
  %v1212 = vpop.f32.mrf.mxu0
  %v1213 = vadd.f32 0.0, %v1212
  %v1214 = vpop.f32.mrf.mxu0
  %1215 = vmatprep.mubr.f32.mxu0 %v1117
  %1216 = vmatmul.mubr.f32.gmra.mxu0 %v1116
  %v1217 = vpop.f32.mrf.mxu0
  %v1218 = vadd.f32 0.0, %v1217
  %v1219 = vpop.f32.mrf.mxu0
  %1220 = vmatprep.mubr.f32.mxu0 %v1119
  %1221 = vmatmul.mubr.f32.gmra.mxu0 %v1118
  %v1222 = vpop.f32.mrf.mxu0
  %v1223 = vadd.f32 0.0, %v1222
  %v1224 = vpop.f32.mrf.mxu0
  %1225 = vmatprep.mubr.f32.mxu0 %v1121
  %1226 = vmatmul.mubr.f32.gmra.mxu0 %v1120
  %v1227 = vpop.f32.mrf.mxu0
  %v1228 = vadd.f32 0.0, %v1227
  %v1229 = vpop.f32.mrf.mxu0
  %1230 = vdwg.mxu0
  %1231 = vmatprep.subr.mxu0 0.0
  %1232 = vmatpush1.xpose.msra.mxu0 0.0
  %1233 = vmatprep.subr.mxu0 0.0
  %1234 = vmatpush1.xpose.msra.mxu0 0.0
  %1235 = vmatprep.subr.mxu0 0.0
  %1236 = vmatpush1.xpose.msra.mxu0 0.0
  %1237 = vmatprep.subr.mxu0 0.0
  %1238 = vmatpush1.xpose.msra.mxu0 0.0
  %1239 = vmatprep.subr.mxu0 0.0
  %1240 = vmatpush1.xpose.msra.mxu0 0.0
  %1241 = vmatprep.subr.mxu0 0.0
  %1242 = vmatpush1.xpose.msra.mxu0 0.0
  %1243 = vmatprep.subr.mxu0 0.0
  %1244 = vmatpush1.xpose.msra.mxu0 0.0
  %1245 = vmatprep.subr.mxu0 0.0
  %1246 = vmatpush1.xpose.msra.mxu0 0.0
  %1247 = vmatprep.subr.mxu0 0.0
  %1248 = vmatpush1.xpose.msra.mxu0 0.0
  %1249 = vmatprep.subr.mxu0 0.0
  %1250 = vmatpush1.xpose.msra.mxu0 0.0
  %1251 = vmatprep.subr.mxu0 0.0
  %1252 = vmatpush1.xpose.msra.mxu0 0.0
  %1253 = vmatprep.subr.mxu0 0.0
  %1254 = vmatpush1.xpose.msra.mxu0 0.0
  %1255 = vmatprep.subr.mxu0 %v568
  %1256 = vmatpush1.xpose.msra.mxu0 %v566
  %1257 = vmatprep.subr.mxu0 %v562
  %1258 = vmatpush1.xpose.msra.mxu0 %v560
  %1259 = vmatprep.subr.mxu0 %v556
  %1260 = vmatpush1.xpose.msra.mxu0 %v554
  %1261 = vmatprep.subr.mxu0 %v550
  %1262 = vmatpush1.xpose.msra.mxu0 %v548
  %1263 = vmatprep.subr.mxu0 0.0
  %1264 = vmatpush2.xpose.msra.mxu0 0.0
  %1265 = vmatprep.subr.mxu0 0.0
  %1266 = vmatpush2.xpose.msra.mxu0 0.0
  %1267 = vmatprep.subr.mxu0 0.0
  %1268 = vmatpush2.xpose.msra.mxu0 0.0
  %1269 = vmatprep.subr.mxu0 0.0
  %1270 = vmatpush2.xpose.msra.mxu0 0.0
  %1271 = vmatprep.subr.mxu0 0.0
  %1272 = vmatpush2.xpose.msra.mxu0 0.0
  %1273 = vmatprep.subr.mxu0 0.0
  %1274 = vmatpush2.xpose.msra.mxu0 0.0
  %1275 = vmatprep.subr.mxu0 0.0
  %1276 = vmatpush2.xpose.msra.mxu0 0.0
  %1277 = vmatprep.subr.mxu0 0.0
  %1278 = vmatpush2.xpose.msra.mxu0 0.0
  %1279 = vmatprep.subr.mxu0 0.0
  %1280 = vmatpush2.xpose.msra.mxu0 0.0
  %1281 = vmatprep.subr.mxu0 0.0
  %1282 = vmatpush2.xpose.msra.mxu0 0.0
  %1283 = vmatprep.subr.mxu0 0.0
  %1284 = vmatpush2.xpose.msra.mxu0 0.0
  %1285 = vmatprep.subr.mxu0 0.0
  %1286 = vmatpush2.xpose.msra.mxu0 0.0
  %1287 = vmatprep.subr.mxu0 0.0
  %1288 = vmatpush2.xpose.msra.mxu0 0.0
  %1289 = vmatprep.subr.mxu0 0.0
  %1290 = vmatpush2.xpose.msra.mxu0 0.0
  %1291 = vmatprep.subr.mxu0 0.0
  %1292 = vmatpush2.xpose.msra.mxu0 0.0
  %1293 = vmatprep.subr.mxu0 0.0
  %1294 = vmatpush2.xpose.msra.mxu0 0.0
  %1295 = vmatprep.mubr.f32.mxu0 %v1123
  %1296 = vmatmul.mubr.f32.gmra.mxu0 %v1122
  %v1297 = vpop.f32.mrf.mxu0
  %v1298 = vadd.f32 0.0, %v1297
  %v1299 = vpop.f32.mrf.mxu0
  %1300 = vmatprep.mubr.f32.mxu0 %v1125
  %1301 = vmatmul.mubr.f32.gmra.mxu0 %v1124
  %v1302 = vpop.f32.mrf.mxu0
  %v1303 = vadd.f32 0.0, %v1302
  %v1304 = vpop.f32.mrf.mxu0
  %1305 = vmatprep.mubr.f32.mxu0 %v1127
  %1306 = vmatmul.mubr.f32.gmra.mxu0 %v1126
  %v1307 = vpop.f32.mrf.mxu0
  %v1308 = vadd.f32 0.0, %v1307
  %v1309 = vpop.f32.mrf.mxu0
  %1310 = vmatprep.mubr.f32.mxu0 %v1129
  %1311 = vmatmul.mubr.f32.gmra.mxu0 %v1128
  %v1312 = vpop.f32.mrf.mxu0
  %v1313 = vadd.f32 0.0, %v1312
  %v1314 = vpop.f32.mrf.mxu0
  %1315 = vdwg.mxu0
  %1316 = vmatprep.subr.mxu0 0.0
  %1317 = vmatpush1.xpose.msra.mxu0 0.0
  %1318 = vmatprep.subr.mxu0 0.0
  %1319 = vmatpush1.xpose.msra.mxu0 0.0
  %1320 = vmatprep.subr.mxu0 0.0
  %1321 = vmatpush1.xpose.msra.mxu0 0.0
  %1322 = vmatprep.subr.mxu0 0.0
  %1323 = vmatpush1.xpose.msra.mxu0 0.0
  %1324 = vmatprep.subr.mxu0 0.0
  %1325 = vmatpush1.xpose.msra.mxu0 0.0
  %1326 = vmatprep.subr.mxu0 0.0
  %1327 = vmatpush1.xpose.msra.mxu0 0.0
  %1328 = vmatprep.subr.mxu0 0.0
  %1329 = vmatpush1.xpose.msra.mxu0 0.0
  %1330 = vmatprep.subr.mxu0 0.0
  %1331 = vmatpush1.xpose.msra.mxu0 0.0
  %1332 = vmatprep.subr.mxu0 0.0
  %1333 = vmatpush1.xpose.msra.mxu0 0.0
  %1334 = vmatprep.subr.mxu0 0.0
  %1335 = vmatpush1.xpose.msra.mxu0 0.0
  %1336 = vmatprep.subr.mxu0 0.0
  %1337 = vmatpush1.xpose.msra.mxu0 0.0
  %1338 = vmatprep.subr.mxu0 0.0
  %1339 = vmatpush1.xpose.msra.mxu0 0.0
  %1340 = vmatprep.subr.mxu0 %v592
  %1341 = vmatpush1.xpose.msra.mxu0 %v590
  %1342 = vmatprep.subr.mxu0 %v586
  %1343 = vmatpush1.xpose.msra.mxu0 %v584
  %1344 = vmatprep.subr.mxu0 %v580
  %1345 = vmatpush1.xpose.msra.mxu0 %v578
  %1346 = vmatprep.subr.mxu0 %v574
  %1347 = vmatpush1.xpose.msra.mxu0 %v572
  %1348 = vmatprep.subr.mxu0 0.0
  %1349 = vmatpush2.xpose.msra.mxu0 0.0
  %1350 = vmatprep.subr.mxu0 0.0
  %1351 = vmatpush2.xpose.msra.mxu0 0.0
  %1352 = vmatprep.subr.mxu0 0.0
  %1353 = vmatpush2.xpose.msra.mxu0 0.0
  %1354 = vmatprep.subr.mxu0 0.0
  %1355 = vmatpush2.xpose.msra.mxu0 0.0
  %1356 = vmatprep.subr.mxu0 0.0
  %1357 = vmatpush2.xpose.msra.mxu0 0.0
  %1358 = vmatprep.subr.mxu0 0.0
  %1359 = vmatpush2.xpose.msra.mxu0 0.0
  %1360 = vmatprep.subr.mxu0 0.0
  %1361 = vmatpush2.xpose.msra.mxu0 0.0
  %1362 = vmatprep.subr.mxu0 0.0
  %1363 = vmatpush2.xpose.msra.mxu0 0.0
  %1364 = vmatprep.subr.mxu0 0.0
  %1365 = vmatpush2.xpose.msra.mxu0 0.0
  %1366 = vmatprep.subr.mxu0 0.0
  %1367 = vmatpush2.xpose.msra.mxu0 0.0
  %1368 = vmatprep.subr.mxu0 0.0
  %1369 = vmatpush2.xpose.msra.mxu0 0.0
  %1370 = vmatprep.subr.mxu0 0.0
  %1371 = vmatpush2.xpose.msra.mxu0 0.0
  %1372 = vmatprep.subr.mxu0 0.0
  %1373 = vmatpush2.xpose.msra.mxu0 0.0
  %1374 = vmatprep.subr.mxu0 0.0
  %1375 = vmatpush2.xpose.msra.mxu0 0.0
  %1376 = vmatprep.subr.mxu0 0.0
  %1377 = vmatpush2.xpose.msra.mxu0 0.0
  %1378 = vmatprep.subr.mxu0 0.0
  %1379 = vmatpush2.xpose.msra.mxu0 0.0
  %1380 = vmatprep.mubr.f32.mxu0 %v1131
  %1381 = vmatmul.mubr.f32.gmra.mxu0 %v1130
  %v1382 = vpop.f32.mrf.mxu0
  %v1383 = vadd.f32 0.0, %v1382
  %v1384 = vpop.f32.mrf.mxu0
  %1385 = vmatprep.mubr.f32.mxu0 %v1133
  %1386 = vmatmul.mubr.f32.gmra.mxu0 %v1132
  %v1387 = vpop.f32.mrf.mxu0
  %v1388 = vadd.f32 0.0, %v1387
  %v1389 = vpop.f32.mrf.mxu0
  %1390 = vmatprep.mubr.f32.mxu0 %v1135
  %1391 = vmatmul.mubr.f32.gmra.mxu0 %v1134
  %v1392 = vpop.f32.mrf.mxu0
  %v1393 = vadd.f32 0.0, %v1392
  %v1394 = vpop.f32.mrf.mxu0
  %1395 = vmatprep.mubr.f32.mxu0 %v1137
  %1396 = vmatmul.mubr.f32.gmra.mxu0 %v1136
  %v1397 = vpop.f32.mrf.mxu0
  %v1398 = vadd.f32 0.0, %v1397
  %v1399 = vpop.f32.mrf.mxu0
  %1400 = vdwg.mxu0
  %1401 = vmatprep.subr.mxu0 0.0
  %1402 = vmatpush1.xpose.msra.mxu0 0.0
  %1403 = vmatprep.subr.mxu0 0.0
  %1404 = vmatpush1.xpose.msra.mxu0 0.0
  %1405 = vmatprep.subr.mxu0 0.0
  %1406 = vmatpush1.xpose.msra.mxu0 0.0
  %1407 = vmatprep.subr.mxu0 0.0
  %1408 = vmatpush1.xpose.msra.mxu0 0.0
  %1409 = vmatprep.subr.mxu0 0.0
  %1410 = vmatpush1.xpose.msra.mxu0 0.0
  %1411 = vmatprep.subr.mxu0 0.0
  %1412 = vmatpush1.xpose.msra.mxu0 0.0
  %1413 = vmatprep.subr.mxu0 0.0
  %1414 = vmatpush1.xpose.msra.mxu0 0.0
  %1415 = vmatprep.subr.mxu0 0.0
  %1416 = vmatpush1.xpose.msra.mxu0 0.0
  %1417 = vmatprep.subr.mxu0 0.0
  %1418 = vmatpush1.xpose.msra.mxu0 0.0
  %1419 = vmatprep.subr.mxu0 0.0
  %1420 = vmatpush1.xpose.msra.mxu0 0.0
  %1421 = vmatprep.subr.mxu0 0.0
  %1422 = vmatpush1.xpose.msra.mxu0 0.0
  %1423 = vmatprep.subr.mxu0 0.0
  %1424 = vmatpush1.xpose.msra.mxu0 0.0
  %1425 = vmatprep.subr.mxu0 %v616
  %1426 = vmatpush1.xpose.msra.mxu0 %v614
  %1427 = vmatprep.subr.mxu0 %v610
  %1428 = vmatpush1.xpose.msra.mxu0 %v608
  %1429 = vmatprep.subr.mxu0 %v604
  %1430 = vmatpush1.xpose.msra.mxu0 %v602
  %1431 = vmatprep.subr.mxu0 %v598
  %1432 = vmatpush1.xpose.msra.mxu0 %v596
  %1433 = vmatprep.subr.mxu0 0.0
  %1434 = vmatpush2.xpose.msra.mxu0 0.0
  %1435 = vmatprep.subr.mxu0 0.0
  %1436 = vmatpush2.xpose.msra.mxu0 0.0
  %1437 = vmatprep.subr.mxu0 0.0
  %1438 = vmatpush2.xpose.msra.mxu0 0.0
  %1439 = vmatprep.subr.mxu0 0.0
  %1440 = vmatpush2.xpose.msra.mxu0 0.0
  %1441 = vmatprep.subr.mxu0 0.0
  %1442 = vmatpush2.xpose.msra.mxu0 0.0
  %1443 = vmatprep.subr.mxu0 0.0
  %1444 = vmatpush2.xpose.msra.mxu0 0.0
  %1445 = vmatprep.subr.mxu0 0.0
  %1446 = vmatpush2.xpose.msra.mxu0 0.0
  %1447 = vmatprep.subr.mxu0 0.0
  %1448 = vmatpush2.xpose.msra.mxu0 0.0
  %1449 = vmatprep.subr.mxu0 0.0
  %1450 = vmatpush2.xpose.msra.mxu0 0.0
  %1451 = vmatprep.subr.mxu0 0.0
  %1452 = vmatpush2.xpose.msra.mxu0 0.0
  %1453 = vmatprep.subr.mxu0 0.0
  %1454 = vmatpush2.xpose.msra.mxu0 0.0
  %1455 = vmatprep.subr.mxu0 0.0
  %1456 = vmatpush2.xpose.msra.mxu0 0.0
  %1457 = vmatprep.subr.mxu0 0.0
  %1458 = vmatpush2.xpose.msra.mxu0 0.0
  %1459 = vmatprep.subr.mxu0 0.0
  %1460 = vmatpush2.xpose.msra.mxu0 0.0
  %1461 = vmatprep.subr.mxu0 0.0
  %1462 = vmatpush2.xpose.msra.mxu0 0.0
  %1463 = vmatprep.subr.mxu0 0.0
  %1464 = vmatpush2.xpose.msra.mxu0 0.0
  %1465 = vmatprep.mubr.f32.mxu0 %v1139
  %1466 = vmatmul.mubr.f32.gmra.mxu0 %v1138
  %v1467 = vpop.f32.mrf.mxu0
  %v1468 = vadd.f32 0.0, %v1467
  %v1469 = vpop.f32.mrf.mxu0
  %1470 = vmatprep.mubr.f32.mxu0 %v1141
  %1471 = vmatmul.mubr.f32.gmra.mxu0 %v1140
  %v1472 = vpop.f32.mrf.mxu0
  %v1473 = vadd.f32 0.0, %v1472
  %v1474 = vpop.f32.mrf.mxu0
  %1475 = vmatprep.mubr.f32.mxu0 %v1143
  %1476 = vmatmul.mubr.f32.gmra.mxu0 %v1142
  %v1477 = vpop.f32.mrf.mxu0
  %v1478 = vadd.f32 0.0, %v1477
  %v1479 = vpop.f32.mrf.mxu0
  %1480 = vmatprep.mubr.f32.mxu0 %v1145
  %1481 = vmatmul.mubr.f32.gmra.mxu0 %v1144
  %v1482 = vpop.f32.mrf.mxu0
  %v1483 = vadd.f32 0.0, %v1482
  %v1484 = vpop.f32.mrf.mxu0
  %1485 = vdwg.mxu0
  %1486 = vxpose.xlu0.b32.start [1/16] %v1213, 128
  %1487 = vxpose.xlu0.b32.cont [2/16] %v1218, 128
  %1488 = vxpose.xlu0.b32.cont [3/16] %v1223, 128
  %1489 = vxpose.xlu0.b32.cont [4/16] %v1228, 128
  %1490 = vxpose.xlu0.b32.cont [5/16] 0.0, 128
  %1491 = vxpose.xlu0.b32.cont [6/16] 0.0, 128
  %1492 = vxpose.xlu0.b32.cont [7/16] 0.0, 128
  %1493 = vxpose.xlu0.b32.cont [8/16] 0.0, 128
  %1494 = vxpose.xlu0.b32.cont [9/16] 0.0, 128
  %1495 = vxpose.xlu0.b32.cont [10/16] 0.0, 128
  %1496 = vxpose.xlu0.b32.cont [11/16] 0.0, 128
  %1497 = vxpose.xlu0.b32.cont [12/16] 0.0, 128
  %1498 = vxpose.xlu0.b32.cont [13/16] 0.0, 128
  %1499 = vxpose.xlu0.b32.cont [14/16] 0.0, 128
  %1500 = vxpose.xlu0.b32.cont [15/16] 0.0, 128
  %1501 = vxpose.xlu0.b32.end [16/16] 0.0, 128
  %v1502 = vpop.trf.xlu0
  %v1503 = vpop.trf.xlu0
  %v1504 = vpop.trf.xlu0
  %v1505 = vpop.trf.xlu0
  %v1506 = vpop.trf.xlu0
  %v1507 = vpop.trf.xlu0
  %v1508 = vpop.trf.xlu0
  %v1509 = vpop.trf.xlu0
  %v1510 = vpop.trf.xlu0
  %v1511 = vpop.trf.xlu0
  %v1512 = vpop.trf.xlu0
  %v1513 = vpop.trf.xlu0
  %v1514 = vpop.trf.xlu0
  %v1515 = vpop.trf.xlu0
  %v1516 = vpop.trf.xlu0
  %v1517 = vpop.trf.xlu0
  %vm1518 = vcmask 261120
  %v1520 = vsel %vm1518, %v1502, 0
  %v1523 = vsel %vm1518, %v1503, 0
  %v1526 = vsel %vm1518, %v1504, 0
  %v1529 = vsel %vm1518, %v1505, 0
  %1531 = vmatprep.subr.mxu0 0.0
  %1532 = vmatpush1.msra.mxu0 0.0
  %1533 = vmatprep.subr.mxu0 0.0
  %1534 = vmatpush1.msra.mxu0 0.0
  %1535 = vmatprep.subr.mxu0 0.0
  %1536 = vmatpush1.msra.mxu0 0.0
  %1537 = vmatprep.subr.mxu0 0.0
  %1538 = vmatpush1.msra.mxu0 0.0
  %1539 = vmatprep.subr.mxu0 0.0
  %1540 = vmatpush1.msra.mxu0 0.0
  %1541 = vmatprep.subr.mxu0 0.0
  %1542 = vmatpush1.msra.mxu0 0.0
  %1543 = vmatprep.subr.mxu0 0.0
  %1544 = vmatpush1.msra.mxu0 0.0
  %1545 = vmatprep.subr.mxu0 0.0
  %1546 = vmatpush1.msra.mxu0 0.0
  %1547 = vmatprep.subr.mxu0 0.0
  %1548 = vmatpush1.msra.mxu0 0.0
  %1549 = vmatprep.subr.mxu0 0.0
  %1550 = vmatpush1.msra.mxu0 0.0
  %1551 = vmatprep.subr.mxu0 0.0
  %1552 = vmatpush1.msra.mxu0 0.0
  %1553 = vmatprep.subr.mxu0 0.0
  %1554 = vmatpush1.msra.mxu0 0.0
  %1555 = vmatprep.subr.mxu0 %v881
  %1556 = vmatpush1.msra.mxu0 %v880
  %1557 = vmatprep.subr.mxu0 %v879
  %1558 = vmatpush1.msra.mxu0 %v878
  %1559 = vmatprep.subr.mxu0 %v877
  %1560 = vmatpush1.msra.mxu0 %v876
  %1561 = vmatprep.subr.mxu0 %v875
  %1562 = vmatpush1.msra.mxu0 %v874
  %1563 = vmatprep.subr.mxu0 0.0
  %1564 = vmatpush2.msra.mxu0 0.0
  %1565 = vmatprep.subr.mxu0 0.0
  %1566 = vmatpush2.msra.mxu0 0.0
  %1567 = vmatprep.subr.mxu0 0.0
  %1568 = vmatpush2.msra.mxu0 0.0
  %1569 = vmatprep.subr.mxu0 0.0
  %1570 = vmatpush2.msra.mxu0 0.0
  %1571 = vmatprep.subr.mxu0 0.0
  %1572 = vmatpush2.msra.mxu0 0.0
  %1573 = vmatprep.subr.mxu0 0.0
  %1574 = vmatpush2.msra.mxu0 0.0
  %1575 = vmatprep.subr.mxu0 0.0
  %1576 = vmatpush2.msra.mxu0 0.0
  %1577 = vmatprep.subr.mxu0 0.0
  %1578 = vmatpush2.msra.mxu0 0.0
  %1579 = vmatprep.subr.mxu0 0.0
  %1580 = vmatpush2.msra.mxu0 0.0
  %1581 = vmatprep.subr.mxu0 0.0
  %1582 = vmatpush2.msra.mxu0 0.0
  %1583 = vmatprep.subr.mxu0 0.0
  %1584 = vmatpush2.msra.mxu0 0.0
  %1585 = vmatprep.subr.mxu0 0.0
  %1586 = vmatpush2.msra.mxu0 0.0
  %1587 = vmatprep.subr.mxu0 0.0
  %1588 = vmatpush2.msra.mxu0 0.0
  %1589 = vmatprep.subr.mxu0 0.0
  %1590 = vmatpush2.msra.mxu0 0.0
  %1591 = vmatprep.subr.mxu0 0.0
  %1592 = vmatpush2.msra.mxu0 0.0
  %1593 = vmatprep.subr.mxu0 0.0
  %1594 = vmatpush2.msra.mxu0 0.0
  %1595 = vmatprep.mubr.f32.mxu0 0.0
  %1596 = vmatmul.mubr.f32.gmra.mxu0 %v1520
  %v1597 = vpop.f32.mrf.mxu0
  %v1598 = vadd.f32 0.0, %v1597
  %v1599 = vpop.f32.mrf.mxu0
  %v1600 = vadd.f32 0.0, %v1599
  %1601 = vmatprep.mubr.f32.mxu0 0.0
  %1602 = vmatmul.mubr.f32.gmra.mxu0 %v1523
  %v1603 = vpop.f32.mrf.mxu0
  %v1604 = vadd.f32 0.0, %v1603
  %v1605 = vpop.f32.mrf.mxu0
  %v1606 = vadd.f32 0.0, %v1605
  %1607 = vmatprep.mubr.f32.mxu0 0.0
  %1608 = vmatmul.mubr.f32.gmra.mxu0 %v1526
  %v1609 = vpop.f32.mrf.mxu0
  %v1610 = vadd.f32 0.0, %v1609
  %v1611 = vpop.f32.mrf.mxu0
  %v1612 = vadd.f32 0.0, %v1611
  %1613 = vmatprep.mubr.f32.mxu0 0.0
  %1614 = vmatmul.mubr.f32.gmra.mxu0 %v1529
  %v1615 = vpop.f32.mrf.mxu0
  %v1616 = vadd.f32 0.0, %v1615
  %v1617 = vpop.f32.mrf.mxu0
  %v1618 = vadd.f32 0.0, %v1617
  %1619 = vdwg.mxu0
  %1620 = vxpose.xlu0.b32.start [1/16] %v1298, 128
  %1621 = vxpose.xlu0.b32.cont [2/16] %v1303, 128
  %1622 = vxpose.xlu0.b32.cont [3/16] %v1308, 128
  %1623 = vxpose.xlu0.b32.cont [4/16] %v1313, 128
  %1624 = vxpose.xlu0.b32.cont [5/16] 0.0, 128
  %1625 = vxpose.xlu0.b32.cont [6/16] 0.0, 128
  %1626 = vxpose.xlu0.b32.cont [7/16] 0.0, 128
  %1627 = vxpose.xlu0.b32.cont [8/16] 0.0, 128
  %1628 = vxpose.xlu0.b32.cont [9/16] 0.0, 128
  %1629 = vxpose.xlu0.b32.cont [10/16] 0.0, 128
  %1630 = vxpose.xlu0.b32.cont [11/16] 0.0, 128
  %1631 = vxpose.xlu0.b32.cont [12/16] 0.0, 128
  %1632 = vxpose.xlu0.b32.cont [13/16] 0.0, 128
  %1633 = vxpose.xlu0.b32.cont [14/16] 0.0, 128
  %1634 = vxpose.xlu0.b32.cont [15/16] 0.0, 128
  %1635 = vxpose.xlu0.b32.end [16/16] 0.0, 128
  %v1636 = vpop.trf.xlu0
  %v1637 = vpop.trf.xlu0
  %v1638 = vpop.trf.xlu0
  %v1639 = vpop.trf.xlu0
  %v1640 = vpop.trf.xlu0
  %v1641 = vpop.trf.xlu0
  %v1642 = vpop.trf.xlu0
  %v1643 = vpop.trf.xlu0
  %v1644 = vpop.trf.xlu0
  %v1645 = vpop.trf.xlu0
  %v1646 = vpop.trf.xlu0
  %v1647 = vpop.trf.xlu0
  %v1648 = vpop.trf.xlu0
  %v1649 = vpop.trf.xlu0
  %v1650 = vpop.trf.xlu0
  %v1651 = vpop.trf.xlu0
  %v1653 = vsel %vm1518, %v1636, 0
  %v1656 = vsel %vm1518, %v1637, 0
  %v1659 = vsel %vm1518, %v1638, 0
  %v1662 = vsel %vm1518, %v1639, 0
  %1664 = vmatprep.subr.mxu0 0.0
  %1665 = vmatpush1.msra.mxu0 0.0
  %1666 = vmatprep.subr.mxu0 0.0
  %1667 = vmatpush1.msra.mxu0 0.0
  %1668 = vmatprep.subr.mxu0 0.0
  %1669 = vmatpush1.msra.mxu0 0.0
  %1670 = vmatprep.subr.mxu0 0.0
  %1671 = vmatpush1.msra.mxu0 0.0
  %1672 = vmatprep.subr.mxu0 0.0
  %1673 = vmatpush1.msra.mxu0 0.0
  %1674 = vmatprep.subr.mxu0 0.0
  %1675 = vmatpush1.msra.mxu0 0.0
  %1676 = vmatprep.subr.mxu0 0.0
  %1677 = vmatpush1.msra.mxu0 0.0
  %1678 = vmatprep.subr.mxu0 0.0
  %1679 = vmatpush1.msra.mxu0 0.0
  %1680 = vmatprep.subr.mxu0 0.0
  %1681 = vmatpush1.msra.mxu0 0.0
  %1682 = vmatprep.subr.mxu0 0.0
  %1683 = vmatpush1.msra.mxu0 0.0
  %1684 = vmatprep.subr.mxu0 0.0
  %1685 = vmatpush1.msra.mxu0 0.0
  %1686 = vmatprep.subr.mxu0 0.0
  %1687 = vmatpush1.msra.mxu0 0.0
  %1688 = vmatprep.subr.mxu0 %v889
  %1689 = vmatpush1.msra.mxu0 %v888
  %1690 = vmatprep.subr.mxu0 %v887
  %1691 = vmatpush1.msra.mxu0 %v886
  %1692 = vmatprep.subr.mxu0 %v885
  %1693 = vmatpush1.msra.mxu0 %v884
  %1694 = vmatprep.subr.mxu0 %v883
  %1695 = vmatpush1.msra.mxu0 %v882
  %1696 = vmatprep.subr.mxu0 0.0
  %1697 = vmatpush2.msra.mxu0 0.0
  %1698 = vmatprep.subr.mxu0 0.0
  %1699 = vmatpush2.msra.mxu0 0.0
  %1700 = vmatprep.subr.mxu0 0.0
  %1701 = vmatpush2.msra.mxu0 0.0
  %1702 = vmatprep.subr.mxu0 0.0
  %1703 = vmatpush2.msra.mxu0 0.0
  %1704 = vmatprep.subr.mxu0 0.0
  %1705 = vmatpush2.msra.mxu0 0.0
  %1706 = vmatprep.subr.mxu0 0.0
  %1707 = vmatpush2.msra.mxu0 0.0
  %1708 = vmatprep.subr.mxu0 0.0
  %1709 = vmatpush2.msra.mxu0 0.0
  %1710 = vmatprep.subr.mxu0 0.0
  %1711 = vmatpush2.msra.mxu0 0.0
  %1712 = vmatprep.subr.mxu0 0.0
  %1713 = vmatpush2.msra.mxu0 0.0
  %1714 = vmatprep.subr.mxu0 0.0
  %1715 = vmatpush2.msra.mxu0 0.0
  %1716 = vmatprep.subr.mxu0 0.0
  %1717 = vmatpush2.msra.mxu0 0.0
  %1718 = vmatprep.subr.mxu0 0.0
  %1719 = vmatpush2.msra.mxu0 0.0
  %1720 = vmatprep.subr.mxu0 0.0
  %1721 = vmatpush2.msra.mxu0 0.0
  %1722 = vmatprep.subr.mxu0 0.0
  %1723 = vmatpush2.msra.mxu0 0.0
  %1724 = vmatprep.subr.mxu0 0.0
  %1725 = vmatpush2.msra.mxu0 0.0
  %1726 = vmatprep.subr.mxu0 0.0
  %1727 = vmatpush2.msra.mxu0 0.0
  %1728 = vmatprep.mubr.f32.mxu0 0.0
  %1729 = vmatmul.mubr.f32.gmra.mxu0 %v1653
  %v1730 = vpop.f32.mrf.mxu0
  %v1731 = vadd.f32 0.0, %v1730
  %v1732 = vpop.f32.mrf.mxu0
  %v1733 = vadd.f32 0.0, %v1732
  %1734 = vmatprep.mubr.f32.mxu0 0.0
  %1735 = vmatmul.mubr.f32.gmra.mxu0 %v1656
  %v1736 = vpop.f32.mrf.mxu0
  %v1737 = vadd.f32 0.0, %v1736
  %v1738 = vpop.f32.mrf.mxu0
  %v1739 = vadd.f32 0.0, %v1738
  %1740 = vmatprep.mubr.f32.mxu0 0.0
  %1741 = vmatmul.mubr.f32.gmra.mxu0 %v1659
  %v1742 = vpop.f32.mrf.mxu0
  %v1743 = vadd.f32 0.0, %v1742
  %v1744 = vpop.f32.mrf.mxu0
  %v1745 = vadd.f32 0.0, %v1744
  %1746 = vmatprep.mubr.f32.mxu0 0.0
  %1747 = vmatmul.mubr.f32.gmra.mxu0 %v1662
  %v1748 = vpop.f32.mrf.mxu0
  %v1749 = vadd.f32 0.0, %v1748
  %v1750 = vpop.f32.mrf.mxu0
  %v1751 = vadd.f32 0.0, %v1750
  %1752 = vdwg.mxu0
  %1753 = vxpose.xlu0.b32.start [1/16] %v1383, 128
  %1754 = vxpose.xlu0.b32.cont [2/16] %v1388, 128
  %1755 = vxpose.xlu0.b32.cont [3/16] %v1393, 128
  %1756 = vxpose.xlu0.b32.cont [4/16] %v1398, 128
  %1757 = vxpose.xlu0.b32.cont [5/16] 0.0, 128
  %1758 = vxpose.xlu0.b32.cont [6/16] 0.0, 128
  %1759 = vxpose.xlu0.b32.cont [7/16] 0.0, 128
  %1760 = vxpose.xlu0.b32.cont [8/16] 0.0, 128
  %1761 = vxpose.xlu0.b32.cont [9/16] 0.0, 128
  %1762 = vxpose.xlu0.b32.cont [10/16] 0.0, 128
  %1763 = vxpose.xlu0.b32.cont [11/16] 0.0, 128
  %1764 = vxpose.xlu0.b32.cont [12/16] 0.0, 128
  %1765 = vxpose.xlu0.b32.cont [13/16] 0.0, 128
  %1766 = vxpose.xlu0.b32.cont [14/16] 0.0, 128
  %1767 = vxpose.xlu0.b32.cont [15/16] 0.0, 128
  %1768 = vxpose.xlu0.b32.end [16/16] 0.0, 128
  %v1769 = vpop.trf.xlu0
  %v1770 = vpop.trf.xlu0
  %v1771 = vpop.trf.xlu0
  %v1772 = vpop.trf.xlu0
  %v1773 = vpop.trf.xlu0
  %v1774 = vpop.trf.xlu0
  %v1775 = vpop.trf.xlu0
  %v1776 = vpop.trf.xlu0
  %v1777 = vpop.trf.xlu0
  %v1778 = vpop.trf.xlu0
  %v1779 = vpop.trf.xlu0
  %v1780 = vpop.trf.xlu0
  %v1781 = vpop.trf.xlu0
  %v1782 = vpop.trf.xlu0
  %v1783 = vpop.trf.xlu0
  %v1784 = vpop.trf.xlu0
  %v1786 = vsel %vm1518, %v1769, 0
  %v1789 = vsel %vm1518, %v1770, 0
  %v1792 = vsel %vm1518, %v1771, 0
  %v1795 = vsel %vm1518, %v1772, 0
  %1797 = vmatprep.subr.mxu0 0.0
  %1798 = vmatpush1.msra.mxu0 0.0
  %1799 = vmatprep.subr.mxu0 0.0
  %1800 = vmatpush1.msra.mxu0 0.0
  %1801 = vmatprep.subr.mxu0 0.0
  %1802 = vmatpush1.msra.mxu0 0.0
  %1803 = vmatprep.subr.mxu0 0.0
  %1804 = vmatpush1.msra.mxu0 0.0
  %1805 = vmatprep.subr.mxu0 0.0
  %1806 = vmatpush1.msra.mxu0 0.0
  %1807 = vmatprep.subr.mxu0 0.0
  %1808 = vmatpush1.msra.mxu0 0.0
  %1809 = vmatprep.subr.mxu0 0.0
  %1810 = vmatpush1.msra.mxu0 0.0
  %1811 = vmatprep.subr.mxu0 0.0
  %1812 = vmatpush1.msra.mxu0 0.0
  %1813 = vmatprep.subr.mxu0 0.0
  %1814 = vmatpush1.msra.mxu0 0.0
  %1815 = vmatprep.subr.mxu0 0.0
  %1816 = vmatpush1.msra.mxu0 0.0
  %1817 = vmatprep.subr.mxu0 0.0
  %1818 = vmatpush1.msra.mxu0 0.0
  %1819 = vmatprep.subr.mxu0 0.0
  %1820 = vmatpush1.msra.mxu0 0.0
  %1821 = vmatprep.subr.mxu0 %v897
  %1822 = vmatpush1.msra.mxu0 %v896
  %1823 = vmatprep.subr.mxu0 %v895
  %1824 = vmatpush1.msra.mxu0 %v894
  %1825 = vmatprep.subr.mxu0 %v893
  %1826 = vmatpush1.msra.mxu0 %v892
  %1827 = vmatprep.subr.mxu0 %v891
  %1828 = vmatpush1.msra.mxu0 %v890
  %1829 = vmatprep.subr.mxu0 0.0
  %1830 = vmatpush2.msra.mxu0 0.0
  %1831 = vmatprep.subr.mxu0 0.0
  %1832 = vmatpush2.msra.mxu0 0.0
  %1833 = vmatprep.subr.mxu0 0.0
  %1834 = vmatpush2.msra.mxu0 0.0
  %1835 = vmatprep.subr.mxu0 0.0
  %1836 = vmatpush2.msra.mxu0 0.0
  %1837 = vmatprep.subr.mxu0 0.0
  %1838 = vmatpush2.msra.mxu0 0.0
  %1839 = vmatprep.subr.mxu0 0.0
  %1840 = vmatpush2.msra.mxu0 0.0
  %1841 = vmatprep.subr.mxu0 0.0
  %1842 = vmatpush2.msra.mxu0 0.0
  %1843 = vmatprep.subr.mxu0 0.0
  %1844 = vmatpush2.msra.mxu0 0.0
  %1845 = vmatprep.subr.mxu0 0.0
  %1846 = vmatpush2.msra.mxu0 0.0
  %1847 = vmatprep.subr.mxu0 0.0
  %1848 = vmatpush2.msra.mxu0 0.0
  %1849 = vmatprep.subr.mxu0 0.0
  %1850 = vmatpush2.msra.mxu0 0.0
  %1851 = vmatprep.subr.mxu0 0.0
  %1852 = vmatpush2.msra.mxu0 0.0
  %1853 = vmatprep.subr.mxu0 0.0
  %1854 = vmatpush2.msra.mxu0 0.0
  %1855 = vmatprep.subr.mxu0 0.0
  %1856 = vmatpush2.msra.mxu0 0.0
  %1857 = vmatprep.subr.mxu0 0.0
  %1858 = vmatpush2.msra.mxu0 0.0
  %1859 = vmatprep.subr.mxu0 0.0
  %1860 = vmatpush2.msra.mxu0 0.0
  %1861 = vmatprep.mubr.f32.mxu0 0.0
  %1862 = vmatmul.mubr.f32.gmra.mxu0 %v1786
  %v1863 = vpop.f32.mrf.mxu0
  %v1864 = vadd.f32 0.0, %v1863
  %v1865 = vpop.f32.mrf.mxu0
  %v1866 = vadd.f32 0.0, %v1865
  %1867 = vmatprep.mubr.f32.mxu0 0.0
  %1868 = vmatmul.mubr.f32.gmra.mxu0 %v1789
  %v1869 = vpop.f32.mrf.mxu0
  %v1870 = vadd.f32 0.0, %v1869
  %v1871 = vpop.f32.mrf.mxu0
  %v1872 = vadd.f32 0.0, %v1871
  %1873 = vmatprep.mubr.f32.mxu0 0.0
  %1874 = vmatmul.mubr.f32.gmra.mxu0 %v1792
  %v1875 = vpop.f32.mrf.mxu0
  %v1876 = vadd.f32 0.0, %v1875
  %v1877 = vpop.f32.mrf.mxu0
  %v1878 = vadd.f32 0.0, %v1877
  %1879 = vmatprep.mubr.f32.mxu0 0.0
  %1880 = vmatmul.mubr.f32.gmra.mxu0 %v1795
  %v1881 = vpop.f32.mrf.mxu0
  %v1882 = vadd.f32 0.0, %v1881
  %v1883 = vpop.f32.mrf.mxu0
  %v1884 = vadd.f32 0.0, %v1883
  %1885 = vdwg.mxu0
  %1886 = vxpose.xlu0.b32.start [1/16] %v1468, 128
  %1887 = vxpose.xlu0.b32.cont [2/16] %v1473, 128
  %1888 = vxpose.xlu0.b32.cont [3/16] %v1478, 128
  %1889 = vxpose.xlu0.b32.cont [4/16] %v1483, 128
  %1890 = vxpose.xlu0.b32.cont [5/16] 0.0, 128
  %1891 = vxpose.xlu0.b32.cont [6/16] 0.0, 128
  %1892 = vxpose.xlu0.b32.cont [7/16] 0.0, 128
  %1893 = vxpose.xlu0.b32.cont [8/16] 0.0, 128
  %1894 = vxpose.xlu0.b32.cont [9/16] 0.0, 128
  %1895 = vxpose.xlu0.b32.cont [10/16] 0.0, 128
  %1896 = vxpose.xlu0.b32.cont [11/16] 0.0, 128
  %1897 = vxpose.xlu0.b32.cont [12/16] 0.0, 128
  %1898 = vxpose.xlu0.b32.cont [13/16] 0.0, 128
  %1899 = vxpose.xlu0.b32.cont [14/16] 0.0, 128
  %1900 = vxpose.xlu0.b32.cont [15/16] 0.0, 128
  %1901 = vxpose.xlu0.b32.end [16/16] 0.0, 128
  %v1902 = vpop.trf.xlu0
  %v1903 = vpop.trf.xlu0
  %v1904 = vpop.trf.xlu0
  %v1905 = vpop.trf.xlu0
  %v1906 = vpop.trf.xlu0
  %v1907 = vpop.trf.xlu0
  %v1908 = vpop.trf.xlu0
  %v1909 = vpop.trf.xlu0
  %v1910 = vpop.trf.xlu0
  %v1911 = vpop.trf.xlu0
  %v1912 = vpop.trf.xlu0
  %v1913 = vpop.trf.xlu0
  %v1914 = vpop.trf.xlu0
  %v1915 = vpop.trf.xlu0
  %v1916 = vpop.trf.xlu0
  %v1917 = vpop.trf.xlu0
  %v1919 = vsel %vm1518, %v1902, 0
  %v1922 = vsel %vm1518, %v1903, 0
  %v1925 = vsel %vm1518, %v1904, 0
  %v1928 = vsel %vm1518, %v1905, 0
  %1930 = vmatprep.subr.mxu0 0.0
  %1931 = vmatpush1.msra.mxu0 0.0
  %1932 = vmatprep.subr.mxu0 0.0
  %1933 = vmatpush1.msra.mxu0 0.0
  %1934 = vmatprep.subr.mxu0 0.0
  %1935 = vmatpush1.msra.mxu0 0.0
  %1936 = vmatprep.subr.mxu0 0.0
  %1937 = vmatpush1.msra.mxu0 0.0
  %1938 = vmatprep.subr.mxu0 0.0
  %1939 = vmatpush1.msra.mxu0 0.0
  %1940 = vmatprep.subr.mxu0 0.0
  %1941 = vmatpush1.msra.mxu0 0.0
  %1942 = vmatprep.subr.mxu0 0.0
  %1943 = vmatpush1.msra.mxu0 0.0
  %1944 = vmatprep.subr.mxu0 0.0
  %1945 = vmatpush1.msra.mxu0 0.0
  %1946 = vmatprep.subr.mxu0 0.0
  %1947 = vmatpush1.msra.mxu0 0.0
  %1948 = vmatprep.subr.mxu0 0.0
  %1949 = vmatpush1.msra.mxu0 0.0
  %1950 = vmatprep.subr.mxu0 0.0
  %1951 = vmatpush1.msra.mxu0 0.0
  %1952 = vmatprep.subr.mxu0 0.0
  %1953 = vmatpush1.msra.mxu0 0.0
  %1954 = vmatprep.subr.mxu0 %v905
  %1955 = vmatpush1.msra.mxu0 %v904
  %1956 = vmatprep.subr.mxu0 %v903
  %1957 = vmatpush1.msra.mxu0 %v902
  %1958 = vmatprep.subr.mxu0 %v901
  %1959 = vmatpush1.msra.mxu0 %v900
  %1960 = vmatprep.subr.mxu0 %v899
  %1961 = vmatpush1.msra.mxu0 %v898
  %1962 = vmatprep.subr.mxu0 0.0
  %1963 = vmatpush2.msra.mxu0 0.0
  %1964 = vmatprep.subr.mxu0 0.0
  %1965 = vmatpush2.msra.mxu0 0.0
  %1966 = vmatprep.subr.mxu0 0.0
  %1967 = vmatpush2.msra.mxu0 0.0
  %1968 = vmatprep.subr.mxu0 0.0
  %1969 = vmatpush2.msra.mxu0 0.0
  %1970 = vmatprep.subr.mxu0 0.0
  %1971 = vmatpush2.msra.mxu0 0.0
  %1972 = vmatprep.subr.mxu0 0.0
  %1973 = vmatpush2.msra.mxu0 0.0
  %1974 = vmatprep.subr.mxu0 0.0
  %1975 = vmatpush2.msra.mxu0 0.0
  %1976 = vmatprep.subr.mxu0 0.0
  %1977 = vmatpush2.msra.mxu0 0.0
  %1978 = vmatprep.subr.mxu0 0.0
  %1979 = vmatpush2.msra.mxu0 0.0
  %1980 = vmatprep.subr.mxu0 0.0
  %1981 = vmatpush2.msra.mxu0 0.0
  %1982 = vmatprep.subr.mxu0 0.0
  %1983 = vmatpush2.msra.mxu0 0.0
  %1984 = vmatprep.subr.mxu0 0.0
  %1985 = vmatpush2.msra.mxu0 0.0
  %1986 = vmatprep.subr.mxu0 0.0
  %1987 = vmatpush2.msra.mxu0 0.0
  %1988 = vmatprep.subr.mxu0 0.0
  %1989 = vmatpush2.msra.mxu0 0.0
  %1990 = vmatprep.subr.mxu0 0.0
  %1991 = vmatpush2.msra.mxu0 0.0
  %1992 = vmatprep.subr.mxu0 0.0
  %1993 = vmatpush2.msra.mxu0 0.0
  %1994 = vmatprep.mubr.f32.mxu0 0.0
  %1995 = vmatmul.mubr.f32.gmra.mxu0 %v1919
  %v1996 = vpop.f32.mrf.mxu0
  %v1997 = vadd.f32 0.0, %v1996
  %v1998 = vpop.f32.mrf.mxu0
  %v1999 = vadd.f32 0.0, %v1998
  %2000 = vmatprep.mubr.f32.mxu0 0.0
  %2001 = vmatmul.mubr.f32.gmra.mxu0 %v1922
  %v2002 = vpop.f32.mrf.mxu0
  %v2003 = vadd.f32 0.0, %v2002
  %v2004 = vpop.f32.mrf.mxu0
  %v2005 = vadd.f32 0.0, %v2004
  %2006 = vmatprep.mubr.f32.mxu0 0.0
  %2007 = vmatmul.mubr.f32.gmra.mxu0 %v1925
  %v2008 = vpop.f32.mrf.mxu0
  %v2009 = vadd.f32 0.0, %v2008
  %v2010 = vpop.f32.mrf.mxu0
  %v2011 = vadd.f32 0.0, %v2010
  %2012 = vmatprep.mubr.f32.mxu0 0.0
  %2013 = vmatmul.mubr.f32.gmra.mxu0 %v1928
  %v2014 = vpop.f32.mrf.mxu0
  %v2015 = vadd.f32 0.0, %v2014
  %v2016 = vpop.f32.mrf.mxu0
  %v2017 = vadd.f32 0.0, %v2016
  %2018 = vdwg.mxu0
  %2020 = vset.pattern.permute.xlu0 0
  %2021 = vperm.xlu0 %2020, %v21
  %v2022 = vpop.permute.xlu0 %2021
  %2024 = vmatprep.subr.mxu0 %v2017
  %2025 = vmatpush1.msra.mxu0 %v2015
  %2026 = vmatprep.subr.mxu0 %v2011
  %2027 = vmatpush1.msra.mxu0 %v2009
  %2028 = vmatprep.subr.mxu0 %v2005
  %2029 = vmatpush1.msra.mxu0 %v2003
  %2030 = vmatprep.subr.mxu0 %v1999
  %2031 = vmatpush1.msra.mxu0 %v1997
  %2032 = vmatprep.subr.mxu0 %v1884
  %2033 = vmatpush1.msra.mxu0 %v1882
  %2034 = vmatprep.subr.mxu0 %v1878
  %2035 = vmatpush1.msra.mxu0 %v1876
  %2036 = vmatprep.subr.mxu0 %v1872
  %2037 = vmatpush1.msra.mxu0 %v1870
  %2038 = vmatprep.subr.mxu0 %v1866
  %2039 = vmatpush1.msra.mxu0 %v1864
  %2040 = vmatprep.subr.mxu0 %v1751
  %2041 = vmatpush1.msra.mxu0 %v1749
  %2042 = vmatprep.subr.mxu0 %v1745
  %2043 = vmatpush1.msra.mxu0 %v1743
  %2044 = vmatprep.subr.mxu0 %v1739
  %2045 = vmatpush1.msra.mxu0 %v1737
  %2046 = vmatprep.subr.mxu0 %v1733
  %2047 = vmatpush1.msra.mxu0 %v1731
  %2048 = vmatprep.subr.mxu0 %v1618
  %2049 = vmatpush1.msra.mxu0 %v1616
  %2050 = vmatprep.subr.mxu0 %v1612
  %2051 = vmatpush1.msra.mxu0 %v1610
  %2052 = vmatprep.subr.mxu0 %v1606
  %2053 = vmatpush1.msra.mxu0 %v1604
  %2054 = vmatprep.subr.mxu0 %v1600
  %2055 = vmatpush1.msra.mxu0 %v1598
  %2056 = vmatprep.subr.mxu0 0.0
  %2057 = vmatpush2.msra.mxu0 0.0
  %2058 = vmatprep.subr.mxu0 0.0
  %2059 = vmatpush2.msra.mxu0 0.0
  %2060 = vmatprep.subr.mxu0 0.0
  %2061 = vmatpush2.msra.mxu0 0.0
  %2062 = vmatprep.subr.mxu0 0.0
  %2063 = vmatpush2.msra.mxu0 0.0
  %2064 = vmatprep.subr.mxu0 0.0
  %2065 = vmatpush2.msra.mxu0 0.0
  %2066 = vmatprep.subr.mxu0 0.0
  %2067 = vmatpush2.msra.mxu0 0.0
  %2068 = vmatprep.subr.mxu0 0.0
  %2069 = vmatpush2.msra.mxu0 0.0
  %2070 = vmatprep.subr.mxu0 0.0
  %2071 = vmatpush2.msra.mxu0 0.0
  %2072 = vmatprep.subr.mxu0 0.0
  %2073 = vmatpush2.msra.mxu0 0.0
  %2074 = vmatprep.subr.mxu0 0.0
  %2075 = vmatpush2.msra.mxu0 0.0
  %2076 = vmatprep.subr.mxu0 0.0
  %2077 = vmatpush2.msra.mxu0 0.0
  %2078 = vmatprep.subr.mxu0 0.0
  %2079 = vmatpush2.msra.mxu0 0.0
  %2080 = vmatprep.subr.mxu0 0.0
  %2081 = vmatpush2.msra.mxu0 0.0
  %2082 = vmatprep.subr.mxu0 0.0
  %2083 = vmatpush2.msra.mxu0 0.0
  %2084 = vmatprep.subr.mxu0 0.0
  %2085 = vmatpush2.msra.mxu0 0.0
  %2086 = vmatprep.subr.mxu0 0.0
  %2087 = vmatpush2.msra.mxu0 0.0
  %2088 = vmatprep.mubr.f32.mxu0 0.0
  %2089 = vmatmul.mubr.f32.gmra.mxu0 %v20
  %v2090 = vpop.f32.mrf.mxu0
  %v2091 = vadd.f32 %v2022, %v2090
  %v2092 = vpop.f32.mrf.mxu0
  %v2093 = vadd.f32 %v2022, %v2092
  %2094 = vdwg.mxu0
  %v2095 = vadd.f32 %v2091, %v2093
  %2096 = vadd.xlane.f32.xlu0 %v2095
  %v2097 = vpop.xlane.xlu0 %2096
  %v2098 = vrot.slane %v2097, 4
  %v2099 = vadd.f32 %v2097, %v2098
  %v2100 = vrot.slane %v2099, 2
  %v2101 = vadd.f32 %v2099, %v2100
  %v2102 = vrot.slane %v2101, 1
  %v2103 = vadd.f32 %v2101, %v2102
  %s2104 = vtos %v2103
  %s2105 = smul.f32 %s2104, 0.00048828125
  %v2106 = vmul.f32 %v2091, %v2091
  %v2107 = vmul.f32 %v2093, %v2093
  %v2108 = vadd.f32 %v2106, %v2107
  %2109 = vadd.xlane.f32.xlu0 %v2108
  %v2110 = vpop.xlane.xlu0 %2109
  %v2111 = vrot.slane %v2110, 4
  %v2112 = vadd.f32 %v2110, %v2111
  %v2113 = vrot.slane %v2112, 2
  %v2114 = vadd.f32 %v2112, %v2113
  %v2115 = vrot.slane %v2114, 1
  %v2116 = vadd.f32 %v2114, %v2115
  %s2117 = vtos %v2116
  %s2118 = smul.f32 %s2117, 0.00048828125
  %s2119 = smul.f32 %s2105, %s2105
  %s2120 = ssub.f32 %s2118, %s2119
  %s2121 = sadd.f32 %s2120, 1e-05
  %v2122 = vstv %s2121
  %v2123 = vrsqrt.pop %v2122
  %s2124 = vtos %v2123
  %v2125 = vstv %s2124
  %v2126 = vmul.f32 %v21, %v2125
  %v2127 = vstv %s2105
  %v2128 = vmul.f32 %v2127, %v2126
  %2130 = vrot.lane.b32.xlu0 %v2128, 1
  %v2131 = vpop.permute.xlu0 %2130
  %v2133 = vsub.f32 %v21, %v2131
  %2135 = vset.pattern.permute.xlu0 1
  %2136 = vperm.xlu0 %2135, %v2126
  %v2137 = vpop.permute.xlu0 %2136
  %v2139 = vmul.f32 %v2091, %v2137
  %v2140 = vmul.f32 %v2093, %v2137
  %2142 = vset.pattern.permute.xlu0 2
  %2143 = vperm.xlu0 %2142, %v2133
  %v2144 = vpop.permute.xlu0 %2143
  %v2146 = vadd.f32 %v2139, %v2144
  %v2147 = vadd.f32 %v2140, %v2144
  %2148 = vst [vmem:[%s4] sm:$0xff] %v2146
  %2149 = vst [vmem:[%s4 + $0x8] sm:$0xff] %v2147
  %s2150 = scalar_lea.vmem %s0, 16
  %v2151 = vld [vmem:[%s2150] sm:$0xff]
  %v2152 = vld [vmem:[%s2150 + $0x8] sm:$0xff]
  %2153 = vmatprep.subr.mxu0 0.0
  %2154 = vmatpush1.msra.mxu0 0.0
  %2155 = vmatprep.subr.mxu0 0.0
  %2156 = vmatpush1.msra.mxu0 0.0
  %2157 = vmatprep.subr.mxu0 0.0
  %2158 = vmatpush1.msra.mxu0 0.0
  %2159 = vmatprep.subr.mxu0 0.0
  %2160 = vmatpush1.msra.mxu0 0.0
  %2161 = vmatprep.subr.mxu0 0.0
  %2162 = vmatpush1.msra.mxu0 0.0
  %2163 = vmatprep.subr.mxu0 0.0
  %2164 = vmatpush1.msra.mxu0 0.0
  %2165 = vmatprep.subr.mxu0 0.0
  %2166 = vmatpush1.msra.mxu0 0.0
  %2167 = vmatprep.subr.mxu0 0.0
  %2168 = vmatpush1.msra.mxu0 0.0
  %2169 = vmatprep.subr.mxu0 0.0
  %2170 = vmatpush1.msra.mxu0 0.0
  %2171 = vmatprep.subr.mxu0 0.0
  %2172 = vmatpush1.msra.mxu0 0.0
  %2173 = vmatprep.subr.mxu0 0.0
  %2174 = vmatpush1.msra.mxu0 0.0
  %2175 = vmatprep.subr.mxu0 0.0
  %2176 = vmatpush1.msra.mxu0 0.0
  %2177 = vmatprep.subr.mxu0 0.0
  %2178 = vmatpush1.msra.mxu0 0.0
  %2179 = vmatprep.subr.mxu0 0.0
  %2180 = vmatpush1.msra.mxu0 0.0
  %2181 = vmatprep.subr.mxu0 0.0
  %2182 = vmatpush1.msra.mxu0 0.0
  %2183 = vmatprep.subr.mxu0 %v2152
  %2184 = vmatpush1.msra.mxu0 %v2151
  %2185 = vmatprep.subr.mxu0 0.0
  %2186 = vmatpush2.msra.mxu0 0.0
  %2187 = vmatprep.subr.mxu0 0.0
  %2188 = vmatpush2.msra.mxu0 0.0
  %2189 = vmatprep.subr.mxu0 0.0
  %2190 = vmatpush2.msra.mxu0 0.0
  %2191 = vmatprep.subr.mxu0 0.0
  %2192 = vmatpush2.msra.mxu0 0.0
  %2193 = vmatprep.subr.mxu0 0.0
  %2194 = vmatpush2.msra.mxu0 0.0
  %2195 = vmatprep.subr.mxu0 0.0
  %2196 = vmatpush2.msra.mxu0 0.0
  %2197 = vmatprep.subr.mxu0 0.0
  %2198 = vmatpush2.msra.mxu0 0.0
  %2199 = vmatprep.subr.mxu0 0.0
  %2200 = vmatpush2.msra.mxu0 0.0
  %2201 = vmatprep.subr.mxu0 0.0
  %2202 = vmatpush2.msra.mxu0 0.0
  %2203 = vmatprep.subr.mxu0 0.0
  %2204 = vmatpush2.msra.mxu0 0.0
  %2205 = vmatprep.subr.mxu0 0.0
  %2206 = vmatpush2.msra.mxu0 0.0
  %2207 = vmatprep.subr.mxu0 0.0
  %2208 = vmatpush2.msra.mxu0 0.0
  %2209 = vmatprep.subr.mxu0 0.0
  %2210 = vmatpush2.msra.mxu0 0.0
  %2211 = vmatprep.subr.mxu0 0.0
  %2212 = vmatpush2.msra.mxu0 0.0
  %2213 = vmatprep.subr.mxu0 0.0
  %2214 = vmatpush2.msra.mxu0 0.0
  %2215 = vmatprep.subr.mxu0 0.0
  %2216 = vmatpush2.msra.mxu0 0.0
  %2217 = vmatprep.mubr.f32.mxu0 0.0
  %2218 = vmatmul.mubr.f32.gmra.mxu0 %v122
  %v2219 = vpop.f32.mrf.mxu0
  %v2220 = vadd.f32 0.0, %v2219
  %v2221 = vpop.f32.mrf.mxu0
  %v2222 = vadd.f32 0.0, %v2221
  %2223 = vmatprep.mubr.f32.mxu0 0.0
  %2224 = vmatmul.mubr.f32.gmra.mxu0 %v125
  %v2225 = vpop.f32.mrf.mxu0
  %v2226 = vadd.f32 0.0, %v2225
  %v2227 = vpop.f32.mrf.mxu0
  %v2228 = vadd.f32 0.0, %v2227
  %2229 = vmatprep.mubr.f32.mxu0 0.0
  %2230 = vmatmul.mubr.f32.gmra.mxu0 %v128
  %v2231 = vpop.f32.mrf.mxu0
  %v2232 = vadd.f32 0.0, %v2231
  %v2233 = vpop.f32.mrf.mxu0
  %v2234 = vadd.f32 0.0, %v2233
  %2235 = vmatprep.mubr.f32.mxu0 0.0
  %2236 = vmatmul.mubr.f32.gmra.mxu0 %v131
  %v2237 = vpop.f32.mrf.mxu0
  %v2238 = vadd.f32 0.0, %v2237
  %v2239 = vpop.f32.mrf.mxu0
  %v2240 = vadd.f32 0.0, %v2239
  %2241 = vmatprep.mubr.f32.mxu0 0.0
  %2242 = vmatmul.mubr.f32.gmra.mxu0 %v134
  %v2243 = vpop.f32.mrf.mxu0
  %v2244 = vadd.f32 0.0, %v2243
  %v2245 = vpop.f32.mrf.mxu0
  %v2246 = vadd.f32 0.0, %v2245
  %2247 = vmatprep.mubr.f32.mxu0 0.0
  %2248 = vmatmul.mubr.f32.gmra.mxu0 %v137
  %v2249 = vpop.f32.mrf.mxu0
  %v2250 = vadd.f32 0.0, %v2249
  %v2251 = vpop.f32.mrf.mxu0
  %v2252 = vadd.f32 0.0, %v2251
  %2253 = vmatprep.mubr.f32.mxu0 0.0
  %2254 = vmatmul.mubr.f32.gmra.mxu0 %v140
  %v2255 = vpop.f32.mrf.mxu0
  %v2256 = vadd.f32 0.0, %v2255
  %v2257 = vpop.f32.mrf.mxu0
  %v2258 = vadd.f32 0.0, %v2257
  %2259 = vmatprep.mubr.f32.mxu0 0.0
  %2260 = vmatmul.mubr.f32.gmra.mxu0 %v143
  %v2261 = vpop.f32.mrf.mxu0
  %v2262 = vadd.f32 0.0, %v2261
  %v2263 = vpop.f32.mrf.mxu0
  %v2264 = vadd.f32 0.0, %v2263
  %2265 = vmatprep.mubr.f32.mxu0 0.0
  %2266 = vmatmul.mubr.f32.gmra.mxu0 %v146
  %v2267 = vpop.f32.mrf.mxu0
  %v2268 = vadd.f32 0.0, %v2267
  %v2269 = vpop.f32.mrf.mxu0
  %v2270 = vadd.f32 0.0, %v2269
  %2271 = vmatprep.mubr.f32.mxu0 0.0
  %2272 = vmatmul.mubr.f32.gmra.mxu0 %v149
  %v2273 = vpop.f32.mrf.mxu0
  %v2274 = vadd.f32 0.0, %v2273
  %v2275 = vpop.f32.mrf.mxu0
  %v2276 = vadd.f32 0.0, %v2275
  %2277 = vmatprep.mubr.f32.mxu0 0.0
  %2278 = vmatmul.mubr.f32.gmra.mxu0 %v152
  %v2279 = vpop.f32.mrf.mxu0
  %v2280 = vadd.f32 0.0, %v2279
  %v2281 = vpop.f32.mrf.mxu0
  %v2282 = vadd.f32 0.0, %v2281
  %2283 = vmatprep.mubr.f32.mxu0 0.0
  %2284 = vmatmul.mubr.f32.gmra.mxu0 %v155
  %v2285 = vpop.f32.mrf.mxu0
  %v2286 = vadd.f32 0.0, %v2285
  %v2287 = vpop.f32.mrf.mxu0
  %v2288 = vadd.f32 0.0, %v2287
  %2289 = vmatprep.mubr.f32.mxu0 0.0
  %2290 = vmatmul.mubr.f32.gmra.mxu0 %v158
  %v2291 = vpop.f32.mrf.mxu0
  %v2292 = vadd.f32 0.0, %v2291
  %v2293 = vpop.f32.mrf.mxu0
  %v2294 = vadd.f32 0.0, %v2293
  %2295 = vmatprep.mubr.f32.mxu0 0.0
  %2296 = vmatmul.mubr.f32.gmra.mxu0 %v161
  %v2297 = vpop.f32.mrf.mxu0
  %v2298 = vadd.f32 0.0, %v2297
  %v2299 = vpop.f32.mrf.mxu0
  %v2300 = vadd.f32 0.0, %v2299
  %2301 = vmatprep.mubr.f32.mxu0 0.0
  %2302 = vmatmul.mubr.f32.gmra.mxu0 %v164
  %v2303 = vpop.f32.mrf.mxu0
  %v2304 = vadd.f32 0.0, %v2303
  %v2305 = vpop.f32.mrf.mxu0
  %v2306 = vadd.f32 0.0, %v2305
  %2307 = vmatprep.mubr.f32.mxu0 0.0
  %2308 = vmatmul.mubr.f32.gmra.mxu0 %v167
  %v2309 = vpop.f32.mrf.mxu0
  %v2310 = vadd.f32 0.0, %v2309
  %v2311 = vpop.f32.mrf.mxu0
  %v2312 = vadd.f32 0.0, %v2311
  %2313 = vmatprep.mubr.f32.mxu0 0.0
  %2314 = vmatmul.mubr.f32.gmra.mxu0 %v170
  %v2315 = vpop.f32.mrf.mxu0
  %v2316 = vadd.f32 0.0, %v2315
  %v2317 = vpop.f32.mrf.mxu0
  %v2318 = vadd.f32 0.0, %v2317
  %2319 = vmatprep.mubr.f32.mxu0 0.0
  %2320 = vmatmul.mubr.f32.gmra.mxu0 %v173
  %v2321 = vpop.f32.mrf.mxu0
  %v2322 = vadd.f32 0.0, %v2321
  %v2323 = vpop.f32.mrf.mxu0
  %v2324 = vadd.f32 0.0, %v2323
  %2325 = vmatprep.mubr.f32.mxu0 0.0
  %2326 = vmatmul.mubr.f32.gmra.mxu0 %v176
  %v2327 = vpop.f32.mrf.mxu0
  %v2328 = vadd.f32 0.0, %v2327
  %v2329 = vpop.f32.mrf.mxu0
  %v2330 = vadd.f32 0.0, %v2329
  %2331 = vmatprep.mubr.f32.mxu0 0.0
  %2332 = vmatmul.mubr.f32.gmra.mxu0 %v179
  %v2333 = vpop.f32.mrf.mxu0
  %v2334 = vadd.f32 0.0, %v2333
  %v2335 = vpop.f32.mrf.mxu0
  %v2336 = vadd.f32 0.0, %v2335
  %2337 = vmatprep.mubr.f32.mxu0 0.0
  %2338 = vmatmul.mubr.f32.gmra.mxu0 %v182
  %v2339 = vpop.f32.mrf.mxu0
  %v2340 = vadd.f32 0.0, %v2339
  %v2341 = vpop.f32.mrf.mxu0
  %v2342 = vadd.f32 0.0, %v2341
  %2343 = vmatprep.mubr.f32.mxu0 0.0
  %2344 = vmatmul.mubr.f32.gmra.mxu0 %v185
  %v2345 = vpop.f32.mrf.mxu0
  %v2346 = vadd.f32 0.0, %v2345
  %v2347 = vpop.f32.mrf.mxu0
  %v2348 = vadd.f32 0.0, %v2347
  %2349 = vmatprep.mubr.f32.mxu0 0.0
  %2350 = vmatmul.mubr.f32.gmra.mxu0 %v188
  %v2351 = vpop.f32.mrf.mxu0
  %v2352 = vadd.f32 0.0, %v2351
  %v2353 = vpop.f32.mrf.mxu0
  %v2354 = vadd.f32 0.0, %v2353
  %2355 = vmatprep.mubr.f32.mxu0 0.0
  %2356 = vmatmul.mubr.f32.gmra.mxu0 %v191
  %v2357 = vpop.f32.mrf.mxu0
  %v2358 = vadd.f32 0.0, %v2357
  %v2359 = vpop.f32.mrf.mxu0
  %v2360 = vadd.f32 0.0, %v2359
  %2361 = vmatprep.mubr.f32.mxu0 0.0
  %2362 = vmatmul.mubr.f32.gmra.mxu0 %v194
  %v2363 = vpop.f32.mrf.mxu0
  %v2364 = vadd.f32 0.0, %v2363
  %v2365 = vpop.f32.mrf.mxu0
  %v2366 = vadd.f32 0.0, %v2365
  %2367 = vmatprep.mubr.f32.mxu0 0.0
  %2368 = vmatmul.mubr.f32.gmra.mxu0 %v197
  %v2369 = vpop.f32.mrf.mxu0
  %v2370 = vadd.f32 0.0, %v2369
  %v2371 = vpop.f32.mrf.mxu0
  %v2372 = vadd.f32 0.0, %v2371
  %2373 = vmatprep.mubr.f32.mxu0 0.0
  %2374 = vmatmul.mubr.f32.gmra.mxu0 %v200
  %v2375 = vpop.f32.mrf.mxu0
  %v2376 = vadd.f32 0.0, %v2375
  %v2377 = vpop.f32.mrf.mxu0
  %v2378 = vadd.f32 0.0, %v2377
  %2379 = vmatprep.mubr.f32.mxu0 0.0
  %2380 = vmatmul.mubr.f32.gmra.mxu0 %v203
  %v2381 = vpop.f32.mrf.mxu0
  %v2382 = vadd.f32 0.0, %v2381
  %v2383 = vpop.f32.mrf.mxu0
  %v2384 = vadd.f32 0.0, %v2383
  %2385 = vmatprep.mubr.f32.mxu0 0.0
  %2386 = vmatmul.mubr.f32.gmra.mxu0 %v206
  %v2387 = vpop.f32.mrf.mxu0
  %v2388 = vadd.f32 0.0, %v2387
  %v2389 = vpop.f32.mrf.mxu0
  %v2390 = vadd.f32 0.0, %v2389
  %2391 = vmatprep.mubr.f32.mxu0 0.0
  %2392 = vmatmul.mubr.f32.gmra.mxu0 %v209
  %v2393 = vpop.f32.mrf.mxu0
  %v2394 = vadd.f32 0.0, %v2393
  %v2395 = vpop.f32.mrf.mxu0
  %v2396 = vadd.f32 0.0, %v2395
  %2397 = vmatprep.mubr.f32.mxu0 0.0
  %2398 = vmatmul.mubr.f32.gmra.mxu0 %v212
  %v2399 = vpop.f32.mrf.mxu0
  %v2400 = vadd.f32 0.0, %v2399
  %v2401 = vpop.f32.mrf.mxu0
  %v2402 = vadd.f32 0.0, %v2401
  %2403 = vmatprep.mubr.f32.mxu0 0.0
  %2404 = vmatmul.mubr.f32.gmra.mxu0 %v215
  %v2405 = vpop.f32.mrf.mxu0
  %v2406 = vadd.f32 0.0, %v2405
  %v2407 = vpop.f32.mrf.mxu0
  %v2408 = vadd.f32 0.0, %v2407
  %2409 = vmatprep.mubr.f32.mxu0 0.0
  %2410 = vmatmul.mubr.f32.gmra.mxu0 %v218
  %v2411 = vpop.f32.mrf.mxu0
  %v2412 = vadd.f32 0.0, %v2411
  %v2413 = vpop.f32.mrf.mxu0
  %v2414 = vadd.f32 0.0, %v2413
  %2415 = vmatprep.mubr.f32.mxu0 0.0
  %2416 = vmatmul.mubr.f32.gmra.mxu0 %v221
  %v2417 = vpop.f32.mrf.mxu0
  %v2418 = vadd.f32 0.0, %v2417
  %v2419 = vpop.f32.mrf.mxu0
  %v2420 = vadd.f32 0.0, %v2419
  %2421 = vmatprep.mubr.f32.mxu0 0.0
  %2422 = vmatmul.mubr.f32.gmra.mxu0 %v224
  %v2423 = vpop.f32.mrf.mxu0
  %v2424 = vadd.f32 0.0, %v2423
  %v2425 = vpop.f32.mrf.mxu0
  %v2426 = vadd.f32 0.0, %v2425
  %2427 = vmatprep.mubr.f32.mxu0 0.0
  %2428 = vmatmul.mubr.f32.gmra.mxu0 %v227
  %v2429 = vpop.f32.mrf.mxu0
  %v2430 = vadd.f32 0.0, %v2429
  %v2431 = vpop.f32.mrf.mxu0
  %v2432 = vadd.f32 0.0, %v2431
  %2433 = vmatprep.mubr.f32.mxu0 0.0
  %2434 = vmatmul.mubr.f32.gmra.mxu0 %v230
  %v2435 = vpop.f32.mrf.mxu0
  %v2436 = vadd.f32 0.0, %v2435
  %v2437 = vpop.f32.mrf.mxu0
  %v2438 = vadd.f32 0.0, %v2437
  %2439 = vmatprep.mubr.f32.mxu0 0.0
  %2440 = vmatmul.mubr.f32.gmra.mxu0 %v233
  %v2441 = vpop.f32.mrf.mxu0
  %v2442 = vadd.f32 0.0, %v2441
  %v2443 = vpop.f32.mrf.mxu0
  %v2444 = vadd.f32 0.0, %v2443
  %2445 = vmatprep.mubr.f32.mxu0 0.0
  %2446 = vmatmul.mubr.f32.gmra.mxu0 %v236
  %v2447 = vpop.f32.mrf.mxu0
  %v2448 = vadd.f32 0.0, %v2447
  %v2449 = vpop.f32.mrf.mxu0
  %v2450 = vadd.f32 0.0, %v2449
  %2451 = vmatprep.mubr.f32.mxu0 0.0
  %2452 = vmatmul.mubr.f32.gmra.mxu0 %v239
  %v2453 = vpop.f32.mrf.mxu0
  %v2454 = vadd.f32 0.0, %v2453
  %v2455 = vpop.f32.mrf.mxu0
  %v2456 = vadd.f32 0.0, %v2455
  %2457 = vmatprep.mubr.f32.mxu0 0.0
  %2458 = vmatmul.mubr.f32.gmra.mxu0 %v242
  %v2459 = vpop.f32.mrf.mxu0
  %v2460 = vadd.f32 0.0, %v2459
  %v2461 = vpop.f32.mrf.mxu0
  %v2462 = vadd.f32 0.0, %v2461
  %2463 = vmatprep.mubr.f32.mxu0 0.0
  %2464 = vmatmul.mubr.f32.gmra.mxu0 %v245
  %v2465 = vpop.f32.mrf.mxu0
  %v2466 = vadd.f32 0.0, %v2465
  %v2467 = vpop.f32.mrf.mxu0
  %v2468 = vadd.f32 0.0, %v2467
  %2469 = vmatprep.mubr.f32.mxu0 0.0
  %2470 = vmatmul.mubr.f32.gmra.mxu0 %v248
  %v2471 = vpop.f32.mrf.mxu0
  %v2472 = vadd.f32 0.0, %v2471
  %v2473 = vpop.f32.mrf.mxu0
  %v2474 = vadd.f32 0.0, %v2473
  %2475 = vmatprep.mubr.f32.mxu0 0.0
  %2476 = vmatmul.mubr.f32.gmra.mxu0 %v251
  %v2477 = vpop.f32.mrf.mxu0
  %v2478 = vadd.f32 0.0, %v2477
  %v2479 = vpop.f32.mrf.mxu0
  %v2480 = vadd.f32 0.0, %v2479
  %2481 = vmatprep.mubr.f32.mxu0 0.0
  %2482 = vmatmul.mubr.f32.gmra.mxu0 %v254
  %v2483 = vpop.f32.mrf.mxu0
  %v2484 = vadd.f32 0.0, %v2483
  %v2485 = vpop.f32.mrf.mxu0
  %v2486 = vadd.f32 0.0, %v2485
  %2487 = vmatprep.mubr.f32.mxu0 0.0
  %2488 = vmatmul.mubr.f32.gmra.mxu0 %v257
  %v2489 = vpop.f32.mrf.mxu0
  %v2490 = vadd.f32 0.0, %v2489
  %v2491 = vpop.f32.mrf.mxu0
  %v2492 = vadd.f32 0.0, %v2491
  %2493 = vmatprep.mubr.f32.mxu0 0.0
  %2494 = vmatmul.mubr.f32.gmra.mxu0 %v260
  %v2495 = vpop.f32.mrf.mxu0
  %v2496 = vadd.f32 0.0, %v2495
  %v2497 = vpop.f32.mrf.mxu0
  %v2498 = vadd.f32 0.0, %v2497
  %2499 = vmatprep.mubr.f32.mxu0 0.0
  %2500 = vmatmul.mubr.f32.gmra.mxu0 %v263
  %v2501 = vpop.f32.mrf.mxu0
  %v2502 = vadd.f32 0.0, %v2501
  %v2503 = vpop.f32.mrf.mxu0
  %v2504 = vadd.f32 0.0, %v2503
  %2505 = vdwg.mxu0
  %v2506 = vmax.f32 %v2220, %v2226
  %v2507 = vmax.f32 %v2506, %v2232
  %v2508 = vmax.f32 %v2507, %v2238
  %v2509 = vrot.slane %v2508, 4
  %v2510 = vmax.f32 %v2508, %v2509
  %v2511 = vrot.slane %v2510, 2
  %v2512 = vmax.f32 %v2510, %v2511
  %v2513 = vrot.slane %v2512, 1
  %v2514 = vmax.f32 %v2512, %v2513
  %v2515 = vmax.f32 %v2222, %v2228
  %v2516 = vmax.f32 %v2515, %v2234
  %v2517 = vmax.f32 %v2516, %v2240
  %v2518 = vrot.slane %v2517, 4
  %v2519 = vmax.f32 %v2517, %v2518
  %v2520 = vrot.slane %v2519, 2
  %v2521 = vmax.f32 %v2519, %v2520
  %v2522 = vrot.slane %v2521, 1
  %v2523 = vmax.f32 %v2521, %v2522
  %v2524 = vmax.f32 %v2244, %v2250
  %v2525 = vmax.f32 %v2524, %v2256
  %v2526 = vmax.f32 %v2525, %v2262
  %v2527 = vrot.slane %v2526, 4
  %v2528 = vmax.f32 %v2526, %v2527
  %v2529 = vrot.slane %v2528, 2
  %v2530 = vmax.f32 %v2528, %v2529
  %v2531 = vrot.slane %v2530, 1
  %v2532 = vmax.f32 %v2530, %v2531
  %v2533 = vmax.f32 %v2246, %v2252
  %v2534 = vmax.f32 %v2533, %v2258
  %v2535 = vmax.f32 %v2534, %v2264
  %v2536 = vrot.slane %v2535, 4
  %v2537 = vmax.f32 %v2535, %v2536
  %v2538 = vrot.slane %v2537, 2
  %v2539 = vmax.f32 %v2537, %v2538
  %v2540 = vrot.slane %v2539, 1
  %v2541 = vmax.f32 %v2539, %v2540
  %v2542 = vmax.f32 %v2268, %v2274
  %v2543 = vmax.f32 %v2542, %v2280
  %v2544 = vmax.f32 %v2543, %v2286
  %v2545 = vrot.slane %v2544, 4
  %v2546 = vmax.f32 %v2544, %v2545
  %v2547 = vrot.slane %v2546, 2
  %v2548 = vmax.f32 %v2546, %v2547
  %v2549 = vrot.slane %v2548, 1
  %v2550 = vmax.f32 %v2548, %v2549
  %v2551 = vmax.f32 %v2270, %v2276
  %v2552 = vmax.f32 %v2551, %v2282
  %v2553 = vmax.f32 %v2552, %v2288
  %v2554 = vrot.slane %v2553, 4
  %v2555 = vmax.f32 %v2553, %v2554
  %v2556 = vrot.slane %v2555, 2
  %v2557 = vmax.f32 %v2555, %v2556
  %v2558 = vrot.slane %v2557, 1
  %v2559 = vmax.f32 %v2557, %v2558
  %v2560 = vmax.f32 %v2292, %v2298
  %v2561 = vmax.f32 %v2560, %v2304
  %v2562 = vmax.f32 %v2561, %v2310
  %v2563 = vrot.slane %v2562, 4
  %v2564 = vmax.f32 %v2562, %v2563
  %v2565 = vrot.slane %v2564, 2
  %v2566 = vmax.f32 %v2564, %v2565
  %v2567 = vrot.slane %v2566, 1
  %v2568 = vmax.f32 %v2566, %v2567
  %v2569 = vmax.f32 %v2294, %v2300
  %v2570 = vmax.f32 %v2569, %v2306
  %v2571 = vmax.f32 %v2570, %v2312
  %v2572 = vrot.slane %v2571, 4
  %v2573 = vmax.f32 %v2571, %v2572
  %v2574 = vrot.slane %v2573, 2
  %v2575 = vmax.f32 %v2573, %v2574
  %v2576 = vrot.slane %v2575, 1
  %v2577 = vmax.f32 %v2575, %v2576
  %v2578 = vsub.f32 %v2220, %v2514
  %v2579 = vsub.f32 %v2222, %v2523
  %v2580 = vsub.f32 %v2226, %v2514
  %v2581 = vsub.f32 %v2228, %v2523
  %v2582 = vsub.f32 %v2232, %v2514
  %v2583 = vsub.f32 %v2234, %v2523
  %v2584 = vsub.f32 %v2238, %v2514
  %v2585 = vsub.f32 %v2240, %v2523
  %v2586 = vsub.f32 %v2244, %v2532
  %v2587 = vsub.f32 %v2246, %v2541
  %v2588 = vsub.f32 %v2250, %v2532
  %v2589 = vsub.f32 %v2252, %v2541
  %v2590 = vsub.f32 %v2256, %v2532
  %v2591 = vsub.f32 %v2258, %v2541
  %v2592 = vsub.f32 %v2262, %v2532
  %v2593 = vsub.f32 %v2264, %v2541
  %v2594 = vsub.f32 %v2268, %v2550
  %v2595 = vsub.f32 %v2270, %v2559
  %v2596 = vsub.f32 %v2274, %v2550
  %v2597 = vsub.f32 %v2276, %v2559
  %v2598 = vsub.f32 %v2280, %v2550
  %v2599 = vsub.f32 %v2282, %v2559
  %v2600 = vsub.f32 %v2286, %v2550
  %v2601 = vsub.f32 %v2288, %v2559
  %v2602 = vsub.f32 %v2292, %v2568
  %v2603 = vsub.f32 %v2294, %v2577
  %v2604 = vsub.f32 %v2298, %v2568
  %v2605 = vsub.f32 %v2300, %v2577
  %v2606 = vsub.f32 %v2304, %v2568
  %v2607 = vsub.f32 %v2306, %v2577
  %v2608 = vsub.f32 %v2310, %v2568
  %v2609 = vsub.f32 %v2312, %v2577
  %v2610 = vmul.f32 %v2578, 1.442695
  %v2611 = vpow.pop %v2610
  %v2612 = vmul.f32 %v2579, 1.442695
  %v2613 = vpow.pop %v2612
  %v2614 = vmul.f32 %v2580, 1.442695
  %v2615 = vpow.pop %v2614
  %v2616 = vmul.f32 %v2581, 1.442695
  %v2617 = vpow.pop %v2616
  %v2618 = vmul.f32 %v2582, 1.442695
  %v2619 = vpow.pop %v2618
  %v2620 = vmul.f32 %v2583, 1.442695
  %v2621 = vpow.pop %v2620
  %v2622 = vmul.f32 %v2584, 1.442695
  %v2623 = vpow.pop %v2622
  %v2624 = vmul.f32 %v2585, 1.442695
  %v2625 = vpow.pop %v2624
  %v2626 = vmul.f32 %v2586, 1.442695
  %v2627 = vpow.pop %v2626
  %v2628 = vmul.f32 %v2587, 1.442695
  %v2629 = vpow.pop %v2628
  %v2630 = vmul.f32 %v2588, 1.442695
  %v2631 = vpow.pop %v2630
  %v2632 = vmul.f32 %v2589, 1.442695
  %v2633 = vpow.pop %v2632
  %v2634 = vmul.f32 %v2590, 1.442695
  %v2635 = vpow.pop %v2634
  %v2636 = vmul.f32 %v2591, 1.442695
  %v2637 = vpow.pop %v2636
  %v2638 = vmul.f32 %v2592, 1.442695
  %v2639 = vpow.pop %v2638
  %v2640 = vmul.f32 %v2593, 1.442695
  %v2641 = vpow.pop %v2640
  %v2642 = vmul.f32 %v2594, 1.442695
  %v2643 = vpow.pop %v2642
  %v2644 = vmul.f32 %v2595, 1.442695
  %v2645 = vpow.pop %v2644
  %v2646 = vmul.f32 %v2596, 1.442695
  %v2647 = vpow.pop %v2646
  %v2648 = vmul.f32 %v2597, 1.442695
  %v2649 = vpow.pop %v2648
  %v2650 = vmul.f32 %v2598, 1.442695
  %v2651 = vpow.pop %v2650
  %v2652 = vmul.f32 %v2599, 1.442695
  %v2653 = vpow.pop %v2652
  %v2654 = vmul.f32 %v2600, 1.442695
  %v2655 = vpow.pop %v2654
  %v2656 = vmul.f32 %v2601, 1.442695
  %v2657 = vpow.pop %v2656
  %v2658 = vmul.f32 %v2602, 1.442695
  %v2659 = vpow.pop %v2658
  %v2660 = vmul.f32 %v2603, 1.442695
  %v2661 = vpow.pop %v2660
  %v2662 = vmul.f32 %v2604, 1.442695
  %v2663 = vpow.pop %v2662
  %v2664 = vmul.f32 %v2605, 1.442695
  %v2665 = vpow.pop %v2664
  %v2666 = vmul.f32 %v2606, 1.442695
  %v2667 = vpow.pop %v2666
  %v2668 = vmul.f32 %v2607, 1.442695
  %v2669 = vpow.pop %v2668
  %v2670 = vmul.f32 %v2608, 1.442695
  %v2671 = vpow.pop %v2670
  %v2672 = vmul.f32 %v2609, 1.442695
  %v2673 = vpow.pop %v2672
  %v2674 = vadd.f32 %v2611, %v2615
  %v2675 = vadd.f32 %v2674, %v2619
  %v2676 = vadd.f32 %v2675, %v2623
  %v2677 = vrot.slane %v2676, 4
  %v2678 = vadd.f32 %v2676, %v2677
  %v2679 = vrot.slane %v2678, 2
  %v2680 = vadd.f32 %v2678, %v2679
  %v2681 = vrot.slane %v2680, 1
  %v2682 = vadd.f32 %v2680, %v2681
  %v2683 = vadd.f32 %v2613, %v2617
  %v2684 = vadd.f32 %v2683, %v2621
  %v2685 = vadd.f32 %v2684, %v2625
  %v2686 = vrot.slane %v2685, 4
  %v2687 = vadd.f32 %v2685, %v2686
  %v2688 = vrot.slane %v2687, 2
  %v2689 = vadd.f32 %v2687, %v2688
  %v2690 = vrot.slane %v2689, 1
  %v2691 = vadd.f32 %v2689, %v2690
  %v2692 = vadd.f32 %v2627, %v2631
  %v2693 = vadd.f32 %v2692, %v2635
  %v2694 = vadd.f32 %v2693, %v2639
  %v2695 = vrot.slane %v2694, 4
  %v2696 = vadd.f32 %v2694, %v2695
  %v2697 = vrot.slane %v2696, 2
  %v2698 = vadd.f32 %v2696, %v2697
  %v2699 = vrot.slane %v2698, 1
  %v2700 = vadd.f32 %v2698, %v2699
  %v2701 = vadd.f32 %v2629, %v2633
  %v2702 = vadd.f32 %v2701, %v2637
  %v2703 = vadd.f32 %v2702, %v2641
  %v2704 = vrot.slane %v2703, 4
  %v2705 = vadd.f32 %v2703, %v2704
  %v2706 = vrot.slane %v2705, 2
  %v2707 = vadd.f32 %v2705, %v2706
  %v2708 = vrot.slane %v2707, 1
  %v2709 = vadd.f32 %v2707, %v2708
  %v2710 = vadd.f32 %v2643, %v2647
  %v2711 = vadd.f32 %v2710, %v2651
  %v2712 = vadd.f32 %v2711, %v2655
  %v2713 = vrot.slane %v2712, 4
  %v2714 = vadd.f32 %v2712, %v2713
  %v2715 = vrot.slane %v2714, 2
  %v2716 = vadd.f32 %v2714, %v2715
  %v2717 = vrot.slane %v2716, 1
  %v2718 = vadd.f32 %v2716, %v2717
  %v2719 = vadd.f32 %v2645, %v2649
  %v2720 = vadd.f32 %v2719, %v2653
  %v2721 = vadd.f32 %v2720, %v2657
  %v2722 = vrot.slane %v2721, 4
  %v2723 = vadd.f32 %v2721, %v2722
  %v2724 = vrot.slane %v2723, 2
  %v2725 = vadd.f32 %v2723, %v2724
  %v2726 = vrot.slane %v2725, 1
  %v2727 = vadd.f32 %v2725, %v2726
  %v2728 = vadd.f32 %v2659, %v2663
  %v2729 = vadd.f32 %v2728, %v2667
  %v2730 = vadd.f32 %v2729, %v2671
  %v2731 = vrot.slane %v2730, 4
  %v2732 = vadd.f32 %v2730, %v2731
  %v2733 = vrot.slane %v2732, 2
  %v2734 = vadd.f32 %v2732, %v2733
  %v2735 = vrot.slane %v2734, 1
  %v2736 = vadd.f32 %v2734, %v2735
  %v2737 = vadd.f32 %v2661, %v2665
  %v2738 = vadd.f32 %v2737, %v2669
  %v2739 = vadd.f32 %v2738, %v2673
  %v2740 = vrot.slane %v2739, 4
  %v2741 = vadd.f32 %v2739, %v2740
  %v2742 = vrot.slane %v2741, 2
  %v2743 = vadd.f32 %v2741, %v2742
  %v2744 = vrot.slane %v2743, 1
  %v2745 = vadd.f32 %v2743, %v2744
  %v2746 = vrcp.pop %v2682
  %v2747 = vrcp.pop %v2691
  %v2748 = vrcp.pop %v2700
  %v2749 = vrcp.pop %v2709
  %v2750 = vrcp.pop %v2718
  %v2751 = vrcp.pop %v2727
  %v2752 = vrcp.pop %v2736
  %v2753 = vrcp.pop %v2745
  %v2754 = vmul.f32 %v2746, 0.17677669
  %v2755 = vmul.f32 %v2747, 0.17677669
  %v2756 = vmul.f32 %v2748, 0.17677669
  %v2757 = vmul.f32 %v2749, 0.17677669
  %v2758 = vmul.f32 %v2750, 0.17677669
  %v2759 = vmul.f32 %v2751, 0.17677669
  %v2760 = vmul.f32 %v2752, 0.17677669
  %v2761 = vmul.f32 %v2753, 0.17677669
  %v2762 = vmul.f32 %v2611, %v2754
  %v2763 = vmul.f32 %v2613, %v2755
  %v2764 = vmul.f32 %v2615, %v2754
  %v2765 = vmul.f32 %v2617, %v2755
  %v2766 = vmul.f32 %v2619, %v2754
  %v2767 = vmul.f32 %v2621, %v2755
  %v2768 = vmul.f32 %v2623, %v2754
  %v2769 = vmul.f32 %v2625, %v2755
  %v2770 = vmul.f32 %v2627, %v2756
  %v2771 = vmul.f32 %v2629, %v2757
  %v2772 = vmul.f32 %v2631, %v2756
  %v2773 = vmul.f32 %v2633, %v2757
  %v2774 = vmul.f32 %v2635, %v2756
  %v2775 = vmul.f32 %v2637, %v2757
  %v2776 = vmul.f32 %v2639, %v2756
  %v2777 = vmul.f32 %v2641, %v2757
  %v2778 = vmul.f32 %v2643, %v2758
  %v2779 = vmul.f32 %v2645, %v2759
  %v2780 = vmul.f32 %v2647, %v2758
  %v2781 = vmul.f32 %v2649, %v2759
  %v2782 = vmul.f32 %v2651, %v2758
  %v2783 = vmul.f32 %v2653, %v2759
  %v2784 = vmul.f32 %v2655, %v2758
  %v2785 = vmul.f32 %v2657, %v2759
  %v2786 = vmul.f32 %v2659, %v2760
  %v2787 = vmul.f32 %v2661, %v2761
  %v2788 = vmul.f32 %v2663, %v2760
  %v2789 = vmul.f32 %v2665, %v2761
  %v2790 = vmul.f32 %v2667, %v2760
  %v2791 = vmul.f32 %v2669, %v2761
  %v2792 = vmul.f32 %v2671, %v2760
  %v2793 = vmul.f32 %v2673, %v2761
  %v2794 = vmax.f32 %v2316, %v2318
  %2795 = vmax.xlane.f32.xlu0 %v2794
  %v2796 = vpop.xlane.xlu0 %2795
  %v2797 = vmax.f32 %v2322, %v2324
  %2798 = vmax.xlane.f32.xlu0 %v2797
  %v2799 = vpop.xlane.xlu0 %2798
  %v2800 = vmax.f32 %v2328, %v2330
  %2801 = vmax.xlane.f32.xlu0 %v2800
  %v2802 = vpop.xlane.xlu0 %2801
  %v2803 = vmax.f32 %v2334, %v2336
  %2804 = vmax.xlane.f32.xlu0 %v2803
  %v2805 = vpop.xlane.xlu0 %2804
  %v2806 = vmax.f32 %v2340, %v2342
  %2807 = vmax.xlane.f32.xlu0 %v2806
  %v2808 = vpop.xlane.xlu0 %2807
  %v2809 = vmax.f32 %v2346, %v2348
  %2810 = vmax.xlane.f32.xlu0 %v2809
  %v2811 = vpop.xlane.xlu0 %2810
  %v2812 = vmax.f32 %v2352, %v2354
  %2813 = vmax.xlane.f32.xlu0 %v2812
  %v2814 = vpop.xlane.xlu0 %2813
  %v2815 = vmax.f32 %v2358, %v2360
  %2816 = vmax.xlane.f32.xlu0 %v2815
  %v2817 = vpop.xlane.xlu0 %2816
  %v2818 = vmax.f32 %v2364, %v2366
  %2819 = vmax.xlane.f32.xlu0 %v2818
  %v2820 = vpop.xlane.xlu0 %2819
  %v2821 = vmax.f32 %v2370, %v2372
  %2822 = vmax.xlane.f32.xlu0 %v2821
  %v2823 = vpop.xlane.xlu0 %2822
  %v2824 = vmax.f32 %v2376, %v2378
  %2825 = vmax.xlane.f32.xlu0 %v2824
  %v2826 = vpop.xlane.xlu0 %2825
  %v2827 = vmax.f32 %v2382, %v2384
  %2828 = vmax.xlane.f32.xlu0 %v2827
  %v2829 = vpop.xlane.xlu0 %2828
  %v2830 = vmax.f32 %v2388, %v2390
  %2831 = vmax.xlane.f32.xlu0 %v2830
  %v2832 = vpop.xlane.xlu0 %2831
  %v2833 = vmax.f32 %v2394, %v2396
  %2834 = vmax.xlane.f32.xlu0 %v2833
  %v2835 = vpop.xlane.xlu0 %2834
  %v2836 = vmax.f32 %v2400, %v2402
  %2837 = vmax.xlane.f32.xlu0 %v2836
  %v2838 = vpop.xlane.xlu0 %2837
  %v2839 = vmax.f32 %v2406, %v2408
  %2840 = vmax.xlane.f32.xlu0 %v2839
  %v2841 = vpop.xlane.xlu0 %2840
  %v2842 = vsub.f32 %v2316, %v2796
  %v2843 = vsub.f32 %v2318, %v2796
  %v2844 = vsub.f32 %v2322, %v2799
  %v2845 = vsub.f32 %v2324, %v2799
  %v2846 = vsub.f32 %v2328, %v2802
  %v2847 = vsub.f32 %v2330, %v2802
  %v2848 = vsub.f32 %v2334, %v2805
  %v2849 = vsub.f32 %v2336, %v2805
  %v2850 = vsub.f32 %v2340, %v2808
  %v2851 = vsub.f32 %v2342, %v2808
  %v2852 = vsub.f32 %v2346, %v2811
  %v2853 = vsub.f32 %v2348, %v2811
  %v2854 = vsub.f32 %v2352, %v2814
  %v2855 = vsub.f32 %v2354, %v2814
  %v2856 = vsub.f32 %v2358, %v2817
  %v2857 = vsub.f32 %v2360, %v2817
  %v2858 = vsub.f32 %v2364, %v2820
  %v2859 = vsub.f32 %v2366, %v2820
  %v2860 = vsub.f32 %v2370, %v2823
  %v2861 = vsub.f32 %v2372, %v2823
  %v2862 = vsub.f32 %v2376, %v2826
  %v2863 = vsub.f32 %v2378, %v2826
  %v2864 = vsub.f32 %v2382, %v2829
  %v2865 = vsub.f32 %v2384, %v2829
  %v2866 = vsub.f32 %v2388, %v2832
  %v2867 = vsub.f32 %v2390, %v2832
  %v2868 = vsub.f32 %v2394, %v2835
  %v2869 = vsub.f32 %v2396, %v2835
  %v2870 = vsub.f32 %v2400, %v2838
  %v2871 = vsub.f32 %v2402, %v2838
  %v2872 = vsub.f32 %v2406, %v2841
  %v2873 = vsub.f32 %v2408, %v2841
  %v2874 = vmul.f32 %v2842, 1.442695
  %v2875 = vpow.pop %v2874
  %v2876 = vmul.f32 %v2843, 1.442695
  %v2877 = vpow.pop %v2876
  %v2878 = vmul.f32 %v2844, 1.442695
  %v2879 = vpow.pop %v2878
  %v2880 = vmul.f32 %v2845, 1.442695
  %v2881 = vpow.pop %v2880
  %v2882 = vmul.f32 %v2846, 1.442695
  %v2883 = vpow.pop %v2882
  %v2884 = vmul.f32 %v2847, 1.442695
  %v2885 = vpow.pop %v2884
  %v2886 = vmul.f32 %v2848, 1.442695
  %v2887 = vpow.pop %v2886
  %v2888 = vmul.f32 %v2849, 1.442695
  %v2889 = vpow.pop %v2888
  %v2890 = vmul.f32 %v2850, 1.442695
  %v2891 = vpow.pop %v2890
  %v2892 = vmul.f32 %v2851, 1.442695
  %v2893 = vpow.pop %v2892
  %v2894 = vmul.f32 %v2852, 1.442695
  %v2895 = vpow.pop %v2894
  %v2896 = vmul.f32 %v2853, 1.442695
  %v2897 = vpow.pop %v2896
  %v2898 = vmul.f32 %v2854, 1.442695
  %v2899 = vpow.pop %v2898
  %v2900 = vmul.f32 %v2855, 1.442695
  %v2901 = vpow.pop %v2900
  %v2902 = vmul.f32 %v2856, 1.442695
  %v2903 = vpow.pop %v2902
  %v2904 = vmul.f32 %v2857, 1.442695
  %v2905 = vpow.pop %v2904
  %v2906 = vmul.f32 %v2858, 1.442695
  %v2907 = vpow.pop %v2906
  %v2908 = vmul.f32 %v2859, 1.442695
  %v2909 = vpow.pop %v2908
  %v2910 = vmul.f32 %v2860, 1.442695
  %v2911 = vpow.pop %v2910
  %v2912 = vmul.f32 %v2861, 1.442695
  %v2913 = vpow.pop %v2912
  %v2914 = vmul.f32 %v2862, 1.442695
  %v2915 = vpow.pop %v2914
  %v2916 = vmul.f32 %v2863, 1.442695
  %v2917 = vpow.pop %v2916
  %v2918 = vmul.f32 %v2864, 1.442695
  %v2919 = vpow.pop %v2918
  %v2920 = vmul.f32 %v2865, 1.442695
  %v2921 = vpow.pop %v2920
  %v2922 = vmul.f32 %v2866, 1.442695
  %v2923 = vpow.pop %v2922
  %v2924 = vmul.f32 %v2867, 1.442695
  %v2925 = vpow.pop %v2924
  %v2926 = vmul.f32 %v2868, 1.442695
  %v2927 = vpow.pop %v2926
  %v2928 = vmul.f32 %v2869, 1.442695
  %v2929 = vpow.pop %v2928
  %v2930 = vmul.f32 %v2870, 1.442695
  %v2931 = vpow.pop %v2930
  %v2932 = vmul.f32 %v2871, 1.442695
  %v2933 = vpow.pop %v2932
  %v2934 = vmul.f32 %v2872, 1.442695
  %v2935 = vpow.pop %v2934
  %v2936 = vmul.f32 %v2873, 1.442695
  %v2937 = vpow.pop %v2936
  %v2938 = vadd.f32 %v2875, %v2877
  %2939 = vadd.xlane.f32.xlu0 %v2938
  %v2940 = vpop.xlane.xlu0 %2939
  %v2941 = vadd.f32 %v2879, %v2881
  %2942 = vadd.xlane.f32.xlu0 %v2941
  %v2943 = vpop.xlane.xlu0 %2942
  %v2944 = vadd.f32 %v2883, %v2885
  %2945 = vadd.xlane.f32.xlu0 %v2944
  %v2946 = vpop.xlane.xlu0 %2945
  %v2947 = vadd.f32 %v2887, %v2889
  %2948 = vadd.xlane.f32.xlu0 %v2947
  %v2949 = vpop.xlane.xlu0 %2948
  %v2950 = vadd.f32 %v2891, %v2893
  %2951 = vadd.xlane.f32.xlu0 %v2950
  %v2952 = vpop.xlane.xlu0 %2951
  %v2953 = vadd.f32 %v2895, %v2897
  %2954 = vadd.xlane.f32.xlu0 %v2953
  %v2955 = vpop.xlane.xlu0 %2954
  %v2956 = vadd.f32 %v2899, %v2901
  %2957 = vadd.xlane.f32.xlu0 %v2956
  %v2958 = vpop.xlane.xlu0 %2957
  %v2959 = vadd.f32 %v2903, %v2905
  %2960 = vadd.xlane.f32.xlu0 %v2959
  %v2961 = vpop.xlane.xlu0 %2960
  %v2962 = vadd.f32 %v2907, %v2909
  %2963 = vadd.xlane.f32.xlu0 %v2962
  %v2964 = vpop.xlane.xlu0 %2963
  %v2965 = vadd.f32 %v2911, %v2913
  %2966 = vadd.xlane.f32.xlu0 %v2965
  %v2967 = vpop.xlane.xlu0 %2966
  %v2968 = vadd.f32 %v2915, %v2917
  %2969 = vadd.xlane.f32.xlu0 %v2968
  %v2970 = vpop.xlane.xlu0 %2969
  %v2971 = vadd.f32 %v2919, %v2921
  %2972 = vadd.xlane.f32.xlu0 %v2971
  %v2973 = vpop.xlane.xlu0 %2972
  %v2974 = vadd.f32 %v2923, %v2925
  %2975 = vadd.xlane.f32.xlu0 %v2974
  %v2976 = vpop.xlane.xlu0 %2975
  %v2977 = vadd.f32 %v2927, %v2929
  %2978 = vadd.xlane.f32.xlu0 %v2977
  %v2979 = vpop.xlane.xlu0 %2978
  %v2980 = vadd.f32 %v2931, %v2933
  %2981 = vadd.xlane.f32.xlu0 %v2980
  %v2982 = vpop.xlane.xlu0 %2981
  %v2983 = vadd.f32 %v2935, %v2937
  %2984 = vadd.xlane.f32.xlu0 %v2983
  %v2985 = vpop.xlane.xlu0 %2984
  %v2986 = vrcp.pop %v2940
  %v2987 = vrcp.pop %v2943
  %v2988 = vrcp.pop %v2946
  %v2989 = vrcp.pop %v2949
  %v2990 = vrcp.pop %v2952
  %v2991 = vrcp.pop %v2955
  %v2992 = vrcp.pop %v2958
  %v2993 = vrcp.pop %v2961
  %v2994 = vrcp.pop %v2964
  %v2995 = vrcp.pop %v2967
  %v2996 = vrcp.pop %v2970
  %v2997 = vrcp.pop %v2973
  %v2998 = vrcp.pop %v2976
  %v2999 = vrcp.pop %v2979
  %v3000 = vrcp.pop %v2982
  %v3001 = vrcp.pop %v2985
  %v3002 = vmul.f32 %v2875, %v2986
  %v3003 = vmul.f32 %v2877, %v2986
  %v3004 = vmul.f32 %v2879, %v2987
  %v3005 = vmul.f32 %v2881, %v2987
  %v3006 = vmul.f32 %v2883, %v2988
  %v3007 = vmul.f32 %v2885, %v2988
  %v3008 = vmul.f32 %v2887, %v2989
  %v3009 = vmul.f32 %v2889, %v2989
  %v3010 = vmul.f32 %v2891, %v2990
  %v3011 = vmul.f32 %v2893, %v2990
  %v3012 = vmul.f32 %v2895, %v2991
  %v3013 = vmul.f32 %v2897, %v2991
  %v3014 = vmul.f32 %v2899, %v2992
  %v3015 = vmul.f32 %v2901, %v2992
  %v3016 = vmul.f32 %v2903, %v2993
  %v3017 = vmul.f32 %v2905, %v2993
  %v3018 = vmul.f32 %v2907, %v2994
  %v3019 = vmul.f32 %v2909, %v2994
  %v3020 = vmul.f32 %v2911, %v2995
  %v3021 = vmul.f32 %v2913, %v2995
  %v3022 = vmul.f32 %v2915, %v2996
  %v3023 = vmul.f32 %v2917, %v2996
  %v3024 = vmul.f32 %v2919, %v2997
  %v3025 = vmul.f32 %v2921, %v2997
  %v3026 = vmul.f32 %v2923, %v2998
  %v3027 = vmul.f32 %v2925, %v2998
  %v3028 = vmul.f32 %v2927, %v2999
  %v3029 = vmul.f32 %v2929, %v2999
  %v3030 = vmul.f32 %v2931, %v3000
  %v3031 = vmul.f32 %v2933, %v3000
  %v3032 = vmul.f32 %v2935, %v3001
  %v3033 = vmul.f32 %v2937, %v3001
  %3034 = vmatprep.subr.mxu0 0.0
  %3035 = vmatpush1.xpose.msra.mxu0 0.0
  %3036 = vmatprep.subr.mxu0 0.0
  %3037 = vmatpush1.xpose.msra.mxu0 0.0
  %3038 = vmatprep.subr.mxu0 0.0
  %3039 = vmatpush1.xpose.msra.mxu0 0.0
  %3040 = vmatprep.subr.mxu0 0.0
  %3041 = vmatpush1.xpose.msra.mxu0 0.0
  %3042 = vmatprep.subr.mxu0 0.0
  %3043 = vmatpush1.xpose.msra.mxu0 0.0
  %3044 = vmatprep.subr.mxu0 0.0
  %3045 = vmatpush1.xpose.msra.mxu0 0.0
  %3046 = vmatprep.subr.mxu0 0.0
  %3047 = vmatpush1.xpose.msra.mxu0 0.0
  %3048 = vmatprep.subr.mxu0 0.0
  %3049 = vmatpush1.xpose.msra.mxu0 0.0
  %3050 = vmatprep.subr.mxu0 0.0
  %3051 = vmatpush1.xpose.msra.mxu0 0.0
  %3052 = vmatprep.subr.mxu0 0.0
  %3053 = vmatpush1.xpose.msra.mxu0 0.0
  %3054 = vmatprep.subr.mxu0 0.0
  %3055 = vmatpush1.xpose.msra.mxu0 0.0
  %3056 = vmatprep.subr.mxu0 0.0
  %3057 = vmatpush1.xpose.msra.mxu0 0.0
  %3058 = vmatprep.subr.mxu0 %v2432
  %3059 = vmatpush1.xpose.msra.mxu0 %v2430
  %3060 = vmatprep.subr.mxu0 %v2426
  %3061 = vmatpush1.xpose.msra.mxu0 %v2424
  %3062 = vmatprep.subr.mxu0 %v2420
  %3063 = vmatpush1.xpose.msra.mxu0 %v2418
  %3064 = vmatprep.subr.mxu0 %v2414
  %3065 = vmatpush1.xpose.msra.mxu0 %v2412
  %3066 = vmatprep.subr.mxu0 0.0
  %3067 = vmatpush2.xpose.msra.mxu0 0.0
  %3068 = vmatprep.subr.mxu0 0.0
  %3069 = vmatpush2.xpose.msra.mxu0 0.0
  %3070 = vmatprep.subr.mxu0 0.0
  %3071 = vmatpush2.xpose.msra.mxu0 0.0
  %3072 = vmatprep.subr.mxu0 0.0
  %3073 = vmatpush2.xpose.msra.mxu0 0.0
  %3074 = vmatprep.subr.mxu0 0.0
  %3075 = vmatpush2.xpose.msra.mxu0 0.0
  %3076 = vmatprep.subr.mxu0 0.0
  %3077 = vmatpush2.xpose.msra.mxu0 0.0
  %3078 = vmatprep.subr.mxu0 0.0
  %3079 = vmatpush2.xpose.msra.mxu0 0.0
  %3080 = vmatprep.subr.mxu0 0.0
  %3081 = vmatpush2.xpose.msra.mxu0 0.0
  %3082 = vmatprep.subr.mxu0 0.0
  %3083 = vmatpush2.xpose.msra.mxu0 0.0
  %3084 = vmatprep.subr.mxu0 0.0
  %3085 = vmatpush2.xpose.msra.mxu0 0.0
  %3086 = vmatprep.subr.mxu0 0.0
  %3087 = vmatpush2.xpose.msra.mxu0 0.0
  %3088 = vmatprep.subr.mxu0 0.0
  %3089 = vmatpush2.xpose.msra.mxu0 0.0
  %3090 = vmatprep.subr.mxu0 0.0
  %3091 = vmatpush2.xpose.msra.mxu0 0.0
  %3092 = vmatprep.subr.mxu0 0.0
  %3093 = vmatpush2.xpose.msra.mxu0 0.0
  %3094 = vmatprep.subr.mxu0 0.0
  %3095 = vmatpush2.xpose.msra.mxu0 0.0
  %3096 = vmatprep.subr.mxu0 0.0
  %3097 = vmatpush2.xpose.msra.mxu0 0.0
  %3098 = vmatprep.mubr.f32.mxu0 %v3003
  %3099 = vmatmul.mubr.f32.gmra.mxu0 %v3002
  %v3100 = vpop.f32.mrf.mxu0
  %v3101 = vadd.f32 0.0, %v3100
  %v3102 = vpop.f32.mrf.mxu0
  %3103 = vmatprep.mubr.f32.mxu0 %v3005
  %3104 = vmatmul.mubr.f32.gmra.mxu0 %v3004
  %v3105 = vpop.f32.mrf.mxu0
  %v3106 = vadd.f32 0.0, %v3105
  %v3107 = vpop.f32.mrf.mxu0
  %3108 = vmatprep.mubr.f32.mxu0 %v3007
  %3109 = vmatmul.mubr.f32.gmra.mxu0 %v3006
  %v3110 = vpop.f32.mrf.mxu0
  %v3111 = vadd.f32 0.0, %v3110
  %v3112 = vpop.f32.mrf.mxu0
  %3113 = vmatprep.mubr.f32.mxu0 %v3009
  %3114 = vmatmul.mubr.f32.gmra.mxu0 %v3008
  %v3115 = vpop.f32.mrf.mxu0
  %v3116 = vadd.f32 0.0, %v3115
  %v3117 = vpop.f32.mrf.mxu0
  %3118 = vdwg.mxu0
  %3119 = vmatprep.subr.mxu0 0.0
  %3120 = vmatpush1.xpose.msra.mxu0 0.0
  %3121 = vmatprep.subr.mxu0 0.0
  %3122 = vmatpush1.xpose.msra.mxu0 0.0
  %3123 = vmatprep.subr.mxu0 0.0
  %3124 = vmatpush1.xpose.msra.mxu0 0.0
  %3125 = vmatprep.subr.mxu0 0.0
  %3126 = vmatpush1.xpose.msra.mxu0 0.0
  %3127 = vmatprep.subr.mxu0 0.0
  %3128 = vmatpush1.xpose.msra.mxu0 0.0
  %3129 = vmatprep.subr.mxu0 0.0
  %3130 = vmatpush1.xpose.msra.mxu0 0.0
  %3131 = vmatprep.subr.mxu0 0.0
  %3132 = vmatpush1.xpose.msra.mxu0 0.0
  %3133 = vmatprep.subr.mxu0 0.0
  %3134 = vmatpush1.xpose.msra.mxu0 0.0
  %3135 = vmatprep.subr.mxu0 0.0
  %3136 = vmatpush1.xpose.msra.mxu0 0.0
  %3137 = vmatprep.subr.mxu0 0.0
  %3138 = vmatpush1.xpose.msra.mxu0 0.0
  %3139 = vmatprep.subr.mxu0 0.0
  %3140 = vmatpush1.xpose.msra.mxu0 0.0
  %3141 = vmatprep.subr.mxu0 0.0
  %3142 = vmatpush1.xpose.msra.mxu0 0.0
  %3143 = vmatprep.subr.mxu0 %v2456
  %3144 = vmatpush1.xpose.msra.mxu0 %v2454
  %3145 = vmatprep.subr.mxu0 %v2450
  %3146 = vmatpush1.xpose.msra.mxu0 %v2448
  %3147 = vmatprep.subr.mxu0 %v2444
  %3148 = vmatpush1.xpose.msra.mxu0 %v2442
  %3149 = vmatprep.subr.mxu0 %v2438
  %3150 = vmatpush1.xpose.msra.mxu0 %v2436
  %3151 = vmatprep.subr.mxu0 0.0
  %3152 = vmatpush2.xpose.msra.mxu0 0.0
  %3153 = vmatprep.subr.mxu0 0.0
  %3154 = vmatpush2.xpose.msra.mxu0 0.0
  %3155 = vmatprep.subr.mxu0 0.0
  %3156 = vmatpush2.xpose.msra.mxu0 0.0
  %3157 = vmatprep.subr.mxu0 0.0
  %3158 = vmatpush2.xpose.msra.mxu0 0.0
  %3159 = vmatprep.subr.mxu0 0.0
  %3160 = vmatpush2.xpose.msra.mxu0 0.0
  %3161 = vmatprep.subr.mxu0 0.0
  %3162 = vmatpush2.xpose.msra.mxu0 0.0
  %3163 = vmatprep.subr.mxu0 0.0
  %3164 = vmatpush2.xpose.msra.mxu0 0.0
  %3165 = vmatprep.subr.mxu0 0.0
  %3166 = vmatpush2.xpose.msra.mxu0 0.0
  %3167 = vmatprep.subr.mxu0 0.0
  %3168 = vmatpush2.xpose.msra.mxu0 0.0
  %3169 = vmatprep.subr.mxu0 0.0
  %3170 = vmatpush2.xpose.msra.mxu0 0.0
  %3171 = vmatprep.subr.mxu0 0.0
  %3172 = vmatpush2.xpose.msra.mxu0 0.0
  %3173 = vmatprep.subr.mxu0 0.0
  %3174 = vmatpush2.xpose.msra.mxu0 0.0
  %3175 = vmatprep.subr.mxu0 0.0
  %3176 = vmatpush2.xpose.msra.mxu0 0.0
  %3177 = vmatprep.subr.mxu0 0.0
  %3178 = vmatpush2.xpose.msra.mxu0 0.0
  %3179 = vmatprep.subr.mxu0 0.0
  %3180 = vmatpush2.xpose.msra.mxu0 0.0
  %3181 = vmatprep.subr.mxu0 0.0
  %3182 = vmatpush2.xpose.msra.mxu0 0.0
  %3183 = vmatprep.mubr.f32.mxu0 %v3011
  %3184 = vmatmul.mubr.f32.gmra.mxu0 %v3010
  %v3185 = vpop.f32.mrf.mxu0
  %v3186 = vadd.f32 0.0, %v3185
  %v3187 = vpop.f32.mrf.mxu0
  %3188 = vmatprep.mubr.f32.mxu0 %v3013
  %3189 = vmatmul.mubr.f32.gmra.mxu0 %v3012
  %v3190 = vpop.f32.mrf.mxu0
  %v3191 = vadd.f32 0.0, %v3190
  %v3192 = vpop.f32.mrf.mxu0
  %3193 = vmatprep.mubr.f32.mxu0 %v3015
  %3194 = vmatmul.mubr.f32.gmra.mxu0 %v3014
  %v3195 = vpop.f32.mrf.mxu0
  %v3196 = vadd.f32 0.0, %v3195
  %v3197 = vpop.f32.mrf.mxu0
  %3198 = vmatprep.mubr.f32.mxu0 %v3017
  %3199 = vmatmul.mubr.f32.gmra.mxu0 %v3016
  %v3200 = vpop.f32.mrf.mxu0
  %v3201 = vadd.f32 0.0, %v3200
  %v3202 = vpop.f32.mrf.mxu0
  %3203 = vdwg.mxu0
  %3204 = vmatprep.subr.mxu0 0.0
  %3205 = vmatpush1.xpose.msra.mxu0 0.0
  %3206 = vmatprep.subr.mxu0 0.0
  %3207 = vmatpush1.xpose.msra.mxu0 0.0
  %3208 = vmatprep.subr.mxu0 0.0
  %3209 = vmatpush1.xpose.msra.mxu0 0.0
  %3210 = vmatprep.subr.mxu0 0.0
  %3211 = vmatpush1.xpose.msra.mxu0 0.0
  %3212 = vmatprep.subr.mxu0 0.0
  %3213 = vmatpush1.xpose.msra.mxu0 0.0
  %3214 = vmatprep.subr.mxu0 0.0
  %3215 = vmatpush1.xpose.msra.mxu0 0.0
  %3216 = vmatprep.subr.mxu0 0.0
  %3217 = vmatpush1.xpose.msra.mxu0 0.0
  %3218 = vmatprep.subr.mxu0 0.0
  %3219 = vmatpush1.xpose.msra.mxu0 0.0
  %3220 = vmatprep.subr.mxu0 0.0
  %3221 = vmatpush1.xpose.msra.mxu0 0.0
  %3222 = vmatprep.subr.mxu0 0.0
  %3223 = vmatpush1.xpose.msra.mxu0 0.0
  %3224 = vmatprep.subr.mxu0 0.0
  %3225 = vmatpush1.xpose.msra.mxu0 0.0
  %3226 = vmatprep.subr.mxu0 0.0
  %3227 = vmatpush1.xpose.msra.mxu0 0.0
  %3228 = vmatprep.subr.mxu0 %v2480
  %3229 = vmatpush1.xpose.msra.mxu0 %v2478
  %3230 = vmatprep.subr.mxu0 %v2474
  %3231 = vmatpush1.xpose.msra.mxu0 %v2472
  %3232 = vmatprep.subr.mxu0 %v2468
  %3233 = vmatpush1.xpose.msra.mxu0 %v2466
  %3234 = vmatprep.subr.mxu0 %v2462
  %3235 = vmatpush1.xpose.msra.mxu0 %v2460
  %3236 = vmatprep.subr.mxu0 0.0
  %3237 = vmatpush2.xpose.msra.mxu0 0.0
  %3238 = vmatprep.subr.mxu0 0.0
  %3239 = vmatpush2.xpose.msra.mxu0 0.0
  %3240 = vmatprep.subr.mxu0 0.0
  %3241 = vmatpush2.xpose.msra.mxu0 0.0
  %3242 = vmatprep.subr.mxu0 0.0
  %3243 = vmatpush2.xpose.msra.mxu0 0.0
  %3244 = vmatprep.subr.mxu0 0.0
  %3245 = vmatpush2.xpose.msra.mxu0 0.0
  %3246 = vmatprep.subr.mxu0 0.0
  %3247 = vmatpush2.xpose.msra.mxu0 0.0
  %3248 = vmatprep.subr.mxu0 0.0
  %3249 = vmatpush2.xpose.msra.mxu0 0.0
  %3250 = vmatprep.subr.mxu0 0.0
  %3251 = vmatpush2.xpose.msra.mxu0 0.0
  %3252 = vmatprep.subr.mxu0 0.0
  %3253 = vmatpush2.xpose.msra.mxu0 0.0
  %3254 = vmatprep.subr.mxu0 0.0
  %3255 = vmatpush2.xpose.msra.mxu0 0.0
  %3256 = vmatprep.subr.mxu0 0.0
  %3257 = vmatpush2.xpose.msra.mxu0 0.0
  %3258 = vmatprep.subr.mxu0 0.0
  %3259 = vmatpush2.xpose.msra.mxu0 0.0
  %3260 = vmatprep.subr.mxu0 0.0
  %3261 = vmatpush2.xpose.msra.mxu0 0.0
  %3262 = vmatprep.subr.mxu0 0.0
  %3263 = vmatpush2.xpose.msra.mxu0 0.0
  %3264 = vmatprep.subr.mxu0 0.0
  %3265 = vmatpush2.xpose.msra.mxu0 0.0
  %3266 = vmatprep.subr.mxu0 0.0
  %3267 = vmatpush2.xpose.msra.mxu0 0.0
  %3268 = vmatprep.mubr.f32.mxu0 %v3019
  %3269 = vmatmul.mubr.f32.gmra.mxu0 %v3018
  %v3270 = vpop.f32.mrf.mxu0
  %v3271 = vadd.f32 0.0, %v3270
  %v3272 = vpop.f32.mrf.mxu0
  %3273 = vmatprep.mubr.f32.mxu0 %v3021
  %3274 = vmatmul.mubr.f32.gmra.mxu0 %v3020
  %v3275 = vpop.f32.mrf.mxu0
  %v3276 = vadd.f32 0.0, %v3275
  %v3277 = vpop.f32.mrf.mxu0
  %3278 = vmatprep.mubr.f32.mxu0 %v3023
  %3279 = vmatmul.mubr.f32.gmra.mxu0 %v3022
  %v3280 = vpop.f32.mrf.mxu0
  %v3281 = vadd.f32 0.0, %v3280
  %v3282 = vpop.f32.mrf.mxu0
  %3283 = vmatprep.mubr.f32.mxu0 %v3025
  %3284 = vmatmul.mubr.f32.gmra.mxu0 %v3024
  %v3285 = vpop.f32.mrf.mxu0
  %v3286 = vadd.f32 0.0, %v3285
  %v3287 = vpop.f32.mrf.mxu0
  %3288 = vdwg.mxu0
  %3289 = vmatprep.subr.mxu0 0.0
  %3290 = vmatpush1.xpose.msra.mxu0 0.0
  %3291 = vmatprep.subr.mxu0 0.0
  %3292 = vmatpush1.xpose.msra.mxu0 0.0
  %3293 = vmatprep.subr.mxu0 0.0
  %3294 = vmatpush1.xpose.msra.mxu0 0.0
  %3295 = vmatprep.subr.mxu0 0.0
  %3296 = vmatpush1.xpose.msra.mxu0 0.0
  %3297 = vmatprep.subr.mxu0 0.0
  %3298 = vmatpush1.xpose.msra.mxu0 0.0
  %3299 = vmatprep.subr.mxu0 0.0
  %3300 = vmatpush1.xpose.msra.mxu0 0.0
  %3301 = vmatprep.subr.mxu0 0.0
  %3302 = vmatpush1.xpose.msra.mxu0 0.0
  %3303 = vmatprep.subr.mxu0 0.0
  %3304 = vmatpush1.xpose.msra.mxu0 0.0
  %3305 = vmatprep.subr.mxu0 0.0
  %3306 = vmatpush1.xpose.msra.mxu0 0.0
  %3307 = vmatprep.subr.mxu0 0.0
  %3308 = vmatpush1.xpose.msra.mxu0 0.0
  %3309 = vmatprep.subr.mxu0 0.0
  %3310 = vmatpush1.xpose.msra.mxu0 0.0
  %3311 = vmatprep.subr.mxu0 0.0
  %3312 = vmatpush1.xpose.msra.mxu0 0.0
  %3313 = vmatprep.subr.mxu0 %v2504
  %3314 = vmatpush1.xpose.msra.mxu0 %v2502
  %3315 = vmatprep.subr.mxu0 %v2498
  %3316 = vmatpush1.xpose.msra.mxu0 %v2496
  %3317 = vmatprep.subr.mxu0 %v2492
  %3318 = vmatpush1.xpose.msra.mxu0 %v2490
  %3319 = vmatprep.subr.mxu0 %v2486
  %3320 = vmatpush1.xpose.msra.mxu0 %v2484
  %3321 = vmatprep.subr.mxu0 0.0
  %3322 = vmatpush2.xpose.msra.mxu0 0.0
  %3323 = vmatprep.subr.mxu0 0.0
  %3324 = vmatpush2.xpose.msra.mxu0 0.0
  %3325 = vmatprep.subr.mxu0 0.0
  %3326 = vmatpush2.xpose.msra.mxu0 0.0
  %3327 = vmatprep.subr.mxu0 0.0
  %3328 = vmatpush2.xpose.msra.mxu0 0.0
  %3329 = vmatprep.subr.mxu0 0.0
  %3330 = vmatpush2.xpose.msra.mxu0 0.0
  %3331 = vmatprep.subr.mxu0 0.0
  %3332 = vmatpush2.xpose.msra.mxu0 0.0
  %3333 = vmatprep.subr.mxu0 0.0
  %3334 = vmatpush2.xpose.msra.mxu0 0.0
  %3335 = vmatprep.subr.mxu0 0.0
  %3336 = vmatpush2.xpose.msra.mxu0 0.0
  %3337 = vmatprep.subr.mxu0 0.0
  %3338 = vmatpush2.xpose.msra.mxu0 0.0
  %3339 = vmatprep.subr.mxu0 0.0
  %3340 = vmatpush2.xpose.msra.mxu0 0.0
  %3341 = vmatprep.subr.mxu0 0.0
  %3342 = vmatpush2.xpose.msra.mxu0 0.0
  %3343 = vmatprep.subr.mxu0 0.0
  %3344 = vmatpush2.xpose.msra.mxu0 0.0
  %3345 = vmatprep.subr.mxu0 0.0
  %3346 = vmatpush2.xpose.msra.mxu0 0.0
  %3347 = vmatprep.subr.mxu0 0.0
  %3348 = vmatpush2.xpose.msra.mxu0 0.0
  %3349 = vmatprep.subr.mxu0 0.0
  %3350 = vmatpush2.xpose.msra.mxu0 0.0
  %3351 = vmatprep.subr.mxu0 0.0
  %3352 = vmatpush2.xpose.msra.mxu0 0.0
  %3353 = vmatprep.mubr.f32.mxu0 %v3027
  %3354 = vmatmul.mubr.f32.gmra.mxu0 %v3026
  %v3355 = vpop.f32.mrf.mxu0
  %v3356 = vadd.f32 0.0, %v3355
  %v3357 = vpop.f32.mrf.mxu0
  %3358 = vmatprep.mubr.f32.mxu0 %v3029
  %3359 = vmatmul.mubr.f32.gmra.mxu0 %v3028
  %v3360 = vpop.f32.mrf.mxu0
  %v3361 = vadd.f32 0.0, %v3360
  %v3362 = vpop.f32.mrf.mxu0
  %3363 = vmatprep.mubr.f32.mxu0 %v3031
  %3364 = vmatmul.mubr.f32.gmra.mxu0 %v3030
  %v3365 = vpop.f32.mrf.mxu0
  %v3366 = vadd.f32 0.0, %v3365
  %v3367 = vpop.f32.mrf.mxu0
  %3368 = vmatprep.mubr.f32.mxu0 %v3033
  %3369 = vmatmul.mubr.f32.gmra.mxu0 %v3032
  %v3370 = vpop.f32.mrf.mxu0
  %v3371 = vadd.f32 0.0, %v3370
  %v3372 = vpop.f32.mrf.mxu0
  %3373 = vdwg.mxu0
  %3374 = vxpose.xlu0.b32.start [1/16] %v3101, 128
  %3375 = vxpose.xlu0.b32.cont [2/16] %v3106, 128
  %3376 = vxpose.xlu0.b32.cont [3/16] %v3111, 128
  %3377 = vxpose.xlu0.b32.cont [4/16] %v3116, 128
  %3378 = vxpose.xlu0.b32.cont [5/16] 0.0, 128
  %3379 = vxpose.xlu0.b32.cont [6/16] 0.0, 128
  %3380 = vxpose.xlu0.b32.cont [7/16] 0.0, 128
  %3381 = vxpose.xlu0.b32.cont [8/16] 0.0, 128
  %3382 = vxpose.xlu0.b32.cont [9/16] 0.0, 128
  %3383 = vxpose.xlu0.b32.cont [10/16] 0.0, 128
  %3384 = vxpose.xlu0.b32.cont [11/16] 0.0, 128
  %3385 = vxpose.xlu0.b32.cont [12/16] 0.0, 128
  %3386 = vxpose.xlu0.b32.cont [13/16] 0.0, 128
  %3387 = vxpose.xlu0.b32.cont [14/16] 0.0, 128
  %3388 = vxpose.xlu0.b32.cont [15/16] 0.0, 128
  %3389 = vxpose.xlu0.b32.end [16/16] 0.0, 128
  %v3390 = vpop.trf.xlu0
  %v3391 = vpop.trf.xlu0
  %v3392 = vpop.trf.xlu0
  %v3393 = vpop.trf.xlu0
  %v3394 = vpop.trf.xlu0
  %v3395 = vpop.trf.xlu0
  %v3396 = vpop.trf.xlu0
  %v3397 = vpop.trf.xlu0
  %v3398 = vpop.trf.xlu0
  %v3399 = vpop.trf.xlu0
  %v3400 = vpop.trf.xlu0
  %v3401 = vpop.trf.xlu0
  %v3402 = vpop.trf.xlu0
  %v3403 = vpop.trf.xlu0
  %v3404 = vpop.trf.xlu0
  %v3405 = vpop.trf.xlu0
  %v3407 = vsel %vm1518, %v3390, 0
  %v3410 = vsel %vm1518, %v3391, 0
  %v3413 = vsel %vm1518, %v3392, 0
  %v3416 = vsel %vm1518, %v3393, 0
  %3418 = vmatprep.subr.mxu0 0.0
  %3419 = vmatpush1.msra.mxu0 0.0
  %3420 = vmatprep.subr.mxu0 0.0
  %3421 = vmatpush1.msra.mxu0 0.0
  %3422 = vmatprep.subr.mxu0 0.0
  %3423 = vmatpush1.msra.mxu0 0.0
  %3424 = vmatprep.subr.mxu0 0.0
  %3425 = vmatpush1.msra.mxu0 0.0
  %3426 = vmatprep.subr.mxu0 0.0
  %3427 = vmatpush1.msra.mxu0 0.0
  %3428 = vmatprep.subr.mxu0 0.0
  %3429 = vmatpush1.msra.mxu0 0.0
  %3430 = vmatprep.subr.mxu0 0.0
  %3431 = vmatpush1.msra.mxu0 0.0
  %3432 = vmatprep.subr.mxu0 0.0
  %3433 = vmatpush1.msra.mxu0 0.0
  %3434 = vmatprep.subr.mxu0 0.0
  %3435 = vmatpush1.msra.mxu0 0.0
  %3436 = vmatprep.subr.mxu0 0.0
  %3437 = vmatpush1.msra.mxu0 0.0
  %3438 = vmatprep.subr.mxu0 0.0
  %3439 = vmatpush1.msra.mxu0 0.0
  %3440 = vmatprep.subr.mxu0 0.0
  %3441 = vmatpush1.msra.mxu0 0.0
  %3442 = vmatprep.subr.mxu0 %v2769
  %3443 = vmatpush1.msra.mxu0 %v2768
  %3444 = vmatprep.subr.mxu0 %v2767
  %3445 = vmatpush1.msra.mxu0 %v2766
  %3446 = vmatprep.subr.mxu0 %v2765
  %3447 = vmatpush1.msra.mxu0 %v2764
  %3448 = vmatprep.subr.mxu0 %v2763
  %3449 = vmatpush1.msra.mxu0 %v2762
  %3450 = vmatprep.subr.mxu0 0.0
  %3451 = vmatpush2.msra.mxu0 0.0
  %3452 = vmatprep.subr.mxu0 0.0
  %3453 = vmatpush2.msra.mxu0 0.0
  %3454 = vmatprep.subr.mxu0 0.0
  %3455 = vmatpush2.msra.mxu0 0.0
  %3456 = vmatprep.subr.mxu0 0.0
  %3457 = vmatpush2.msra.mxu0 0.0
  %3458 = vmatprep.subr.mxu0 0.0
  %3459 = vmatpush2.msra.mxu0 0.0
  %3460 = vmatprep.subr.mxu0 0.0
  %3461 = vmatpush2.msra.mxu0 0.0
  %3462 = vmatprep.subr.mxu0 0.0
  %3463 = vmatpush2.msra.mxu0 0.0
  %3464 = vmatprep.subr.mxu0 0.0
  %3465 = vmatpush2.msra.mxu0 0.0
  %3466 = vmatprep.subr.mxu0 0.0
  %3467 = vmatpush2.msra.mxu0 0.0
  %3468 = vmatprep.subr.mxu0 0.0
  %3469 = vmatpush2.msra.mxu0 0.0
  %3470 = vmatprep.subr.mxu0 0.0
  %3471 = vmatpush2.msra.mxu0 0.0
  %3472 = vmatprep.subr.mxu0 0.0
  %3473 = vmatpush2.msra.mxu0 0.0
  %3474 = vmatprep.subr.mxu0 0.0
  %3475 = vmatpush2.msra.mxu0 0.0
  %3476 = vmatprep.subr.mxu0 0.0
  %3477 = vmatpush2.msra.mxu0 0.0
  %3478 = vmatprep.subr.mxu0 0.0
  %3479 = vmatpush2.msra.mxu0 0.0
  %3480 = vmatprep.subr.mxu0 0.0
  %3481 = vmatpush2.msra.mxu0 0.0
  %3482 = vmatprep.mubr.f32.mxu0 0.0
  %3483 = vmatmul.mubr.f32.gmra.mxu0 %v3407
  %v3484 = vpop.f32.mrf.mxu0
  %v3485 = vadd.f32 0.0, %v3484
  %v3486 = vpop.f32.mrf.mxu0
  %v3487 = vadd.f32 0.0, %v3486
  %3488 = vmatprep.mubr.f32.mxu0 0.0
  %3489 = vmatmul.mubr.f32.gmra.mxu0 %v3410
  %v3490 = vpop.f32.mrf.mxu0
  %v3491 = vadd.f32 0.0, %v3490
  %v3492 = vpop.f32.mrf.mxu0
  %v3493 = vadd.f32 0.0, %v3492
  %3494 = vmatprep.mubr.f32.mxu0 0.0
  %3495 = vmatmul.mubr.f32.gmra.mxu0 %v3413
  %v3496 = vpop.f32.mrf.mxu0
  %v3497 = vadd.f32 0.0, %v3496
  %v3498 = vpop.f32.mrf.mxu0
  %v3499 = vadd.f32 0.0, %v3498
  %3500 = vmatprep.mubr.f32.mxu0 0.0
  %3501 = vmatmul.mubr.f32.gmra.mxu0 %v3416
  %v3502 = vpop.f32.mrf.mxu0
  %v3503 = vadd.f32 0.0, %v3502
  %v3504 = vpop.f32.mrf.mxu0
  %v3505 = vadd.f32 0.0, %v3504
  %3506 = vdwg.mxu0
  %3507 = vxpose.xlu0.b32.start [1/16] %v3186, 128
  %3508 = vxpose.xlu0.b32.cont [2/16] %v3191, 128
  %3509 = vxpose.xlu0.b32.cont [3/16] %v3196, 128
  %3510 = vxpose.xlu0.b32.cont [4/16] %v3201, 128
  %3511 = vxpose.xlu0.b32.cont [5/16] 0.0, 128
  %3512 = vxpose.xlu0.b32.cont [6/16] 0.0, 128
  %3513 = vxpose.xlu0.b32.cont [7/16] 0.0, 128
  %3514 = vxpose.xlu0.b32.cont [8/16] 0.0, 128
  %3515 = vxpose.xlu0.b32.cont [9/16] 0.0, 128
  %3516 = vxpose.xlu0.b32.cont [10/16] 0.0, 128
  %3517 = vxpose.xlu0.b32.cont [11/16] 0.0, 128
  %3518 = vxpose.xlu0.b32.cont [12/16] 0.0, 128
  %3519 = vxpose.xlu0.b32.cont [13/16] 0.0, 128
  %3520 = vxpose.xlu0.b32.cont [14/16] 0.0, 128
  %3521 = vxpose.xlu0.b32.cont [15/16] 0.0, 128
  %3522 = vxpose.xlu0.b32.end [16/16] 0.0, 128
  %v3523 = vpop.trf.xlu0
  %v3524 = vpop.trf.xlu0
  %v3525 = vpop.trf.xlu0
  %v3526 = vpop.trf.xlu0
  %v3527 = vpop.trf.xlu0
  %v3528 = vpop.trf.xlu0
  %v3529 = vpop.trf.xlu0
  %v3530 = vpop.trf.xlu0
  %v3531 = vpop.trf.xlu0
  %v3532 = vpop.trf.xlu0
  %v3533 = vpop.trf.xlu0
  %v3534 = vpop.trf.xlu0
  %v3535 = vpop.trf.xlu0
  %v3536 = vpop.trf.xlu0
  %v3537 = vpop.trf.xlu0
  %v3538 = vpop.trf.xlu0
  %v3540 = vsel %vm1518, %v3523, 0
  %v3543 = vsel %vm1518, %v3524, 0
  %v3546 = vsel %vm1518, %v3525, 0
  %v3549 = vsel %vm1518, %v3526, 0
  %3551 = vmatprep.subr.mxu0 0.0
  %3552 = vmatpush1.msra.mxu0 0.0
  %3553 = vmatprep.subr.mxu0 0.0
  %3554 = vmatpush1.msra.mxu0 0.0
  %3555 = vmatprep.subr.mxu0 0.0
  %3556 = vmatpush1.msra.mxu0 0.0
  %3557 = vmatprep.subr.mxu0 0.0
  %3558 = vmatpush1.msra.mxu0 0.0
  %3559 = vmatprep.subr.mxu0 0.0
  %3560 = vmatpush1.msra.mxu0 0.0
  %3561 = vmatprep.subr.mxu0 0.0
  %3562 = vmatpush1.msra.mxu0 0.0
  %3563 = vmatprep.subr.mxu0 0.0
  %3564 = vmatpush1.msra.mxu0 0.0
  %3565 = vmatprep.subr.mxu0 0.0
  %3566 = vmatpush1.msra.mxu0 0.0
  %3567 = vmatprep.subr.mxu0 0.0
  %3568 = vmatpush1.msra.mxu0 0.0
  %3569 = vmatprep.subr.mxu0 0.0
  %3570 = vmatpush1.msra.mxu0 0.0
  %3571 = vmatprep.subr.mxu0 0.0
  %3572 = vmatpush1.msra.mxu0 0.0
  %3573 = vmatprep.subr.mxu0 0.0
  %3574 = vmatpush1.msra.mxu0 0.0
  %3575 = vmatprep.subr.mxu0 %v2777
  %3576 = vmatpush1.msra.mxu0 %v2776
  %3577 = vmatprep.subr.mxu0 %v2775
  %3578 = vmatpush1.msra.mxu0 %v2774
  %3579 = vmatprep.subr.mxu0 %v2773
  %3580 = vmatpush1.msra.mxu0 %v2772
  %3581 = vmatprep.subr.mxu0 %v2771
  %3582 = vmatpush1.msra.mxu0 %v2770
  %3583 = vmatprep.subr.mxu0 0.0
  %3584 = vmatpush2.msra.mxu0 0.0
  %3585 = vmatprep.subr.mxu0 0.0
  %3586 = vmatpush2.msra.mxu0 0.0
  %3587 = vmatprep.subr.mxu0 0.0
  %3588 = vmatpush2.msra.mxu0 0.0
  %3589 = vmatprep.subr.mxu0 0.0
  %3590 = vmatpush2.msra.mxu0 0.0
  %3591 = vmatprep.subr.mxu0 0.0
  %3592 = vmatpush2.msra.mxu0 0.0
  %3593 = vmatprep.subr.mxu0 0.0
  %3594 = vmatpush2.msra.mxu0 0.0
  %3595 = vmatprep.subr.mxu0 0.0
  %3596 = vmatpush2.msra.mxu0 0.0
  %3597 = vmatprep.subr.mxu0 0.0
  %3598 = vmatpush2.msra.mxu0 0.0
  %3599 = vmatprep.subr.mxu0 0.0
  %3600 = vmatpush2.msra.mxu0 0.0
  %3601 = vmatprep.subr.mxu0 0.0
  %3602 = vmatpush2.msra.mxu0 0.0
  %3603 = vmatprep.subr.mxu0 0.0
  %3604 = vmatpush2.msra.mxu0 0.0
  %3605 = vmatprep.subr.mxu0 0.0
  %3606 = vmatpush2.msra.mxu0 0.0
  %3607 = vmatprep.subr.mxu0 0.0
  %3608 = vmatpush2.msra.mxu0 0.0
  %3609 = vmatprep.subr.mxu0 0.0
  %3610 = vmatpush2.msra.mxu0 0.0
  %3611 = vmatprep.subr.mxu0 0.0
  %3612 = vmatpush2.msra.mxu0 0.0
  %3613 = vmatprep.subr.mxu0 0.0
  %3614 = vmatpush2.msra.mxu0 0.0
  %3615 = vmatprep.mubr.f32.mxu0 0.0
  %3616 = vmatmul.mubr.f32.gmra.mxu0 %v3540
  %v3617 = vpop.f32.mrf.mxu0
  %v3618 = vadd.f32 0.0, %v3617
  %v3619 = vpop.f32.mrf.mxu0
  %v3620 = vadd.f32 0.0, %v3619
  %3621 = vmatprep.mubr.f32.mxu0 0.0
  %3622 = vmatmul.mubr.f32.gmra.mxu0 %v3543
  %v3623 = vpop.f32.mrf.mxu0
  %v3624 = vadd.f32 0.0, %v3623
  %v3625 = vpop.f32.mrf.mxu0
  %v3626 = vadd.f32 0.0, %v3625
  %3627 = vmatprep.mubr.f32.mxu0 0.0
  %3628 = vmatmul.mubr.f32.gmra.mxu0 %v3546
  %v3629 = vpop.f32.mrf.mxu0
  %v3630 = vadd.f32 0.0, %v3629
  %v3631 = vpop.f32.mrf.mxu0
  %v3632 = vadd.f32 0.0, %v3631
  %3633 = vmatprep.mubr.f32.mxu0 0.0
  %3634 = vmatmul.mubr.f32.gmra.mxu0 %v3549
  %v3635 = vpop.f32.mrf.mxu0
  %v3636 = vadd.f32 0.0, %v3635
  %v3637 = vpop.f32.mrf.mxu0
  %v3638 = vadd.f32 0.0, %v3637
  %3639 = vdwg.mxu0
  %3640 = vxpose.xlu0.b32.start [1/16] %v3271, 128
  %3641 = vxpose.xlu0.b32.cont [2/16] %v3276, 128
  %3642 = vxpose.xlu0.b32.cont [3/16] %v3281, 128
  %3643 = vxpose.xlu0.b32.cont [4/16] %v3286, 128
  %3644 = vxpose.xlu0.b32.cont [5/16] 0.0, 128
  %3645 = vxpose.xlu0.b32.cont [6/16] 0.0, 128
  %3646 = vxpose.xlu0.b32.cont [7/16] 0.0, 128
  %3647 = vxpose.xlu0.b32.cont [8/16] 0.0, 128
  %3648 = vxpose.xlu0.b32.cont [9/16] 0.0, 128
  %3649 = vxpose.xlu0.b32.cont [10/16] 0.0, 128
  %3650 = vxpose.xlu0.b32.cont [11/16] 0.0, 128
  %3651 = vxpose.xlu0.b32.cont [12/16] 0.0, 128
  %3652 = vxpose.xlu0.b32.cont [13/16] 0.0, 128
  %3653 = vxpose.xlu0.b32.cont [14/16] 0.0, 128
  %3654 = vxpose.xlu0.b32.cont [15/16] 0.0, 128
  %3655 = vxpose.xlu0.b32.end [16/16] 0.0, 128
  %v3656 = vpop.trf.xlu0
  %v3657 = vpop.trf.xlu0
  %v3658 = vpop.trf.xlu0
  %v3659 = vpop.trf.xlu0
  %v3660 = vpop.trf.xlu0
  %v3661 = vpop.trf.xlu0
  %v3662 = vpop.trf.xlu0
  %v3663 = vpop.trf.xlu0
  %v3664 = vpop.trf.xlu0
  %v3665 = vpop.trf.xlu0
  %v3666 = vpop.trf.xlu0
  %v3667 = vpop.trf.xlu0
  %v3668 = vpop.trf.xlu0
  %v3669 = vpop.trf.xlu0
  %v3670 = vpop.trf.xlu0
  %v3671 = vpop.trf.xlu0
  %v3673 = vsel %vm1518, %v3656, 0
  %v3676 = vsel %vm1518, %v3657, 0
  %v3679 = vsel %vm1518, %v3658, 0
  %v3682 = vsel %vm1518, %v3659, 0
  %3684 = vmatprep.subr.mxu0 0.0
  %3685 = vmatpush1.msra.mxu0 0.0
  %3686 = vmatprep.subr.mxu0 0.0
  %3687 = vmatpush1.msra.mxu0 0.0
  %3688 = vmatprep.subr.mxu0 0.0
  %3689 = vmatpush1.msra.mxu0 0.0
  %3690 = vmatprep.subr.mxu0 0.0
  %3691 = vmatpush1.msra.mxu0 0.0
  %3692 = vmatprep.subr.mxu0 0.0
  %3693 = vmatpush1.msra.mxu0 0.0
  %3694 = vmatprep.subr.mxu0 0.0
  %3695 = vmatpush1.msra.mxu0 0.0
  %3696 = vmatprep.subr.mxu0 0.0
  %3697 = vmatpush1.msra.mxu0 0.0
  %3698 = vmatprep.subr.mxu0 0.0
  %3699 = vmatpush1.msra.mxu0 0.0
  %3700 = vmatprep.subr.mxu0 0.0
  %3701 = vmatpush1.msra.mxu0 0.0
  %3702 = vmatprep.subr.mxu0 0.0
  %3703 = vmatpush1.msra.mxu0 0.0
  %3704 = vmatprep.subr.mxu0 0.0
  %3705 = vmatpush1.msra.mxu0 0.0
  %3706 = vmatprep.subr.mxu0 0.0
  %3707 = vmatpush1.msra.mxu0 0.0
  %3708 = vmatprep.subr.mxu0 %v2785
  %3709 = vmatpush1.msra.mxu0 %v2784
  %3710 = vmatprep.subr.mxu0 %v2783
  %3711 = vmatpush1.msra.mxu0 %v2782
  %3712 = vmatprep.subr.mxu0 %v2781
  %3713 = vmatpush1.msra.mxu0 %v2780
  %3714 = vmatprep.subr.mxu0 %v2779
  %3715 = vmatpush1.msra.mxu0 %v2778
  %3716 = vmatprep.subr.mxu0 0.0
  %3717 = vmatpush2.msra.mxu0 0.0
  %3718 = vmatprep.subr.mxu0 0.0
  %3719 = vmatpush2.msra.mxu0 0.0
  %3720 = vmatprep.subr.mxu0 0.0
  %3721 = vmatpush2.msra.mxu0 0.0
  %3722 = vmatprep.subr.mxu0 0.0
  %3723 = vmatpush2.msra.mxu0 0.0
  %3724 = vmatprep.subr.mxu0 0.0
  %3725 = vmatpush2.msra.mxu0 0.0
  %3726 = vmatprep.subr.mxu0 0.0
  %3727 = vmatpush2.msra.mxu0 0.0
  %3728 = vmatprep.subr.mxu0 0.0
  %3729 = vmatpush2.msra.mxu0 0.0
  %3730 = vmatprep.subr.mxu0 0.0
  %3731 = vmatpush2.msra.mxu0 0.0
  %3732 = vmatprep.subr.mxu0 0.0
  %3733 = vmatpush2.msra.mxu0 0.0
  %3734 = vmatprep.subr.mxu0 0.0
  %3735 = vmatpush2.msra.mxu0 0.0
  %3736 = vmatprep.subr.mxu0 0.0
  %3737 = vmatpush2.msra.mxu0 0.0
  %3738 = vmatprep.subr.mxu0 0.0
  %3739 = vmatpush2.msra.mxu0 0.0
  %3740 = vmatprep.subr.mxu0 0.0
  %3741 = vmatpush2.msra.mxu0 0.0
  %3742 = vmatprep.subr.mxu0 0.0
  %3743 = vmatpush2.msra.mxu0 0.0
  %3744 = vmatprep.subr.mxu0 0.0
  %3745 = vmatpush2.msra.mxu0 0.0
  %3746 = vmatprep.subr.mxu0 0.0
  %3747 = vmatpush2.msra.mxu0 0.0
  %3748 = vmatprep.mubr.f32.mxu0 0.0
  %3749 = vmatmul.mubr.f32.gmra.mxu0 %v3673
  %v3750 = vpop.f32.mrf.mxu0
  %v3751 = vadd.f32 0.0, %v3750
  %v3752 = vpop.f32.mrf.mxu0
  %v3753 = vadd.f32 0.0, %v3752
  %3754 = vmatprep.mubr.f32.mxu0 0.0
  %3755 = vmatmul.mubr.f32.gmra.mxu0 %v3676
  %v3756 = vpop.f32.mrf.mxu0
  %v3757 = vadd.f32 0.0, %v3756
  %v3758 = vpop.f32.mrf.mxu0
  %v3759 = vadd.f32 0.0, %v3758
  %3760 = vmatprep.mubr.f32.mxu0 0.0
  %3761 = vmatmul.mubr.f32.gmra.mxu0 %v3679
  %v3762 = vpop.f32.mrf.mxu0
  %v3763 = vadd.f32 0.0, %v3762
  %v3764 = vpop.f32.mrf.mxu0
  %v3765 = vadd.f32 0.0, %v3764
  %3766 = vmatprep.mubr.f32.mxu0 0.0
  %3767 = vmatmul.mubr.f32.gmra.mxu0 %v3682
  %v3768 = vpop.f32.mrf.mxu0
  %v3769 = vadd.f32 0.0, %v3768
  %v3770 = vpop.f32.mrf.mxu0
  %v3771 = vadd.f32 0.0, %v3770
  %3772 = vdwg.mxu0
  %3773 = vxpose.xlu0.b32.start [1/16] %v3356, 128
  %3774 = vxpose.xlu0.b32.cont [2/16] %v3361, 128
  %3775 = vxpose.xlu0.b32.cont [3/16] %v3366, 128
  %3776 = vxpose.xlu0.b32.cont [4/16] %v3371, 128
  %3777 = vxpose.xlu0.b32.cont [5/16] 0.0, 128
  %3778 = vxpose.xlu0.b32.cont [6/16] 0.0, 128
  %3779 = vxpose.xlu0.b32.cont [7/16] 0.0, 128
  %3780 = vxpose.xlu0.b32.cont [8/16] 0.0, 128
  %3781 = vxpose.xlu0.b32.cont [9/16] 0.0, 128
  %3782 = vxpose.xlu0.b32.cont [10/16] 0.0, 128
  %3783 = vxpose.xlu0.b32.cont [11/16] 0.0, 128
  %3784 = vxpose.xlu0.b32.cont [12/16] 0.0, 128
  %3785 = vxpose.xlu0.b32.cont [13/16] 0.0, 128
  %3786 = vxpose.xlu0.b32.cont [14/16] 0.0, 128
  %3787 = vxpose.xlu0.b32.cont [15/16] 0.0, 128
  %3788 = vxpose.xlu0.b32.end [16/16] 0.0, 128
  %v3789 = vpop.trf.xlu0
  %v3790 = vpop.trf.xlu0
  %v3791 = vpop.trf.xlu0
  %v3792 = vpop.trf.xlu0
  %v3793 = vpop.trf.xlu0
  %v3794 = vpop.trf.xlu0
  %v3795 = vpop.trf.xlu0
  %v3796 = vpop.trf.xlu0
  %v3797 = vpop.trf.xlu0
  %v3798 = vpop.trf.xlu0
  %v3799 = vpop.trf.xlu0
  %v3800 = vpop.trf.xlu0
  %v3801 = vpop.trf.xlu0
  %v3802 = vpop.trf.xlu0
  %v3803 = vpop.trf.xlu0
  %v3804 = vpop.trf.xlu0
  %v3806 = vsel %vm1518, %v3789, 0
  %v3809 = vsel %vm1518, %v3790, 0
  %v3812 = vsel %vm1518, %v3791, 0
  %v3815 = vsel %vm1518, %v3792, 0
  %3817 = vmatprep.subr.mxu0 0.0
  %3818 = vmatpush1.msra.mxu0 0.0
  %3819 = vmatprep.subr.mxu0 0.0
  %3820 = vmatpush1.msra.mxu0 0.0
  %3821 = vmatprep.subr.mxu0 0.0
  %3822 = vmatpush1.msra.mxu0 0.0
  %3823 = vmatprep.subr.mxu0 0.0
  %3824 = vmatpush1.msra.mxu0 0.0
  %3825 = vmatprep.subr.mxu0 0.0
  %3826 = vmatpush1.msra.mxu0 0.0
  %3827 = vmatprep.subr.mxu0 0.0
  %3828 = vmatpush1.msra.mxu0 0.0
  %3829 = vmatprep.subr.mxu0 0.0
  %3830 = vmatpush1.msra.mxu0 0.0
  %3831 = vmatprep.subr.mxu0 0.0
  %3832 = vmatpush1.msra.mxu0 0.0
  %3833 = vmatprep.subr.mxu0 0.0
  %3834 = vmatpush1.msra.mxu0 0.0
  %3835 = vmatprep.subr.mxu0 0.0
  %3836 = vmatpush1.msra.mxu0 0.0
  %3837 = vmatprep.subr.mxu0 0.0
  %3838 = vmatpush1.msra.mxu0 0.0
  %3839 = vmatprep.subr.mxu0 0.0
  %3840 = vmatpush1.msra.mxu0 0.0
  %3841 = vmatprep.subr.mxu0 %v2793
  %3842 = vmatpush1.msra.mxu0 %v2792
  %3843 = vmatprep.subr.mxu0 %v2791
  %3844 = vmatpush1.msra.mxu0 %v2790
  %3845 = vmatprep.subr.mxu0 %v2789
  %3846 = vmatpush1.msra.mxu0 %v2788
  %3847 = vmatprep.subr.mxu0 %v2787
  %3848 = vmatpush1.msra.mxu0 %v2786
  %3849 = vmatprep.subr.mxu0 0.0
  %3850 = vmatpush2.msra.mxu0 0.0
  %3851 = vmatprep.subr.mxu0 0.0
  %3852 = vmatpush2.msra.mxu0 0.0
  %3853 = vmatprep.subr.mxu0 0.0
  %3854 = vmatpush2.msra.mxu0 0.0
  %3855 = vmatprep.subr.mxu0 0.0
  %3856 = vmatpush2.msra.mxu0 0.0
  %3857 = vmatprep.subr.mxu0 0.0
  %3858 = vmatpush2.msra.mxu0 0.0
  %3859 = vmatprep.subr.mxu0 0.0
  %3860 = vmatpush2.msra.mxu0 0.0
  %3861 = vmatprep.subr.mxu0 0.0
  %3862 = vmatpush2.msra.mxu0 0.0
  %3863 = vmatprep.subr.mxu0 0.0
  %3864 = vmatpush2.msra.mxu0 0.0
  %3865 = vmatprep.subr.mxu0 0.0
  %3866 = vmatpush2.msra.mxu0 0.0
  %3867 = vmatprep.subr.mxu0 0.0
  %3868 = vmatpush2.msra.mxu0 0.0
  %3869 = vmatprep.subr.mxu0 0.0
  %3870 = vmatpush2.msra.mxu0 0.0
  %3871 = vmatprep.subr.mxu0 0.0
  %3872 = vmatpush2.msra.mxu0 0.0
  %3873 = vmatprep.subr.mxu0 0.0
  %3874 = vmatpush2.msra.mxu0 0.0
  %3875 = vmatprep.subr.mxu0 0.0
  %3876 = vmatpush2.msra.mxu0 0.0
  %3877 = vmatprep.subr.mxu0 0.0
  %3878 = vmatpush2.msra.mxu0 0.0
  %3879 = vmatprep.subr.mxu0 0.0
  %3880 = vmatpush2.msra.mxu0 0.0
  %3881 = vmatprep.mubr.f32.mxu0 0.0
  %3882 = vmatmul.mubr.f32.gmra.mxu0 %v3806
  %v3883 = vpop.f32.mrf.mxu0
  %v3884 = vadd.f32 0.0, %v3883
  %v3885 = vpop.f32.mrf.mxu0
  %v3886 = vadd.f32 0.0, %v3885
  %3887 = vmatprep.mubr.f32.mxu0 0.0
  %3888 = vmatmul.mubr.f32.gmra.mxu0 %v3809
  %v3889 = vpop.f32.mrf.mxu0
  %v3890 = vadd.f32 0.0, %v3889
  %v3891 = vpop.f32.mrf.mxu0
  %v3892 = vadd.f32 0.0, %v3891
  %3893 = vmatprep.mubr.f32.mxu0 0.0
  %3894 = vmatmul.mubr.f32.gmra.mxu0 %v3812
  %v3895 = vpop.f32.mrf.mxu0
  %v3896 = vadd.f32 0.0, %v3895
  %v3897 = vpop.f32.mrf.mxu0
  %v3898 = vadd.f32 0.0, %v3897
  %3899 = vmatprep.mubr.f32.mxu0 0.0
  %3900 = vmatmul.mubr.f32.gmra.mxu0 %v3815
  %v3901 = vpop.f32.mrf.mxu0
  %v3902 = vadd.f32 0.0, %v3901
  %v3903 = vpop.f32.mrf.mxu0
  %v3904 = vadd.f32 0.0, %v3903
  %3905 = vdwg.mxu0
  %3906 = vmatprep.subr.mxu0 %v3904
  %3907 = vmatpush1.msra.mxu0 %v3902
  %3908 = vmatprep.subr.mxu0 %v3898
  %3909 = vmatpush1.msra.mxu0 %v3896
  %3910 = vmatprep.subr.mxu0 %v3892
  %3911 = vmatpush1.msra.mxu0 %v3890
  %3912 = vmatprep.subr.mxu0 %v3886
  %3913 = vmatpush1.msra.mxu0 %v3884
  %3914 = vmatprep.subr.mxu0 %v3771
  %3915 = vmatpush1.msra.mxu0 %v3769
  %3916 = vmatprep.subr.mxu0 %v3765
  %3917 = vmatpush1.msra.mxu0 %v3763
  %3918 = vmatprep.subr.mxu0 %v3759
  %3919 = vmatpush1.msra.mxu0 %v3757
  %3920 = vmatprep.subr.mxu0 %v3753
  %3921 = vmatpush1.msra.mxu0 %v3751
  %3922 = vmatprep.subr.mxu0 %v3638
  %3923 = vmatpush1.msra.mxu0 %v3636
  %3924 = vmatprep.subr.mxu0 %v3632
  %3925 = vmatpush1.msra.mxu0 %v3630
  %3926 = vmatprep.subr.mxu0 %v3626
  %3927 = vmatpush1.msra.mxu0 %v3624
  %3928 = vmatprep.subr.mxu0 %v3620
  %3929 = vmatpush1.msra.mxu0 %v3618
  %3930 = vmatprep.subr.mxu0 %v3505
  %3931 = vmatpush1.msra.mxu0 %v3503
  %3932 = vmatprep.subr.mxu0 %v3499
  %3933 = vmatpush1.msra.mxu0 %v3497
  %3934 = vmatprep.subr.mxu0 %v3493
  %3935 = vmatpush1.msra.mxu0 %v3491
  %3936 = vmatprep.subr.mxu0 %v3487
  %3937 = vmatpush1.msra.mxu0 %v3485
  %3938 = vmatprep.subr.mxu0 0.0
  %3939 = vmatpush2.msra.mxu0 0.0
  %3940 = vmatprep.subr.mxu0 0.0
  %3941 = vmatpush2.msra.mxu0 0.0
  %3942 = vmatprep.subr.mxu0 0.0
  %3943 = vmatpush2.msra.mxu0 0.0
  %3944 = vmatprep.subr.mxu0 0.0
  %3945 = vmatpush2.msra.mxu0 0.0
  %3946 = vmatprep.subr.mxu0 0.0
  %3947 = vmatpush2.msra.mxu0 0.0
  %3948 = vmatprep.subr.mxu0 0.0
  %3949 = vmatpush2.msra.mxu0 0.0
  %3950 = vmatprep.subr.mxu0 0.0
  %3951 = vmatpush2.msra.mxu0 0.0
  %3952 = vmatprep.subr.mxu0 0.0
  %3953 = vmatpush2.msra.mxu0 0.0
  %3954 = vmatprep.subr.mxu0 0.0
  %3955 = vmatpush2.msra.mxu0 0.0
  %3956 = vmatprep.subr.mxu0 0.0
  %3957 = vmatpush2.msra.mxu0 0.0
  %3958 = vmatprep.subr.mxu0 0.0
  %3959 = vmatpush2.msra.mxu0 0.0
  %3960 = vmatprep.subr.mxu0 0.0
  %3961 = vmatpush2.msra.mxu0 0.0
  %3962 = vmatprep.subr.mxu0 0.0
  %3963 = vmatpush2.msra.mxu0 0.0
  %3964 = vmatprep.subr.mxu0 0.0
  %3965 = vmatpush2.msra.mxu0 0.0
  %3966 = vmatprep.subr.mxu0 0.0
  %3967 = vmatpush2.msra.mxu0 0.0
  %3968 = vmatprep.subr.mxu0 0.0
  %3969 = vmatpush2.msra.mxu0 0.0
  %3970 = vmatprep.mubr.f32.mxu0 0.0
  %3971 = vmatmul.mubr.f32.gmra.mxu0 %v20
  %v3972 = vpop.f32.mrf.mxu0
  %v3973 = vadd.f32 %v2022, %v3972
  %v3974 = vpop.f32.mrf.mxu0
  %v3975 = vadd.f32 %v2022, %v3974
  %3976 = vdwg.mxu0
  %v3977 = vadd.f32 %v3973, %v3975
  %3978 = vadd.xlane.f32.xlu0 %v3977
  %v3979 = vpop.xlane.xlu0 %3978
  %v3980 = vrot.slane %v3979, 4
  %v3981 = vadd.f32 %v3979, %v3980
  %v3982 = vrot.slane %v3981, 2
  %v3983 = vadd.f32 %v3981, %v3982
  %v3984 = vrot.slane %v3983, 1
  %v3985 = vadd.f32 %v3983, %v3984
  %s3986 = vtos %v3985
  %s3987 = smul.f32 %s3986, 0.00048828125
  %v3988 = vmul.f32 %v3973, %v3973
  %v3989 = vmul.f32 %v3975, %v3975
  %v3990 = vadd.f32 %v3988, %v3989
  %3991 = vadd.xlane.f32.xlu0 %v3990
  %v3992 = vpop.xlane.xlu0 %3991
  %v3993 = vrot.slane %v3992, 4
  %v3994 = vadd.f32 %v3992, %v3993
  %v3995 = vrot.slane %v3994, 2
  %v3996 = vadd.f32 %v3994, %v3995
  %v3997 = vrot.slane %v3996, 1
  %v3998 = vadd.f32 %v3996, %v3997
  %s3999 = vtos %v3998
  %s4000 = smul.f32 %s3999, 0.00048828125
  %s4001 = smul.f32 %s3987, %s3987
  %s4002 = ssub.f32 %s4000, %s4001
  %s4003 = sadd.f32 %s4002, 1e-05
  %v4004 = vstv %s4003
  %v4005 = vrsqrt.pop %v4004
  %s4006 = vtos %v4005
  %v4007 = vstv %s4006
  %v4008 = vmul.f32 %v21, %v4007
  %v4009 = vstv %s3987
  %v4010 = vmul.f32 %v4009, %v4008
  %4012 = vrot.lane.b32.xlu0 %v4010, 1
  %v4013 = vpop.permute.xlu0 %4012
  %v4015 = vsub.f32 %v21, %v4013
  %4017 = vset.pattern.permute.xlu0 1
  %4018 = vperm.xlu0 %4017, %v4008
  %v4019 = vpop.permute.xlu0 %4018
  %v4021 = vmul.f32 %v3973, %v4019
  %v4022 = vmul.f32 %v3975, %v4019
  %4024 = vset.pattern.permute.xlu0 2
  %4025 = vperm.xlu0 %4024, %v4015
  %v4026 = vpop.permute.xlu0 %4025
  %v4028 = vadd.f32 %v4021, %v4026
  %v4029 = vadd.f32 %v4022, %v4026
  %s4030 = scalar_lea.vmem %s4, 16
  %4031 = vst [vmem:[%s4030] sm:$0xff] %v4028
  %4032 = vst [vmem:[%s4030 + $0x8] sm:$0xff] %v4029
  // Predicated region
  $region18: #{linear_attention.1} parent=0 // pred_check
    _
  $region19: #{linear_attention.1} parent=0 // pred_check_branch
    %4034 = sbr.rel (0) target = $region21
  $region20: #{linear_attention.1} parent=0 // pred_region
    _
  $region21: #{linear_attention.1} parent=0 // pred_fallthru
    _
  // Predicated region
  $region22: #{linear_attention.1} parent=0 // pred_check
    _
  $region23: #{linear_attention.1} parent=0 // pred_check_branch
    %4036 = sbr.rel (0) target = $region25
  $region24: #{linear_attention.1} parent=0 // pred_region
    _
  $region25: #{linear_attention.1} parent=0 // pred_fallthru
    _

</llo_original>
